<compile_context>
chip_gen: v6e
topology: v6e:2x2x1
jax: 0.10.0
libtpu: 0.0.40
codegen_flags: <defaults>
</compile_context>

<pallas_src>
import jax
import jax.numpy as jnp
from jax import lax
from jax.experimental import pallas as pl
from jax.experimental.pallas import tpu as pltpu


def _lstm_vpu_kernel(x_ref, wih0_ref, whh0_ref, b0_ref, w1_ref, b1_ref,
                     wfc_ref, bfc_ref, out_ref, h01_ref, c0_ref, c1_ref):
    # Block shapes:
    #   x_ref    : (1, T, B, NB)
    #   wih0_ref : (1, 4H, NB)        layer-0 input weights (input_size == 1)
    #   whh0_ref : (1, H, 4H, NB)     layer-0 recurrent weights (k, gate, n)
    #   b0_ref   : (1, 4H, NB)        layer-0 bias (b_ih + b_hh)
    #   w1_ref   : (1, 2H, 4H, NB)    fused [W_ih_l1 ; W_hh_l1]
    #   b1_ref   : (1, 4H, NB)
    #   wfc_ref  : (T,)   SMEM        shared fc weight
    #   bfc_ref  : (1,)   SMEM        shared fc bias
    #   out_ref  : (1, B, NB)         lane-dense prediction
    # Scratch (persistent per grid step, re-zeroed below):
    #   h01_ref  : (B, 2H, NB)        stacked [h0 | h1]
    #   c0_ref   : (B, H, NB), c1_ref : (B, H, NB)
    T = x_ref.shape[1]
    B = x_ref.shape[2]
    NB = x_ref.shape[3]
    H = whh0_ref.shape[1]

    # Fresh recurrent state for this neuron block.
    h01_ref[...] = jnp.zeros_like(h01_ref)
    c0_ref[...] = jnp.zeros_like(c0_ref)
    c1_ref[...] = jnp.zeros_like(c1_ref)

    def matvec_gate(w_ref_, gate, kdim, init):
        """init[b,h,n] + sum_k h01_ref[b,k,n] * w_ref_[0, k, gate*H + h, n].

        Weight-stationary VPU contraction: per-neuron weights sit on the lane
        axis, so each k is one sublane-broadcast multiply-add over full
        (8,128) vregs.  K is walked in aligned 8-sublane chunks via fori_loop;
        the 8 inner MACs are Python-unrolled for scheduler visibility.
        """
        lo = gate * H

        def chunk(j, acc):
            k0 = pl.multiple_of(j * 8, 8)
            h_t = h01_ref[:, pl.ds(k0, 8), :]                         # (B, 8, NB)
            for jj in range(8):
                w_jj = w_ref_[0, pl.ds(k0 + jj, 1), lo:lo + H, :][0]  # (H, NB)
                acc = acc + h_t[:, jj:jj + 1, :] * w_jj               # (B, H, NB)
            return acc

        return lax.fori_loop(0, kdim // 8, chunk, init)

    def step(t, acc):
        x_t = x_ref[0, pl.ds(t, 1)][0]                  # (B, NB)
        xb = x_t[:, None, :].astype(jnp.float32)        # (B, 1, NB)

        # ----------------------------- layer 0 -----------------------------
        # input_size == 1: the input contribution is a sublane-broadcast product.
        def g0_init(gate):
            lo = gate * H
            return (xb * wih0_ref[0, lo:lo + H, :]
                    + b0_ref[0, lo:lo + H, :]).astype(jnp.float32)

        # Gate order is computed so at most ~2 gate-sized values are live.
        i0 = jax.nn.sigmoid(matvec_gate(whh0_ref, 0, H, g0_init(0)))
        g0 = jnp.tanh(matvec_gate(whh0_ref, 2, H, g0_init(2)))
        ig0 = i0 * g0
        f0 = jax.nn.sigmoid(matvec_gate(whh0_ref, 1, H, g0_init(1)))
        c0 = f0 * c0_ref[...] + ig0
        o0 = jax.nn.sigmoid(matvec_gate(whh0_ref, 3, H, g0_init(3)))
        h0 = o0 * jnp.tanh(c0)
        c0_ref[...] = c0
        h01_ref[:, :H, :] = h0          # layer 1 sees [new h0 | old h1]

        # ----------------------------- layer 1 -----------------------------
        def g1_init(gate):
            lo = gate * H
            return jnp.broadcast_to(
                b1_ref[0, lo:lo + H, :][None].astype(jnp.float32), (B, H, NB))

        i1 = jax.nn.sigmoid(matvec_gate(w1_ref, 0, 2 * H, g1_init(0)))
        g1 = jnp.tanh(matvec_gate(w1_ref, 2, 2 * H, g1_init(2)))
        ig1 = i1 * g1
        f1 = jax.nn.sigmoid(matvec_gate(w1_ref, 1, 2 * H, g1_init(1)))
        c1 = f1 * c1_ref[...] + ig1
        o1 = jax.nn.sigmoid(matvec_gate(w1_ref, 3, 2 * H, g1_init(3)))
        h1 = o1 * jnp.tanh(c1)
        c1_ref[...] = c1
        h01_ref[:, H:, :] = h1

        # Online fc (Linear(T,1)) over the LAST hidden unit of layer 1.
        return acc + wfc_ref[t] * h1[:, H - 1, :]

    acc = lax.fori_loop(0, T, step, jnp.zeros((B, NB), jnp.float32))
    out_ref[0] = (acc + bfc_ref[0]).astype(out_ref.dtype)


def _round_up(n, m):
    return ((n + m - 1) // m) * m


def single_sample_lstm_layer(x, params, hidden_size, neuron_block=128,
                             weight_dtype=jnp.float32):
    """x: (B, N, T) float32 -> (B, N) float32 (matches the torch forward).

    neuron_block: neurons per grid step (lane axis).  Use a multiple of 128
    for full lane density; on v7x keep ceil(N/neuron_block) >= 2 and even so
    both TensorCores get work.  weight_dtype=jnp.bfloat16 halves HBM/VMEM
    weight traffic (kernel is VPU-bound so f32 is the default).
    """
    B, N, T = x.shape
    H = hidden_size
    assert H % 8 == 0, "hidden_size must be a multiple of 8"
    wih0, whh0, b0, wih1, whh1, b1, wfc, bfc = params

    NB = min(neuron_block, _round_up(N, 8))
    G = pl.cdiv(N, NB)
    N_pad = G * NB

    def blockify(a, dtype=None):
        # (N, ...) -> (G, ..., NB): neurons go to the minormost (lane) axis.
        if N_pad != N:
            a = jnp.pad(a, [(0, N_pad - N)] + [(0, 0)] * (a.ndim - 1))
        a = a.reshape((G, NB) + a.shape[1:])
        a = jnp.moveaxis(a, 1, -1)
        return a.astype(dtype) if dtype is not None else a

    # x: (B, N, T) -> (G, T, B, NB)
    x_blk = blockify(jnp.transpose(x, (1, 2, 0)))
    wih0_blk = blockify(wih0.reshape(N, 4 * H), weight_dtype)              # (G, 4H, NB)
    whh0_blk = blockify(whh0, weight_dtype)                                # (G, H, 4H, NB)
    b0_blk = blockify(b0)                                                  # (G, 4H, NB)
    w1_blk = blockify(jnp.concatenate([wih1, whh1], axis=1), weight_dtype)  # (G, 2H, 4H, NB)
    b1_blk = blockify(b1)                                                  # (G, 4H, NB)
    wfc_s = wfc.reshape(T).astype(jnp.float32)                             # SMEM scalars
    bfc_s = bfc.reshape(1).astype(jnp.float32)

    out = pl.pallas_call(
        _lstm_vpu_kernel,
        out_shape=jax.ShapeDtypeStruct((G, B, NB), jnp.float32),
        grid_spec=pltpu.PrefetchScalarGridSpec(
            num_scalar_prefetch=0,
            grid=(G,),
            in_specs=[
                pl.BlockSpec((1, T, B, NB), lambda i: (i, 0, 0, 0)),       # x
                pl.BlockSpec((1, 4 * H, NB), lambda i: (i, 0, 0)),         # W_ih_l0
                pl.BlockSpec((1, H, 4 * H, NB), lambda i: (i, 0, 0, 0)),   # W_hh_l0
                pl.BlockSpec((1, 4 * H, NB), lambda i: (i, 0, 0)),         # b_l0
                pl.BlockSpec((1, 2 * H, 4 * H, NB), lambda i: (i, 0, 0, 0)),  # [W_ih;W_hh]_l1
                pl.BlockSpec((1, 4 * H, NB), lambda i: (i, 0, 0)),         # b_l1
                pl.BlockSpec(memory_space=pltpu.MemorySpace.SMEM),         # fc weight
                pl.BlockSpec(memory_space=pltpu.MemorySpace.SMEM),         # fc bias
            ],
            out_specs=pl.BlockSpec((1, B, NB), lambda i: (i, 0, 0)),       # lane-dense
            scratch_shapes=[
                pltpu.VMEM((B, 2 * H, NB), jnp.float32),   # [h0 | h1]
                pltpu.VMEM((B, H, NB), jnp.float32),       # c0
                pltpu.VMEM((B, H, NB), jnp.float32),       # c1
            ],
        ),
        compiler_params=pltpu.CompilerParams(
            dimension_semantics=("parallel",),        # neuron blocks independent
            vmem_limit_bytes=32 * 1024 * 1024),       # ~13 MiB used @ NB=128 f32
    )(x_blk, wih0_blk, whh0_blk, b0_blk, w1_blk, b1_blk, wfc_s, bfc_s)

    # (G, B, NB) -> (B, N)
    out = jnp.transpose(out, (1, 0, 2)).reshape(B, N_pad)[:, :N]
    return out


def init_params(key, N, T, H):
    """Deterministic PyTorch-style U(-1/sqrt(H), 1/sqrt(H)) init, stacked per neuron."""
    scale = 1.0 / jnp.sqrt(jnp.float32(H))
    ks = jax.random.split(key, 9)

    def u(k, shape, s):
        return jax.random.uniform(k, shape, jnp.float32, -s, s)

    wih0 = u(ks[0], (N, 1, 4 * H), scale)                              # (in=1, 4H)
    whh0 = u(ks[1], (N, H, 4 * H), scale)                              # (in=H, 4H)
    b0 = u(ks[2], (N, 4 * H), scale) + u(ks[3], (N, 4 * H), scale)     # b_ih + b_hh
    wih1 = u(ks[4], (N, H, 4 * H), scale)
    whh1 = u(ks[5], (N, H, 4 * H), scale)
    b1 = u(ks[6], (N, 4 * H), scale) + u(ks[7], (N, 4 * H), scale)
    fscale = 1.0 / jnp.sqrt(jnp.float32(T))
    k8, k9 = jax.random.split(ks[8])
    wfc = u(k8, (1, T), fscale)   # shared fc: Linear(T, 1)
    bfc = u(k9, (1, 1), fscale)
    return (wih0, whh0, b0, wih1, whh1, b1, wfc, bfc)


def ref_forward(x, params, H):
    """Pure-JAX reference mirroring the PyTorch forward exactly."""
    wih0, whh0, b0, wih1, whh1, b1, wfc, bfc = params
    B, N, T = x.shape

    def cell(x_in, h, c, wih, whh, b):
        g = x_in @ wih + h @ whh + b
        i = jax.nn.sigmoid(g[:, 0:H])
        f = jax.nn.sigmoid(g[:, H:2 * H])
        gg = jnp.tanh(g[:, 2 * H:3 * H])
        o = jax.nn.sigmoid(g[:, 3 * H:4 * H])
        c = f * c + i * gg
        h = o * jnp.tanh(c)
        return h, c

    outs = []
    for n in range(N):
        h0 = jnp.zeros((B, H), jnp.float32)
        c0 = jnp.zeros((B, H), jnp.float32)
        h1 = jnp.zeros((B, H), jnp.float32)
        c1 = jnp.zeros((B, H), jnp.float32)
        lasts = []
        for t in range(T):
            xt = x[:, n, t:t + 1]
            h0, c0 = cell(xt, h0, c0, wih0[n], whh0[n], b0[n])
            h1, c1 = cell(h0, h1, c1, wih1[n], whh1[n], b1[n])
            lasts.append(h1[:, H - 1:H])
        last = jnp.concatenate(lasts, axis=1)                      # (B, T)
        pred = jnp.sum(last * wfc, axis=-1, keepdims=True) + bfc   # (B, 1)
        outs.append(pred)
    return jnp.concatenate(outs, axis=1)                           # (B, N)


if __name__ == "__main__":
    B, N, T, H = 2, 4, 8, 32   # batch, num_neurons, sequence_length, hidden_size
    key = jax.random.PRNGKey(0)
    kx, kp = jax.random.split(key)
    x = jax.random.normal(kx, (B, N, T), jnp.float32)
    params = init_params(kp, N, T, H)

    out = single_sample_lstm_layer(x, params, H)
    out = jax.block_until_ready(out)

    ref = ref_forward(x, params, H)
    assert out.shape == (B, N), out.shape
    assert jnp.allclose(out, ref, atol=1e-4, rtol=1e-4), (out, ref)
    print("KERNEL_OK")
</pallas_src>

<mosaic_0001>
module attributes {stable_mosaic.version = 11 : i64} {
  func.func @_lstm_vpu_kernel(%arg0: i32, %arg1: memref<1x8x2x8xf32, #tpu.memory_space<vmem>>, %arg2: memref<1x128x8xf32, #tpu.memory_space<vmem>>, %arg3: memref<1x32x128x8xf32, #tpu.memory_space<vmem>>, %arg4: memref<1x128x8xf32, #tpu.memory_space<vmem>>, %arg5: memref<1x64x128x8xf32, #tpu.memory_space<vmem>>, %arg6: memref<1x128x8xf32, #tpu.memory_space<vmem>>, %arg7: memref<8xf32, #tpu.memory_space<smem>>, %arg8: memref<1xf32, #tpu.memory_space<smem>>, %arg9: memref<1x2x8xf32, #tpu.memory_space<vmem>>, %arg10: memref<2x64x8xf32, #tpu.memory_space<vmem>>, %arg11: memref<2x32x8xf32, #tpu.memory_space<vmem>>, %arg12: memref<2x32x8xf32, #tpu.memory_space<vmem>>) attributes {dimension_semantics = [#tpu.dimension_semantics<parallel>], iteration_bounds = array<i64: 1>, scalar_prefetch = 0 : i64, scratch_operands = 3 : i64, tpu.core_type = #tpu.core_type<tc>, window_params = [{transform_indices = @transform_0, window_bounds = array<i64: 1, 8, 2, 8>}, {transform_indices = @transform_1, window_bounds = array<i64: 1, 128, 8>}, {transform_indices = @transform_2, window_bounds = array<i64: 1, 32, 128, 8>}, {transform_indices = @transform_3, window_bounds = array<i64: 1, 128, 8>}, {transform_indices = @transform_4, window_bounds = array<i64: 1, 64, 128, 8>}, {transform_indices = @transform_5, window_bounds = array<i64: 1, 128, 8>}, {transform_indices = @transform_6, window_bounds = array<i64: 8>}, {transform_indices = @transform_7, window_bounds = array<i64: 1>}, {transform_indices = @transform_8, window_bounds = array<i64: 1, 2, 8>}]} {
    %cst = arith.constant 0.000000e+00 : f32
    %0 = vector.broadcast %cst : f32 to vector<2x64x8xf32>
    %c0 = arith.constant 0 : index
    %c0_0 = arith.constant 0 : index
    %c0_1 = arith.constant 0 : index
    %1 = vector.load %arg10[%c0, %c0_0, %c0_1] : memref<2x64x8xf32, #tpu.memory_space<vmem>>, vector<2x64x8xf32>
    tpu.vector_store %arg10[%c0, %c0_0, %c0_1], %0 {strides = array<i32>} : memref<2x64x8xf32, #tpu.memory_space<vmem>>, vector<2x64x8xf32>,
    %cst_2 = arith.constant 0.000000e+00 : f32
    %2 = vector.broadcast %cst_2 : f32 to vector<2x32x8xf32>
    %c0_3 = arith.constant 0 : index
    %c0_4 = arith.constant 0 : index
    %c0_5 = arith.constant 0 : index
    %3 = vector.load %arg11[%c0_3, %c0_4, %c0_5] : memref<2x32x8xf32, #tpu.memory_space<vmem>>, vector<2x32x8xf32>
    tpu.vector_store %arg11[%c0_3, %c0_4, %c0_5], %2 {strides = array<i32>} : memref<2x32x8xf32, #tpu.memory_space<vmem>>, vector<2x32x8xf32>,
    %cst_6 = arith.constant 0.000000e+00 : f32
    %4 = vector.broadcast %cst_6 : f32 to vector<2x32x8xf32>
    %c0_7 = arith.constant 0 : index
    %c0_8 = arith.constant 0 : index
    %c0_9 = arith.constant 0 : index
    %5 = vector.load %arg12[%c0_7, %c0_8, %c0_9] : memref<2x32x8xf32, #tpu.memory_space<vmem>>, vector<2x32x8xf32>
    tpu.vector_store %arg12[%c0_7, %c0_8, %c0_9], %4 {strides = array<i32>} : memref<2x32x8xf32, #tpu.memory_space<vmem>>, vector<2x32x8xf32>,
    %cst_10 = arith.constant 0.000000e+00 : f32
    %6 = vector.broadcast %cst_10 : f32 to vector<2x8xf32>
    %c0_i32 = arith.constant 0 : i32
    %c8_i32 = arith.constant 8 : i32
    %7 = arith.addi %c0_i32, %c8_i32 : i32
    %c1_i32 = arith.constant 1 : i32
    %8 = scf.for %arg13 = %c0_i32 to %7 step %c1_i32 iter_args(%arg14 = %6) -> (vector<2x8xf32>)  : i32 {
      %c0_16 = arith.constant 0 : index
      %15 = arith.index_cast %arg13 : i32 to index
      %c0_17 = arith.constant 0 : index
      %c0_18 = arith.constant 0 : index
      %16 = vector.load %arg1[%c0_16, %15, %c0_17, %c0_18] : memref<1x8x2x8xf32, #tpu.memory_space<vmem>>, vector<1x1x2x8xf32>
      %17 = vector.shape_cast %16 : vector<1x1x2x8xf32> to vector<1x2x8xf32>
      %18 = vector.shape_cast %17 : vector<1x2x8xf32> to vector<2x8xf32>
      %19 = vector.shape_cast %18 : vector<2x8xf32> to vector<2x1x8xf32>
      %c0_19 = arith.constant 0 : index
      %c0_20 = arith.constant 0 : index
      %c0_21 = arith.constant 0 : index
      %20 = vector.load %arg2[%c0_19, %c0_20, %c0_21] : memref<1x128x8xf32, #tpu.memory_space<vmem>>, vector<1x32x8xf32>
      %21 = vector.shape_cast %20 : vector<1x32x8xf32> to vector<32x8xf32>
      %22 = vector.shape_cast %21 : vector<32x8xf32> to vector<1x32x8xf32>
      %23 = vector.broadcast %19 : vector<2x1x8xf32> to vector<2x32x8xf32>
      %24 = vector.broadcast %22 : vector<1x32x8xf32> to vector<2x32x8xf32>
      %25 = arith.mulf %23, %24 : vector<2x32x8xf32>
      %c0_22 = arith.constant 0 : index
      %c0_23 = arith.constant 0 : index
      %c0_24 = arith.constant 0 : index
      %26 = vector.load %arg4[%c0_22, %c0_23, %c0_24] : memref<1x128x8xf32, #tpu.memory_space<vmem>>, vector<1x32x8xf32>
      %27 = vector.shape_cast %26 : vector<1x32x8xf32> to vector<32x8xf32>
      %28 = vector.shape_cast %27 : vector<32x8xf32> to vector<1x32x8xf32>
      %29 = vector.broadcast %28 : vector<1x32x8xf32> to vector<2x32x8xf32>
      %30 = arith.addf %25, %29 : vector<2x32x8xf32>
      %c0_i32_25 = arith.constant 0 : i32
      %c4_i32 = arith.constant 4 : i32
      %31 = arith.addi %c0_i32_25, %c4_i32 : i32
      %c1_i32_26 = arith.constant 1 : i32
      %32 = scf.for %arg15 = %c0_i32_25 to %31 step %c1_i32_26 iter_args(%arg16 = %30) -> (vector<2x32x8xf32>)  : i32 {
        %c8_i32_107 = arith.constant 8 : i32
        %155 = arith.muli %arg15, %c8_i32_107 : i32
        %156 = tpu.assume_multiple %155, 8 : i32
        %c0_108 = arith.constant 0 : index
        %157 = arith.index_cast %156 : i32 to index
        %c0_109 = arith.constant 0 : index
        %158 = vector.load %arg10[%c0_108, %157, %c0_109] : memref<2x64x8xf32, #tpu.memory_space<vmem>>, vector<2x8x8xf32>
        %c0_i32_110 = arith.constant 0 : i32
        %159 = arith.addi %156, %c0_i32_110 : i32
        %c0_111 = arith.constant 0 : index
        %160 = arith.index_cast %159 : i32 to index
        %c0_112 = arith.constant 0 : index
        %c0_113 = arith.constant 0 : index
        %161 = vector.load %arg3[%c0_111, %160, %c0_112, %c0_113] : memref<1x32x128x8xf32, #tpu.memory_space<vmem>>, vector<1x1x32x8xf32>
        %162 = vector.shape_cast %161 : vector<1x1x32x8xf32> to vector<1x32x8xf32>
        %163 = vector.shape_cast %162 : vector<1x32x8xf32> to vector<32x8xf32>
        %164 = vector.extract_strided_slice %158 {offsets = [0, 0, 0], sizes = [2, 1, 8], strides = [1, 1, 1]} : vector<2x8x8xf32> to vector<2x1x8xf32>
        %165 = vector.shape_cast %163 : vector<32x8xf32> to vector<1x32x8xf32>
        %166 = vector.broadcast %164 : vector<2x1x8xf32> to vector<2x32x8xf32>
        %167 = vector.broadcast %165 : vector<1x32x8xf32> to vector<2x32x8xf32>
        %168 = arith.mulf %166, %167 : vector<2x32x8xf32>
        %169 = arith.addf %arg16, %168 : vector<2x32x8xf32>
        %c1_i32_114 = arith.constant 1 : i32
        %170 = arith.addi %156, %c1_i32_114 : i32
        %c0_115 = arith.constant 0 : index
        %171 = arith.index_cast %170 : i32 to index
        %c0_116 = arith.constant 0 : index
        %c0_117 = arith.constant 0 : index
        %172 = vector.load %arg3[%c0_115, %171, %c0_116, %c0_117] : memref<1x32x128x8xf32, #tpu.memory_space<vmem>>, vector<1x1x32x8xf32>
        %173 = vector.shape_cast %172 : vector<1x1x32x8xf32> to vector<1x32x8xf32>
        %174 = vector.shape_cast %173 : vector<1x32x8xf32> to vector<32x8xf32>
        %175 = vector.extract_strided_slice %158 {offsets = [0, 1, 0], sizes = [2, 1, 8], strides = [1, 1, 1]} : vector<2x8x8xf32> to vector<2x1x8xf32>
        %176 = vector.shape_cast %174 : vector<32x8xf32> to vector<1x32x8xf32>
        %177 = vector.broadcast %175 : vector<2x1x8xf32> to vector<2x32x8xf32>
        %178 = vector.broadcast %176 : vector<1x32x8xf32> to vector<2x32x8xf32>
        %179 = arith.mulf %177, %178 : vector<2x32x8xf32>
        %180 = arith.addf %169, %179 : vector<2x32x8xf32>
        %c2_i32 = arith.constant 2 : i32
        %181 = arith.addi %156, %c2_i32 : i32
        %c0_118 = arith.constant 0 : index
        %182 = arith.index_cast %181 : i32 to index
        %c0_119 = arith.constant 0 : index
        %c0_120 = arith.constant 0 : index
        %183 = vector.load %arg3[%c0_118, %182, %c0_119, %c0_120] : memref<1x32x128x8xf32, #tpu.memory_space<vmem>>, vector<1x1x32x8xf32>
        %184 = vector.shape_cast %183 : vector<1x1x32x8xf32> to vector<1x32x8xf32>
        %185 = vector.shape_cast %184 : vector<1x32x8xf32> to vector<32x8xf32>
        %186 = vector.extract_strided_slice %158 {offsets = [0, 2, 0], sizes = [2, 1, 8], strides = [1, 1, 1]} : vector<2x8x8xf32> to vector<2x1x8xf32>
        %187 = vector.shape_cast %185 : vector<32x8xf32> to vector<1x32x8xf32>
        %188 = vector.broadcast %186 : vector<2x1x8xf32> to vector<2x32x8xf32>
        %189 = vector.broadcast %187 : vector<1x32x8xf32> to vector<2x32x8xf32>
        %190 = arith.mulf %188, %189 : vector<2x32x8xf32>
        %191 = arith.addf %180, %190 : vector<2x32x8xf32>
        %c3_i32 = arith.constant 3 : i32
        %192 = arith.addi %156, %c3_i32 : i32
        %c0_121 = arith.constant 0 : index
        %193 = arith.index_cast %192 : i32 to index
        %c0_122 = arith.constant 0 : index
        %c0_123 = arith.constant 0 : index
        %194 = vector.load %arg3[%c0_121, %193, %c0_122, %c0_123] : memref<1x32x128x8xf32, #tpu.memory_space<vmem>>, vector<1x1x32x8xf32>
        %195 = vector.shape_cast %194 : vector<1x1x32x8xf32> to vector<1x32x8xf32>
        %196 = vector.shape_cast %195 : vector<1x32x8xf32> to vector<32x8xf32>
        %197 = vector.extract_strided_slice %158 {offsets = [0, 3, 0], sizes = [2, 1, 8], strides = [1, 1, 1]} : vector<2x8x8xf32> to vector<2x1x8xf32>
        %198 = vector.shape_cast %196 : vector<32x8xf32> to vector<1x32x8xf32>
        %199 = vector.broadcast %197 : vector<2x1x8xf32> to vector<2x32x8xf32>
        %200 = vector.broadcast %198 : vector<1x32x8xf32> to vector<2x32x8xf32>
        %201 = arith.mulf %199, %200 : vector<2x32x8xf32>
        %202 = arith.addf %191, %201 : vector<2x32x8xf32>
        %c4_i32_124 = arith.constant 4 : i32
        %203 = arith.addi %156, %c4_i32_124 : i32
        %c0_125 = arith.constant 0 : index
        %204 = arith.index_cast %203 : i32 to index
        %c0_126 = arith.constant 0 : index
        %c0_127 = arith.constant 0 : index
        %205 = vector.load %arg3[%c0_125, %204, %c0_126, %c0_127] : memref<1x32x128x8xf32, #tpu.memory_space<vmem>>, vector<1x1x32x8xf32>
        %206 = vector.shape_cast %205 : vector<1x1x32x8xf32> to vector<1x32x8xf32>
        %207 = vector.shape_cast %206 : vector<1x32x8xf32> to vector<32x8xf32>
        %208 = vector.extract_strided_slice %158 {offsets = [0, 4, 0], sizes = [2, 1, 8], strides = [1, 1, 1]} : vector<2x8x8xf32> to vector<2x1x8xf32>
        %209 = vector.shape_cast %207 : vector<32x8xf32> to vector<1x32x8xf32>
        %210 = vector.broadcast %208 : vector<2x1x8xf32> to vector<2x32x8xf32>
        %211 = vector.broadcast %209 : vector<1x32x8xf32> to vector<2x32x8xf32>
        %212 = arith.mulf %210, %211 : vector<2x32x8xf32>
        %213 = arith.addf %202, %212 : vector<2x32x8xf32>
        %c5_i32 = arith.constant 5 : i32
        %214 = arith.addi %156, %c5_i32 : i32
        %c0_128 = arith.constant 0 : index
        %215 = arith.index_cast %214 : i32 to index
        %c0_129 = arith.constant 0 : index
        %c0_130 = arith.constant 0 : index
        %216 = vector.load %arg3[%c0_128, %215, %c0_129, %c0_130] : memref<1x32x128x8xf32, #tpu.memory_space<vmem>>, vector<1x1x32x8xf32>
        %217 = vector.shape_cast %216 : vector<1x1x32x8xf32> to vector<1x32x8xf32>
        %218 = vector.shape_cast %217 : vector<1x32x8xf32> to vector<32x8xf32>
        %219 = vector.extract_strided_slice %158 {offsets = [0, 5, 0], sizes = [2, 1, 8], strides = [1, 1, 1]} : vector<2x8x8xf32> to vector<2x1x8xf32>
        %220 = vector.shape_cast %218 : vector<32x8xf32> to vector<1x32x8xf32>
        %221 = vector.broadcast %219 : vector<2x1x8xf32> to vector<2x32x8xf32>
        %222 = vector.broadcast %220 : vector<1x32x8xf32> to vector<2x32x8xf32>
        %223 = arith.mulf %221, %222 : vector<2x32x8xf32>
        %224 = arith.addf %213, %223 : vector<2x32x8xf32>
        %c6_i32 = arith.constant 6 : i32
        %225 = arith.addi %156, %c6_i32 : i32
        %c0_131 = arith.constant 0 : index
        %226 = arith.index_cast %225 : i32 to index
        %c0_132 = arith.constant 0 : index
        %c0_133 = arith.constant 0 : index
        %227 = vector.load %arg3[%c0_131, %226, %c0_132, %c0_133] : memref<1x32x128x8xf32, #tpu.memory_space<vmem>>, vector<1x1x32x8xf32>
        %228 = vector.shape_cast %227 : vector<1x1x32x8xf32> to vector<1x32x8xf32>
        %229 = vector.shape_cast %228 : vector<1x32x8xf32> to vector<32x8xf32>
        %230 = vector.extract_strided_slice %158 {offsets = [0, 6, 0], sizes = [2, 1, 8], strides = [1, 1, 1]} : vector<2x8x8xf32> to vector<2x1x8xf32>
        %231 = vector.shape_cast %229 : vector<32x8xf32> to vector<1x32x8xf32>
        %232 = vector.broadcast %230 : vector<2x1x8xf32> to vector<2x32x8xf32>
        %233 = vector.broadcast %231 : vector<1x32x8xf32> to vector<2x32x8xf32>
        %234 = arith.mulf %232, %233 : vector<2x32x8xf32>
        %235 = arith.addf %224, %234 : vector<2x32x8xf32>
        %c7_i32 = arith.constant 7 : i32
        %236 = arith.addi %156, %c7_i32 : i32
        %c0_134 = arith.constant 0 : index
        %237 = arith.index_cast %236 : i32 to index
        %c0_135 = arith.constant 0 : index
        %c0_136 = arith.constant 0 : index
        %238 = vector.load %arg3[%c0_134, %237, %c0_135, %c0_136] : memref<1x32x128x8xf32, #tpu.memory_space<vmem>>, vector<1x1x32x8xf32>
        %239 = vector.shape_cast %238 : vector<1x1x32x8xf32> to vector<1x32x8xf32>
        %240 = vector.shape_cast %239 : vector<1x32x8xf32> to vector<32x8xf32>
        %241 = vector.extract_strided_slice %158 {offsets = [0, 7, 0], sizes = [2, 1, 8], strides = [1, 1, 1]} : vector<2x8x8xf32> to vector<2x1x8xf32>
        %242 = vector.shape_cast %240 : vector<32x8xf32> to vector<1x32x8xf32>
        %243 = vector.broadcast %241 : vector<2x1x8xf32> to vector<2x32x8xf32>
        %244 = vector.broadcast %242 : vector<1x32x8xf32> to vector<2x32x8xf32>
        %245 = arith.mulf %243, %244 : vector<2x32x8xf32>
        %246 = arith.addf %235, %245 : vector<2x32x8xf32>
        scf.yield %246 : vector<2x32x8xf32>
      }
      %c4_i32_27 = arith.constant 4 : i32
      %33 = arith.negf %32 : vector<2x32x8xf32>
      %34 = math.exp %33 : vector<2x32x8xf32>
      %cst_28 = arith.constant 1.000000e+00 : f32
      %35 = vector.broadcast %cst_28 : f32 to vector<2x32x8xf32>
      %36 = arith.addf %35, %34 : vector<2x32x8xf32>
      %37 = arith.divf %35, %36 : vector<2x32x8xf32>
      %c0_29 = arith.constant 0 : index
      %c64 = arith.constant 64 : index
      %c0_30 = arith.constant 0 : index
      %38 = vector.load %arg2[%c0_29, %c64, %c0_30] : memref<1x128x8xf32, #tpu.memory_space<vmem>>, vector<1x32x8xf32>
      %39 = vector.shape_cast %38 : vector<1x32x8xf32> to vector<32x8xf32>
      %40 = vector.shape_cast %39 : vector<32x8xf32> to vector<1x32x8xf32>
      %41 = vector.broadcast %19 : vector<2x1x8xf32> to vector<2x32x8xf32>
      %42 = vector.broadcast %40 : vector<1x32x8xf32> to vector<2x32x8xf32>
      %43 = arith.mulf %41, %42 : vector<2x32x8xf32>
      %c0_31 = arith.constant 0 : index
      %c64_32 = arith.constant 64 : index
      %c0_33 = arith.constant 0 : index
      %44 = vector.load %arg4[%c0_31, %c64_32, %c0_33] : memref<1x128x8xf32, #tpu.memory_space<vmem>>, vector<1x32x8xf32>
      %45 = vector.shape_cast %44 : vector<1x32x8xf32> to vector<32x8xf32>
      %46 = vector.shape_cast %45 : vector<32x8xf32> to vector<1x32x8xf32>
      %47 = vector.broadcast %46 : vector<1x32x8xf32> to vector<2x32x8xf32>
      %48 = arith.addf %43, %47 : vector<2x32x8xf32>
      %c0_i32_34 = arith.constant 0 : i32
      %c4_i32_35 = arith.constant 4 : i32
      %49 = arith.addi %c0_i32_34, %c4_i32_35 : i32
      %c1_i32_36 = arith.constant 1 : i32
      %50 = scf.for %arg15 = %c0_i32_34 to %49 step %c1_i32_36 iter_args(%arg16 = %48) -> (vector<2x32x8xf32>)  : i32 {
        %c8_i32_107 = arith.constant 8 : i32
        %155 = arith.muli %arg15, %c8_i32_107 : i32
        %156 = tpu.assume_multiple %155, 8 : i32
        %c0_108 = arith.constant 0 : index
        %157 = arith.index_cast %156 : i32 to index
        %c0_109 = arith.constant 0 : index
        %158 = vector.load %arg10[%c0_108, %157, %c0_109] : memref<2x64x8xf32, #tpu.memory_space<vmem>>, vector<2x8x8xf32>
        %c0_i32_110 = arith.constant 0 : i32
        %159 = arith.addi %156, %c0_i32_110 : i32
        %c0_111 = arith.constant 0 : index
        %160 = arith.index_cast %159 : i32 to index
        %c64_112 = arith.constant 64 : index
        %c0_113 = arith.constant 0 : index
        %161 = vector.load %arg3[%c0_111, %160, %c64_112, %c0_113] : memref<1x32x128x8xf32, #tpu.memory_space<vmem>>, vector<1x1x32x8xf32>
        %162 = vector.shape_cast %161 : vector<1x1x32x8xf32> to vector<1x32x8xf32>
        %163 = vector.shape_cast %162 : vector<1x32x8xf32> to vector<32x8xf32>
        %164 = vector.extract_strided_slice %158 {offsets = [0, 0, 0], sizes = [2, 1, 8], strides = [1, 1, 1]} : vector<2x8x8xf32> to vector<2x1x8xf32>
        %165 = vector.shape_cast %163 : vector<32x8xf32> to vector<1x32x8xf32>
        %166 = vector.broadcast %164 : vector<2x1x8xf32> to vector<2x32x8xf32>
        %167 = vector.broadcast %165 : vector<1x32x8xf32> to vector<2x32x8xf32>
        %168 = arith.mulf %166, %167 : vector<2x32x8xf32>
        %169 = arith.addf %arg16, %168 : vector<2x32x8xf32>
        %c1_i32_114 = arith.constant 1 : i32
        %170 = arith.addi %156, %c1_i32_114 : i32
        %c0_115 = arith.constant 0 : index
        %171 = arith.index_cast %170 : i32 to index
        %c64_116 = arith.constant 64 : index
        %c0_117 = arith.constant 0 : index
        %172 = vector.load %arg3[%c0_115, %171, %c64_116, %c0_117] : memref<1x32x128x8xf32, #tpu.memory_space<vmem>>, vector<1x1x32x8xf32>
        %173 = vector.shape_cast %172 : vector<1x1x32x8xf32> to vector<1x32x8xf32>
        %174 = vector.shape_cast %173 : vector<1x32x8xf32> to vector<32x8xf32>
        %175 = vector.extract_strided_slice %158 {offsets = [0, 1, 0], sizes = [2, 1, 8], strides = [1, 1, 1]} : vector<2x8x8xf32> to vector<2x1x8xf32>
        %176 = vector.shape_cast %174 : vector<32x8xf32> to vector<1x32x8xf32>
        %177 = vector.broadcast %175 : vector<2x1x8xf32> to vector<2x32x8xf32>
        %178 = vector.broadcast %176 : vector<1x32x8xf32> to vector<2x32x8xf32>
        %179 = arith.mulf %177, %178 : vector<2x32x8xf32>
        %180 = arith.addf %169, %179 : vector<2x32x8xf32>
        %c2_i32 = arith.constant 2 : i32
        %181 = arith.addi %156, %c2_i32 : i32
        %c0_118 = arith.constant 0 : index
        %182 = arith.index_cast %181 : i32 to index
        %c64_119 = arith.constant 64 : index
        %c0_120 = arith.constant 0 : index
        %183 = vector.load %arg3[%c0_118, %182, %c64_119, %c0_120] : memref<1x32x128x8xf32, #tpu.memory_space<vmem>>, vector<1x1x32x8xf32>
        %184 = vector.shape_cast %183 : vector<1x1x32x8xf32> to vector<1x32x8xf32>
        %185 = vector.shape_cast %184 : vector<1x32x8xf32> to vector<32x8xf32>
        %186 = vector.extract_strided_slice %158 {offsets = [0, 2, 0], sizes = [2, 1, 8], strides = [1, 1, 1]} : vector<2x8x8xf32> to vector<2x1x8xf32>
        %187 = vector.shape_cast %185 : vector<32x8xf32> to vector<1x32x8xf32>
        %188 = vector.broadcast %186 : vector<2x1x8xf32> to vector<2x32x8xf32>
        %189 = vector.broadcast %187 : vector<1x32x8xf32> to vector<2x32x8xf32>
        %190 = arith.mulf %188, %189 : vector<2x32x8xf32>
        %191 = arith.addf %180, %190 : vector<2x32x8xf32>
        %c3_i32 = arith.constant 3 : i32
        %192 = arith.addi %156, %c3_i32 : i32
        %c0_121 = arith.constant 0 : index
        %193 = arith.index_cast %192 : i32 to index
        %c64_122 = arith.constant 64 : index
        %c0_123 = arith.constant 0 : index
        %194 = vector.load %arg3[%c0_121, %193, %c64_122, %c0_123] : memref<1x32x128x8xf32, #tpu.memory_space<vmem>>, vector<1x1x32x8xf32>
        %195 = vector.shape_cast %194 : vector<1x1x32x8xf32> to vector<1x32x8xf32>
        %196 = vector.shape_cast %195 : vector<1x32x8xf32> to vector<32x8xf32>
        %197 = vector.extract_strided_slice %158 {offsets = [0, 3, 0], sizes = [2, 1, 8], strides = [1, 1, 1]} : vector<2x8x8xf32> to vector<2x1x8xf32>
        %198 = vector.shape_cast %196 : vector<32x8xf32> to vector<1x32x8xf32>
        %199 = vector.broadcast %197 : vector<2x1x8xf32> to vector<2x32x8xf32>
        %200 = vector.broadcast %198 : vector<1x32x8xf32> to vector<2x32x8xf32>
        %201 = arith.mulf %199, %200 : vector<2x32x8xf32>
        %202 = arith.addf %191, %201 : vector<2x32x8xf32>
        %c4_i32_124 = arith.constant 4 : i32
        %203 = arith.addi %156, %c4_i32_124 : i32
        %c0_125 = arith.constant 0 : index
        %204 = arith.index_cast %203 : i32 to index
        %c64_126 = arith.constant 64 : index
        %c0_127 = arith.constant 0 : index
        %205 = vector.load %arg3[%c0_125, %204, %c64_126, %c0_127] : memref<1x32x128x8xf32, #tpu.memory_space<vmem>>, vector<1x1x32x8xf32>
        %206 = vector.shape_cast %205 : vector<1x1x32x8xf32> to vector<1x32x8xf32>
        %207 = vector.shape_cast %206 : vector<1x32x8xf32> to vector<32x8xf32>
        %208 = vector.extract_strided_slice %158 {offsets = [0, 4, 0], sizes = [2, 1, 8], strides = [1, 1, 1]} : vector<2x8x8xf32> to vector<2x1x8xf32>
        %209 = vector.shape_cast %207 : vector<32x8xf32> to vector<1x32x8xf32>
        %210 = vector.broadcast %208 : vector<2x1x8xf32> to vector<2x32x8xf32>
        %211 = vector.broadcast %209 : vector<1x32x8xf32> to vector<2x32x8xf32>
        %212 = arith.mulf %210, %211 : vector<2x32x8xf32>
        %213 = arith.addf %202, %212 : vector<2x32x8xf32>
        %c5_i32 = arith.constant 5 : i32
        %214 = arith.addi %156, %c5_i32 : i32
        %c0_128 = arith.constant 0 : index
        %215 = arith.index_cast %214 : i32 to index
        %c64_129 = arith.constant 64 : index
        %c0_130 = arith.constant 0 : index
        %216 = vector.load %arg3[%c0_128, %215, %c64_129, %c0_130] : memref<1x32x128x8xf32, #tpu.memory_space<vmem>>, vector<1x1x32x8xf32>
        %217 = vector.shape_cast %216 : vector<1x1x32x8xf32> to vector<1x32x8xf32>
        %218 = vector.shape_cast %217 : vector<1x32x8xf32> to vector<32x8xf32>
        %219 = vector.extract_strided_slice %158 {offsets = [0, 5, 0], sizes = [2, 1, 8], strides = [1, 1, 1]} : vector<2x8x8xf32> to vector<2x1x8xf32>
        %220 = vector.shape_cast %218 : vector<32x8xf32> to vector<1x32x8xf32>
        %221 = vector.broadcast %219 : vector<2x1x8xf32> to vector<2x32x8xf32>
        %222 = vector.broadcast %220 : vector<1x32x8xf32> to vector<2x32x8xf32>
        %223 = arith.mulf %221, %222 : vector<2x32x8xf32>
        %224 = arith.addf %213, %223 : vector<2x32x8xf32>
        %c6_i32 = arith.constant 6 : i32
        %225 = arith.addi %156, %c6_i32 : i32
        %c0_131 = arith.constant 0 : index
        %226 = arith.index_cast %225 : i32 to index
        %c64_132 = arith.constant 64 : index
        %c0_133 = arith.constant 0 : index
        %227 = vector.load %arg3[%c0_131, %226, %c64_132, %c0_133] : memref<1x32x128x8xf32, #tpu.memory_space<vmem>>, vector<1x1x32x8xf32>
        %228 = vector.shape_cast %227 : vector<1x1x32x8xf32> to vector<1x32x8xf32>
        %229 = vector.shape_cast %228 : vector<1x32x8xf32> to vector<32x8xf32>
        %230 = vector.extract_strided_slice %158 {offsets = [0, 6, 0], sizes = [2, 1, 8], strides = [1, 1, 1]} : vector<2x8x8xf32> to vector<2x1x8xf32>
        %231 = vector.shape_cast %229 : vector<32x8xf32> to vector<1x32x8xf32>
        %232 = vector.broadcast %230 : vector<2x1x8xf32> to vector<2x32x8xf32>
        %233 = vector.broadcast %231 : vector<1x32x8xf32> to vector<2x32x8xf32>
        %234 = arith.mulf %232, %233 : vector<2x32x8xf32>
        %235 = arith.addf %224, %234 : vector<2x32x8xf32>
        %c7_i32 = arith.constant 7 : i32
        %236 = arith.addi %156, %c7_i32 : i32
        %c0_134 = arith.constant 0 : index
        %237 = arith.index_cast %236 : i32 to index
        %c64_135 = arith.constant 64 : index
        %c0_136 = arith.constant 0 : index
        %238 = vector.load %arg3[%c0_134, %237, %c64_135, %c0_136] : memref<1x32x128x8xf32, #tpu.memory_space<vmem>>, vector<1x1x32x8xf32>
        %239 = vector.shape_cast %238 : vector<1x1x32x8xf32> to vector<1x32x8xf32>
        %240 = vector.shape_cast %239 : vector<1x32x8xf32> to vector<32x8xf32>
        %241 = vector.extract_strided_slice %158 {offsets = [0, 7, 0], sizes = [2, 1, 8], strides = [1, 1, 1]} : vector<2x8x8xf32> to vector<2x1x8xf32>
        %242 = vector.shape_cast %240 : vector<32x8xf32> to vector<1x32x8xf32>
        %243 = vector.broadcast %241 : vector<2x1x8xf32> to vector<2x32x8xf32>
        %244 = vector.broadcast %242 : vector<1x32x8xf32> to vector<2x32x8xf32>
        %245 = arith.mulf %243, %244 : vector<2x32x8xf32>
        %246 = arith.addf %235, %245 : vector<2x32x8xf32>
        scf.yield %246 : vector<2x32x8xf32>
      }
      %c4_i32_37 = arith.constant 4 : i32
      %51 = math.tanh %50 : vector<2x32x8xf32>
      %52 = arith.mulf %37, %51 : vector<2x32x8xf32>
      %c0_38 = arith.constant 0 : index
      %c32 = arith.constant 32 : index
      %c0_39 = arith.constant 0 : index
      %53 = vector.load %arg2[%c0_38, %c32, %c0_39] : memref<1x128x8xf32, #tpu.memory_space<vmem>>, vector<1x32x8xf32>
      %54 = vector.shape_cast %53 : vector<1x32x8xf32> to vector<32x8xf32>
      %55 = vector.shape_cast %54 : vector<32x8xf32> to vector<1x32x8xf32>
      %56 = vector.broadcast %19 : vector<2x1x8xf32> to vector<2x32x8xf32>
      %57 = vector.broadcast %55 : vector<1x32x8xf32> to vector<2x32x8xf32>
      %58 = arith.mulf %56, %57 : vector<2x32x8xf32>
      %c0_40 = arith.constant 0 : index
      %c32_41 = arith.constant 32 : index
      %c0_42 = arith.constant 0 : index
      %59 = vector.load %arg4[%c0_40, %c32_41, %c0_42] : memref<1x128x8xf32, #tpu.memory_space<vmem>>, vector<1x32x8xf32>
      %60 = vector.shape_cast %59 : vector<1x32x8xf32> to vector<32x8xf32>
      %61 = vector.shape_cast %60 : vector<32x8xf32> to vector<1x32x8xf32>
      %62 = vector.broadcast %61 : vector<1x32x8xf32> to vector<2x32x8xf32>
      %63 = arith.addf %58, %62 : vector<2x32x8xf32>
      %c0_i32_43 = arith.constant 0 : i32
      %c4_i32_44 = arith.constant 4 : i32
      %64 = arith.addi %c0_i32_43, %c4_i32_44 : i32
      %c1_i32_45 = arith.constant 1 : i32
      %65 = scf.for %arg15 = %c0_i32_43 to %64 step %c1_i32_45 iter_args(%arg16 = %63) -> (vector<2x32x8xf32>)  : i32 {
        %c8_i32_107 = arith.constant 8 : i32
        %155 = arith.muli %arg15, %c8_i32_107 : i32
        %156 = tpu.assume_multiple %155, 8 : i32
        %c0_108 = arith.constant 0 : index
        %157 = arith.index_cast %156 : i32 to index
        %c0_109 = arith.constant 0 : index
        %158 = vector.load %arg10[%c0_108, %157, %c0_109] : memref<2x64x8xf32, #tpu.memory_space<vmem>>, vector<2x8x8xf32>
        %c0_i32_110 = arith.constant 0 : i32
        %159 = arith.addi %156, %c0_i32_110 : i32
        %c0_111 = arith.constant 0 : index
        %160 = arith.index_cast %159 : i32 to index
        %c32_112 = arith.constant 32 : index
        %c0_113 = arith.constant 0 : index
        %161 = vector.load %arg3[%c0_111, %160, %c32_112, %c0_113] : memref<1x32x128x8xf32, #tpu.memory_space<vmem>>, vector<1x1x32x8xf32>
        %162 = vector.shape_cast %161 : vector<1x1x32x8xf32> to vector<1x32x8xf32>
        %163 = vector.shape_cast %162 : vector<1x32x8xf32> to vector<32x8xf32>
        %164 = vector.extract_strided_slice %158 {offsets = [0, 0, 0], sizes = [2, 1, 8], strides = [1, 1, 1]} : vector<2x8x8xf32> to vector<2x1x8xf32>
        %165 = vector.shape_cast %163 : vector<32x8xf32> to vector<1x32x8xf32>
        %166 = vector.broadcast %164 : vector<2x1x8xf32> to vector<2x32x8xf32>
        %167 = vector.broadcast %165 : vector<1x32x8xf32> to vector<2x32x8xf32>
        %168 = arith.mulf %166, %167 : vector<2x32x8xf32>
        %169 = arith.addf %arg16, %168 : vector<2x32x8xf32>
        %c1_i32_114 = arith.constant 1 : i32
        %170 = arith.addi %156, %c1_i32_114 : i32
        %c0_115 = arith.constant 0 : index
        %171 = arith.index_cast %170 : i32 to index
        %c32_116 = arith.constant 32 : index
        %c0_117 = arith.constant 0 : index
        %172 = vector.load %arg3[%c0_115, %171, %c32_116, %c0_117] : memref<1x32x128x8xf32, #tpu.memory_space<vmem>>, vector<1x1x32x8xf32>
        %173 = vector.shape_cast %172 : vector<1x1x32x8xf32> to vector<1x32x8xf32>
        %174 = vector.shape_cast %173 : vector<1x32x8xf32> to vector<32x8xf32>
        %175 = vector.extract_strided_slice %158 {offsets = [0, 1, 0], sizes = [2, 1, 8], strides = [1, 1, 1]} : vector<2x8x8xf32> to vector<2x1x8xf32>
        %176 = vector.shape_cast %174 : vector<32x8xf32> to vector<1x32x8xf32>
        %177 = vector.broadcast %175 : vector<2x1x8xf32> to vector<2x32x8xf32>
        %178 = vector.broadcast %176 : vector<1x32x8xf32> to vector<2x32x8xf32>
        %179 = arith.mulf %177, %178 : vector<2x32x8xf32>
        %180 = arith.addf %169, %179 : vector<2x32x8xf32>
        %c2_i32 = arith.constant 2 : i32
        %181 = arith.addi %156, %c2_i32 : i32
        %c0_118 = arith.constant 0 : index
        %182 = arith.index_cast %181 : i32 to index
        %c32_119 = arith.constant 32 : index
        %c0_120 = arith.constant 0 : index
        %183 = vector.load %arg3[%c0_118, %182, %c32_119, %c0_120] : memref<1x32x128x8xf32, #tpu.memory_space<vmem>>, vector<1x1x32x8xf32>
        %184 = vector.shape_cast %183 : vector<1x1x32x8xf32> to vector<1x32x8xf32>
        %185 = vector.shape_cast %184 : vector<1x32x8xf32> to vector<32x8xf32>
        %186 = vector.extract_strided_slice %158 {offsets = [0, 2, 0], sizes = [2, 1, 8], strides = [1, 1, 1]} : vector<2x8x8xf32> to vector<2x1x8xf32>
        %187 = vector.shape_cast %185 : vector<32x8xf32> to vector<1x32x8xf32>
        %188 = vector.broadcast %186 : vector<2x1x8xf32> to vector<2x32x8xf32>
        %189 = vector.broadcast %187 : vector<1x32x8xf32> to vector<2x32x8xf32>
        %190 = arith.mulf %188, %189 : vector<2x32x8xf32>
        %191 = arith.addf %180, %190 : vector<2x32x8xf32>
        %c3_i32 = arith.constant 3 : i32
        %192 = arith.addi %156, %c3_i32 : i32
        %c0_121 = arith.constant 0 : index
        %193 = arith.index_cast %192 : i32 to index
        %c32_122 = arith.constant 32 : index
        %c0_123 = arith.constant 0 : index
        %194 = vector.load %arg3[%c0_121, %193, %c32_122, %c0_123] : memref<1x32x128x8xf32, #tpu.memory_space<vmem>>, vector<1x1x32x8xf32>
        %195 = vector.shape_cast %194 : vector<1x1x32x8xf32> to vector<1x32x8xf32>
        %196 = vector.shape_cast %195 : vector<1x32x8xf32> to vector<32x8xf32>
        %197 = vector.extract_strided_slice %158 {offsets = [0, 3, 0], sizes = [2, 1, 8], strides = [1, 1, 1]} : vector<2x8x8xf32> to vector<2x1x8xf32>
        %198 = vector.shape_cast %196 : vector<32x8xf32> to vector<1x32x8xf32>
        %199 = vector.broadcast %197 : vector<2x1x8xf32> to vector<2x32x8xf32>
        %200 = vector.broadcast %198 : vector<1x32x8xf32> to vector<2x32x8xf32>
        %201 = arith.mulf %199, %200 : vector<2x32x8xf32>
        %202 = arith.addf %191, %201 : vector<2x32x8xf32>
        %c4_i32_124 = arith.constant 4 : i32
        %203 = arith.addi %156, %c4_i32_124 : i32
        %c0_125 = arith.constant 0 : index
        %204 = arith.index_cast %203 : i32 to index
        %c32_126 = arith.constant 32 : index
        %c0_127 = arith.constant 0 : index
        %205 = vector.load %arg3[%c0_125, %204, %c32_126, %c0_127] : memref<1x32x128x8xf32, #tpu.memory_space<vmem>>, vector<1x1x32x8xf32>
        %206 = vector.shape_cast %205 : vector<1x1x32x8xf32> to vector<1x32x8xf32>
        %207 = vector.shape_cast %206 : vector<1x32x8xf32> to vector<32x8xf32>
        %208 = vector.extract_strided_slice %158 {offsets = [0, 4, 0], sizes = [2, 1, 8], strides = [1, 1, 1]} : vector<2x8x8xf32> to vector<2x1x8xf32>
        %209 = vector.shape_cast %207 : vector<32x8xf32> to vector<1x32x8xf32>
        %210 = vector.broadcast %208 : vector<2x1x8xf32> to vector<2x32x8xf32>
        %211 = vector.broadcast %209 : vector<1x32x8xf32> to vector<2x32x8xf32>
        %212 = arith.mulf %210, %211 : vector<2x32x8xf32>
        %213 = arith.addf %202, %212 : vector<2x32x8xf32>
        %c5_i32 = arith.constant 5 : i32
        %214 = arith.addi %156, %c5_i32 : i32
        %c0_128 = arith.constant 0 : index
        %215 = arith.index_cast %214 : i32 to index
        %c32_129 = arith.constant 32 : index
        %c0_130 = arith.constant 0 : index
        %216 = vector.load %arg3[%c0_128, %215, %c32_129, %c0_130] : memref<1x32x128x8xf32, #tpu.memory_space<vmem>>, vector<1x1x32x8xf32>
        %217 = vector.shape_cast %216 : vector<1x1x32x8xf32> to vector<1x32x8xf32>
        %218 = vector.shape_cast %217 : vector<1x32x8xf32> to vector<32x8xf32>
        %219 = vector.extract_strided_slice %158 {offsets = [0, 5, 0], sizes = [2, 1, 8], strides = [1, 1, 1]} : vector<2x8x8xf32> to vector<2x1x8xf32>
        %220 = vector.shape_cast %218 : vector<32x8xf32> to vector<1x32x8xf32>
        %221 = vector.broadcast %219 : vector<2x1x8xf32> to vector<2x32x8xf32>
        %222 = vector.broadcast %220 : vector<1x32x8xf32> to vector<2x32x8xf32>
        %223 = arith.mulf %221, %222 : vector<2x32x8xf32>
        %224 = arith.addf %213, %223 : vector<2x32x8xf32>
        %c6_i32 = arith.constant 6 : i32
        %225 = arith.addi %156, %c6_i32 : i32
        %c0_131 = arith.constant 0 : index
        %226 = arith.index_cast %225 : i32 to index
        %c32_132 = arith.constant 32 : index
        %c0_133 = arith.constant 0 : index
        %227 = vector.load %arg3[%c0_131, %226, %c32_132, %c0_133] : memref<1x32x128x8xf32, #tpu.memory_space<vmem>>, vector<1x1x32x8xf32>
        %228 = vector.shape_cast %227 : vector<1x1x32x8xf32> to vector<1x32x8xf32>
        %229 = vector.shape_cast %228 : vector<1x32x8xf32> to vector<32x8xf32>
        %230 = vector.extract_strided_slice %158 {offsets = [0, 6, 0], sizes = [2, 1, 8], strides = [1, 1, 1]} : vector<2x8x8xf32> to vector<2x1x8xf32>
        %231 = vector.shape_cast %229 : vector<32x8xf32> to vector<1x32x8xf32>
        %232 = vector.broadcast %230 : vector<2x1x8xf32> to vector<2x32x8xf32>
        %233 = vector.broadcast %231 : vector<1x32x8xf32> to vector<2x32x8xf32>
        %234 = arith.mulf %232, %233 : vector<2x32x8xf32>
        %235 = arith.addf %224, %234 : vector<2x32x8xf32>
        %c7_i32 = arith.constant 7 : i32
        %236 = arith.addi %156, %c7_i32 : i32
        %c0_134 = arith.constant 0 : index
        %237 = arith.index_cast %236 : i32 to index
        %c32_135 = arith.constant 32 : index
        %c0_136 = arith.constant 0 : index
        %238 = vector.load %arg3[%c0_134, %237, %c32_135, %c0_136] : memref<1x32x128x8xf32, #tpu.memory_space<vmem>>, vector<1x1x32x8xf32>
        %239 = vector.shape_cast %238 : vector<1x1x32x8xf32> to vector<1x32x8xf32>
        %240 = vector.shape_cast %239 : vector<1x32x8xf32> to vector<32x8xf32>
        %241 = vector.extract_strided_slice %158 {offsets = [0, 7, 0], sizes = [2, 1, 8], strides = [1, 1, 1]} : vector<2x8x8xf32> to vector<2x1x8xf32>
        %242 = vector.shape_cast %240 : vector<32x8xf32> to vector<1x32x8xf32>
        %243 = vector.broadcast %241 : vector<2x1x8xf32> to vector<2x32x8xf32>
        %244 = vector.broadcast %242 : vector<1x32x8xf32> to vector<2x32x8xf32>
        %245 = arith.mulf %243, %244 : vector<2x32x8xf32>
        %246 = arith.addf %235, %245 : vector<2x32x8xf32>
        scf.yield %246 : vector<2x32x8xf32>
      }
      %c4_i32_46 = arith.constant 4 : i32
      %66 = arith.negf %65 : vector<2x32x8xf32>
      %67 = math.exp %66 : vector<2x32x8xf32>
      %cst_47 = arith.constant 1.000000e+00 : f32
      %68 = vector.broadcast %cst_47 : f32 to vector<2x32x8xf32>
      %69 = arith.addf %68, %67 : vector<2x32x8xf32>
      %70 = arith.divf %68, %69 : vector<2x32x8xf32>
      %c0_48 = arith.constant 0 : index
      %c0_49 = arith.constant 0 : index
      %c0_50 = arith.constant 0 : index
      %71 = vector.load %arg11[%c0_48, %c0_49, %c0_50] : memref<2x32x8xf32, #tpu.memory_space<vmem>>, vector<2x32x8xf32>
      %72 = arith.mulf %70, %71 : vector<2x32x8xf32>
      %73 = arith.addf %72, %52 : vector<2x32x8xf32>
      %c0_51 = arith.constant 0 : index
      %c96 = arith.constant 96 : index
      %c0_52 = arith.constant 0 : index
      %74 = vector.load %arg2[%c0_51, %c96, %c0_52] : memref<1x128x8xf32, #tpu.memory_space<vmem>>, vector<1x32x8xf32>
      %75 = vector.shape_cast %74 : vector<1x32x8xf32> to vector<32x8xf32>
      %76 = vector.shape_cast %75 : vector<32x8xf32> to vector<1x32x8xf32>
      %77 = vector.broadcast %19 : vector<2x1x8xf32> to vector<2x32x8xf32>
      %78 = vector.broadcast %76 : vector<1x32x8xf32> to vector<2x32x8xf32>
      %79 = arith.mulf %77, %78 : vector<2x32x8xf32>
      %c0_53 = arith.constant 0 : index
      %c96_54 = arith.constant 96 : index
      %c0_55 = arith.constant 0 : index
      %80 = vector.load %arg4[%c0_53, %c96_54, %c0_55] : memref<1x128x8xf32, #tpu.memory_space<vmem>>, vector<1x32x8xf32>
      %81 = vector.shape_cast %80 : vector<1x32x8xf32> to vector<32x8xf32>
      %82 = vector.shape_cast %81 : vector<32x8xf32> to vector<1x32x8xf32>
      %83 = vector.broadcast %82 : vector<1x32x8xf32> to vector<2x32x8xf32>
      %84 = arith.addf %79, %83 : vector<2x32x8xf32>
      %c0_i32_56 = arith.constant 0 : i32
      %c4_i32_57 = arith.constant 4 : i32
      %85 = arith.addi %c0_i32_56, %c4_i32_57 : i32
      %c1_i32_58 = arith.constant 1 : i32
      %86 = scf.for %arg15 = %c0_i32_56 to %85 step %c1_i32_58 iter_args(%arg16 = %84) -> (vector<2x32x8xf32>)  : i32 {
        %c8_i32_107 = arith.constant 8 : i32
        %155 = arith.muli %arg15, %c8_i32_107 : i32
        %156 = tpu.assume_multiple %155, 8 : i32
        %c0_108 = arith.constant 0 : index
        %157 = arith.index_cast %156 : i32 to index
        %c0_109 = arith.constant 0 : index
        %158 = vector.load %arg10[%c0_108, %157, %c0_109] : memref<2x64x8xf32, #tpu.memory_space<vmem>>, vector<2x8x8xf32>
        %c0_i32_110 = arith.constant 0 : i32
        %159 = arith.addi %156, %c0_i32_110 : i32
        %c0_111 = arith.constant 0 : index
        %160 = arith.index_cast %159 : i32 to index
        %c96_112 = arith.constant 96 : index
        %c0_113 = arith.constant 0 : index
        %161 = vector.load %arg3[%c0_111, %160, %c96_112, %c0_113] : memref<1x32x128x8xf32, #tpu.memory_space<vmem>>, vector<1x1x32x8xf32>
        %162 = vector.shape_cast %161 : vector<1x1x32x8xf32> to vector<1x32x8xf32>
        %163 = vector.shape_cast %162 : vector<1x32x8xf32> to vector<32x8xf32>
        %164 = vector.extract_strided_slice %158 {offsets = [0, 0, 0], sizes = [2, 1, 8], strides = [1, 1, 1]} : vector<2x8x8xf32> to vector<2x1x8xf32>
        %165 = vector.shape_cast %163 : vector<32x8xf32> to vector<1x32x8xf32>
        %166 = vector.broadcast %164 : vector<2x1x8xf32> to vector<2x32x8xf32>
        %167 = vector.broadcast %165 : vector<1x32x8xf32> to vector<2x32x8xf32>
        %168 = arith.mulf %166, %167 : vector<2x32x8xf32>
        %169 = arith.addf %arg16, %168 : vector<2x32x8xf32>
        %c1_i32_114 = arith.constant 1 : i32
        %170 = arith.addi %156, %c1_i32_114 : i32
        %c0_115 = arith.constant 0 : index
        %171 = arith.index_cast %170 : i32 to index
        %c96_116 = arith.constant 96 : index
        %c0_117 = arith.constant 0 : index
        %172 = vector.load %arg3[%c0_115, %171, %c96_116, %c0_117] : memref<1x32x128x8xf32, #tpu.memory_space<vmem>>, vector<1x1x32x8xf32>
        %173 = vector.shape_cast %172 : vector<1x1x32x8xf32> to vector<1x32x8xf32>
        %174 = vector.shape_cast %173 : vector<1x32x8xf32> to vector<32x8xf32>
        %175 = vector.extract_strided_slice %158 {offsets = [0, 1, 0], sizes = [2, 1, 8], strides = [1, 1, 1]} : vector<2x8x8xf32> to vector<2x1x8xf32>
        %176 = vector.shape_cast %174 : vector<32x8xf32> to vector<1x32x8xf32>
        %177 = vector.broadcast %175 : vector<2x1x8xf32> to vector<2x32x8xf32>
        %178 = vector.broadcast %176 : vector<1x32x8xf32> to vector<2x32x8xf32>
        %179 = arith.mulf %177, %178 : vector<2x32x8xf32>
        %180 = arith.addf %169, %179 : vector<2x32x8xf32>
        %c2_i32 = arith.constant 2 : i32
        %181 = arith.addi %156, %c2_i32 : i32
        %c0_118 = arith.constant 0 : index
        %182 = arith.index_cast %181 : i32 to index
        %c96_119 = arith.constant 96 : index
        %c0_120 = arith.constant 0 : index
        %183 = vector.load %arg3[%c0_118, %182, %c96_119, %c0_120] : memref<1x32x128x8xf32, #tpu.memory_space<vmem>>, vector<1x1x32x8xf32>
        %184 = vector.shape_cast %183 : vector<1x1x32x8xf32> to vector<1x32x8xf32>
        %185 = vector.shape_cast %184 : vector<1x32x8xf32> to vector<32x8xf32>
        %186 = vector.extract_strided_slice %158 {offsets = [0, 2, 0], sizes = [2, 1, 8], strides = [1, 1, 1]} : vector<2x8x8xf32> to vector<2x1x8xf32>
        %187 = vector.shape_cast %185 : vector<32x8xf32> to vector<1x32x8xf32>
        %188 = vector.broadcast %186 : vector<2x1x8xf32> to vector<2x32x8xf32>
        %189 = vector.broadcast %187 : vector<1x32x8xf32> to vector<2x32x8xf32>
        %190 = arith.mulf %188, %189 : vector<2x32x8xf32>
        %191 = arith.addf %180, %190 : vector<2x32x8xf32>
        %c3_i32 = arith.constant 3 : i32
        %192 = arith.addi %156, %c3_i32 : i32
        %c0_121 = arith.constant 0 : index
        %193 = arith.index_cast %192 : i32 to index
        %c96_122 = arith.constant 96 : index
        %c0_123 = arith.constant 0 : index
        %194 = vector.load %arg3[%c0_121, %193, %c96_122, %c0_123] : memref<1x32x128x8xf32, #tpu.memory_space<vmem>>, vector<1x1x32x8xf32>
        %195 = vector.shape_cast %194 : vector<1x1x32x8xf32> to vector<1x32x8xf32>
        %196 = vector.shape_cast %195 : vector<1x32x8xf32> to vector<32x8xf32>
        %197 = vector.extract_strided_slice %158 {offsets = [0, 3, 0], sizes = [2, 1, 8], strides = [1, 1, 1]} : vector<2x8x8xf32> to vector<2x1x8xf32>
        %198 = vector.shape_cast %196 : vector<32x8xf32> to vector<1x32x8xf32>
        %199 = vector.broadcast %197 : vector<2x1x8xf32> to vector<2x32x8xf32>
        %200 = vector.broadcast %198 : vector<1x32x8xf32> to vector<2x32x8xf32>
        %201 = arith.mulf %199, %200 : vector<2x32x8xf32>
        %202 = arith.addf %191, %201 : vector<2x32x8xf32>
        %c4_i32_124 = arith.constant 4 : i32
        %203 = arith.addi %156, %c4_i32_124 : i32
        %c0_125 = arith.constant 0 : index
        %204 = arith.index_cast %203 : i32 to index
        %c96_126 = arith.constant 96 : index
        %c0_127 = arith.constant 0 : index
        %205 = vector.load %arg3[%c0_125, %204, %c96_126, %c0_127] : memref<1x32x128x8xf32, #tpu.memory_space<vmem>>, vector<1x1x32x8xf32>
        %206 = vector.shape_cast %205 : vector<1x1x32x8xf32> to vector<1x32x8xf32>
        %207 = vector.shape_cast %206 : vector<1x32x8xf32> to vector<32x8xf32>
        %208 = vector.extract_strided_slice %158 {offsets = [0, 4, 0], sizes = [2, 1, 8], strides = [1, 1, 1]} : vector<2x8x8xf32> to vector<2x1x8xf32>
        %209 = vector.shape_cast %207 : vector<32x8xf32> to vector<1x32x8xf32>
        %210 = vector.broadcast %208 : vector<2x1x8xf32> to vector<2x32x8xf32>
        %211 = vector.broadcast %209 : vector<1x32x8xf32> to vector<2x32x8xf32>
        %212 = arith.mulf %210, %211 : vector<2x32x8xf32>
        %213 = arith.addf %202, %212 : vector<2x32x8xf32>
        %c5_i32 = arith.constant 5 : i32
        %214 = arith.addi %156, %c5_i32 : i32
        %c0_128 = arith.constant 0 : index
        %215 = arith.index_cast %214 : i32 to index
        %c96_129 = arith.constant 96 : index
        %c0_130 = arith.constant 0 : index
        %216 = vector.load %arg3[%c0_128, %215, %c96_129, %c0_130] : memref<1x32x128x8xf32, #tpu.memory_space<vmem>>, vector<1x1x32x8xf32>
        %217 = vector.shape_cast %216 : vector<1x1x32x8xf32> to vector<1x32x8xf32>
        %218 = vector.shape_cast %217 : vector<1x32x8xf32> to vector<32x8xf32>
        %219 = vector.extract_strided_slice %158 {offsets = [0, 5, 0], sizes = [2, 1, 8], strides = [1, 1, 1]} : vector<2x8x8xf32> to vector<2x1x8xf32>
        %220 = vector.shape_cast %218 : vector<32x8xf32> to vector<1x32x8xf32>
        %221 = vector.broadcast %219 : vector<2x1x8xf32> to vector<2x32x8xf32>
        %222 = vector.broadcast %220 : vector<1x32x8xf32> to vector<2x32x8xf32>
        %223 = arith.mulf %221, %222 : vector<2x32x8xf32>
        %224 = arith.addf %213, %223 : vector<2x32x8xf32>
        %c6_i32 = arith.constant 6 : i32
        %225 = arith.addi %156, %c6_i32 : i32
        %c0_131 = arith.constant 0 : index
        %226 = arith.index_cast %225 : i32 to index
        %c96_132 = arith.constant 96 : index
        %c0_133 = arith.constant 0 : index
        %227 = vector.load %arg3[%c0_131, %226, %c96_132, %c0_133] : memref<1x32x128x8xf32, #tpu.memory_space<vmem>>, vector<1x1x32x8xf32>
        %228 = vector.shape_cast %227 : vector<1x1x32x8xf32> to vector<1x32x8xf32>
        %229 = vector.shape_cast %228 : vector<1x32x8xf32> to vector<32x8xf32>
        %230 = vector.extract_strided_slice %158 {offsets = [0, 6, 0], sizes = [2, 1, 8], strides = [1, 1, 1]} : vector<2x8x8xf32> to vector<2x1x8xf32>
        %231 = vector.shape_cast %229 : vector<32x8xf32> to vector<1x32x8xf32>
        %232 = vector.broadcast %230 : vector<2x1x8xf32> to vector<2x32x8xf32>
        %233 = vector.broadcast %231 : vector<1x32x8xf32> to vector<2x32x8xf32>
        %234 = arith.mulf %232, %233 : vector<2x32x8xf32>
        %235 = arith.addf %224, %234 : vector<2x32x8xf32>
        %c7_i32 = arith.constant 7 : i32
        %236 = arith.addi %156, %c7_i32 : i32
        %c0_134 = arith.constant 0 : index
        %237 = arith.index_cast %236 : i32 to index
        %c96_135 = arith.constant 96 : index
        %c0_136 = arith.constant 0 : index
        %238 = vector.load %arg3[%c0_134, %237, %c96_135, %c0_136] : memref<1x32x128x8xf32, #tpu.memory_space<vmem>>, vector<1x1x32x8xf32>
        %239 = vector.shape_cast %238 : vector<1x1x32x8xf32> to vector<1x32x8xf32>
        %240 = vector.shape_cast %239 : vector<1x32x8xf32> to vector<32x8xf32>
        %241 = vector.extract_strided_slice %158 {offsets = [0, 7, 0], sizes = [2, 1, 8], strides = [1, 1, 1]} : vector<2x8x8xf32> to vector<2x1x8xf32>
        %242 = vector.shape_cast %240 : vector<32x8xf32> to vector<1x32x8xf32>
        %243 = vector.broadcast %241 : vector<2x1x8xf32> to vector<2x32x8xf32>
        %244 = vector.broadcast %242 : vector<1x32x8xf32> to vector<2x32x8xf32>
        %245 = arith.mulf %243, %244 : vector<2x32x8xf32>
        %246 = arith.addf %235, %245 : vector<2x32x8xf32>
        scf.yield %246 : vector<2x32x8xf32>
      }
      %c4_i32_59 = arith.constant 4 : i32
      %87 = arith.negf %86 : vector<2x32x8xf32>
      %88 = math.exp %87 : vector<2x32x8xf32>
      %cst_60 = arith.constant 1.000000e+00 : f32
      %89 = vector.broadcast %cst_60 : f32 to vector<2x32x8xf32>
      %90 = arith.addf %89, %88 : vector<2x32x8xf32>
      %91 = arith.divf %89, %90 : vector<2x32x8xf32>
      %92 = math.tanh %73 : vector<2x32x8xf32>
      %93 = arith.mulf %91, %92 : vector<2x32x8xf32>
      %c0_61 = arith.constant 0 : index
      %c0_62 = arith.constant 0 : index
      %c0_63 = arith.constant 0 : index
      %94 = vector.load %arg11[%c0_61, %c0_62, %c0_63] : memref<2x32x8xf32, #tpu.memory_space<vmem>>, vector<2x32x8xf32>
      tpu.vector_store %arg11[%c0_61, %c0_62, %c0_63], %73 {strides = array<i32>} : memref<2x32x8xf32, #tpu.memory_space<vmem>>, vector<2x32x8xf32>,
      %c0_64 = arith.constant 0 : index
      %c0_65 = arith.constant 0 : index
      %c0_66 = arith.constant 0 : index
      %95 = vector.load %arg10[%c0_64, %c0_65, %c0_66] : memref<2x64x8xf32, #tpu.memory_space<vmem>>, vector<2x32x8xf32>
      tpu.vector_store %arg10[%c0_64, %c0_65, %c0_66], %93 {strides = array<i32>} : memref<2x64x8xf32, #tpu.memory_space<vmem>>, vector<2x32x8xf32>,
      %c0_67 = arith.constant 0 : index
      %c0_68 = arith.constant 0 : index
      %c0_69 = arith.constant 0 : index
      %96 = vector.load %arg6[%c0_67, %c0_68, %c0_69] : memref<1x128x8xf32, #tpu.memory_space<vmem>>, vector<1x32x8xf32>
      %97 = vector.shape_cast %96 : vector<1x32x8xf32> to vector<32x8xf32>
      %98 = vector.shape_cast %97 : vector<32x8xf32> to vector<1x32x8xf32>
      %99 = vector.shape_cast %98 : vector<1x32x8xf32> to vector<1x32x8xf32>
      %100 = vector.broadcast %99 : vector<1x32x8xf32> to vector<2x32x8xf32>
      %c0_i32_70 = arith.constant 0 : i32
      %c8_i32_71 = arith.constant 8 : i32
      %101 = arith.addi %c0_i32_70, %c8_i32_71 : i32
      %c1_i32_72 = arith.constant 1 : i32
      %102 = scf.for %arg15 = %c0_i32_70 to %101 step %c1_i32_72 iter_args(%arg16 = %100) -> (vector<2x32x8xf32>)  : i32 {
        %c8_i32_107 = arith.constant 8 : i32
        %155 = arith.muli %arg15, %c8_i32_107 : i32
        %156 = tpu.assume_multiple %155, 8 : i32
        %c0_108 = arith.constant 0 : index
        %157 = arith.index_cast %156 : i32 to index
        %c0_109 = arith.constant 0 : index
        %158 = vector.load %arg10[%c0_108, %157, %c0_109] : memref<2x64x8xf32, #tpu.memory_space<vmem>>, vector<2x8x8xf32>
        %c0_i32_110 = arith.constant 0 : i32
        %159 = arith.addi %156, %c0_i32_110 : i32
        %c0_111 = arith.constant 0 : index
        %160 = arith.index_cast %159 : i32 to index
        %c0_112 = arith.constant 0 : index
        %c0_113 = arith.constant 0 : index
        %161 = vector.load %arg5[%c0_111, %160, %c0_112, %c0_113] : memref<1x64x128x8xf32, #tpu.memory_space<vmem>>, vector<1x1x32x8xf32>
        %162 = vector.shape_cast %161 : vector<1x1x32x8xf32> to vector<1x32x8xf32>
        %163 = vector.shape_cast %162 : vector<1x32x8xf32> to vector<32x8xf32>
        %164 = vector.extract_strided_slice %158 {offsets = [0, 0, 0], sizes = [2, 1, 8], strides = [1, 1, 1]} : vector<2x8x8xf32> to vector<2x1x8xf32>
        %165 = vector.shape_cast %163 : vector<32x8xf32> to vector<1x32x8xf32>
        %166 = vector.broadcast %164 : vector<2x1x8xf32> to vector<2x32x8xf32>
        %167 = vector.broadcast %165 : vector<1x32x8xf32> to vector<2x32x8xf32>
        %168 = arith.mulf %166, %167 : vector<2x32x8xf32>
        %169 = arith.addf %arg16, %168 : vector<2x32x8xf32>
        %c1_i32_114 = arith.constant 1 : i32
        %170 = arith.addi %156, %c1_i32_114 : i32
        %c0_115 = arith.constant 0 : index
        %171 = arith.index_cast %170 : i32 to index
        %c0_116 = arith.constant 0 : index
        %c0_117 = arith.constant 0 : index
        %172 = vector.load %arg5[%c0_115, %171, %c0_116, %c0_117] : memref<1x64x128x8xf32, #tpu.memory_space<vmem>>, vector<1x1x32x8xf32>
        %173 = vector.shape_cast %172 : vector<1x1x32x8xf32> to vector<1x32x8xf32>
        %174 = vector.shape_cast %173 : vector<1x32x8xf32> to vector<32x8xf32>
        %175 = vector.extract_strided_slice %158 {offsets = [0, 1, 0], sizes = [2, 1, 8], strides = [1, 1, 1]} : vector<2x8x8xf32> to vector<2x1x8xf32>
        %176 = vector.shape_cast %174 : vector<32x8xf32> to vector<1x32x8xf32>
        %177 = vector.broadcast %175 : vector<2x1x8xf32> to vector<2x32x8xf32>
        %178 = vector.broadcast %176 : vector<1x32x8xf32> to vector<2x32x8xf32>
        %179 = arith.mulf %177, %178 : vector<2x32x8xf32>
        %180 = arith.addf %169, %179 : vector<2x32x8xf32>
        %c2_i32 = arith.constant 2 : i32
        %181 = arith.addi %156, %c2_i32 : i32
        %c0_118 = arith.constant 0 : index
        %182 = arith.index_cast %181 : i32 to index
        %c0_119 = arith.constant 0 : index
        %c0_120 = arith.constant 0 : index
        %183 = vector.load %arg5[%c0_118, %182, %c0_119, %c0_120] : memref<1x64x128x8xf32, #tpu.memory_space<vmem>>, vector<1x1x32x8xf32>
        %184 = vector.shape_cast %183 : vector<1x1x32x8xf32> to vector<1x32x8xf32>
        %185 = vector.shape_cast %184 : vector<1x32x8xf32> to vector<32x8xf32>
        %186 = vector.extract_strided_slice %158 {offsets = [0, 2, 0], sizes = [2, 1, 8], strides = [1, 1, 1]} : vector<2x8x8xf32> to vector<2x1x8xf32>
        %187 = vector.shape_cast %185 : vector<32x8xf32> to vector<1x32x8xf32>
        %188 = vector.broadcast %186 : vector<2x1x8xf32> to vector<2x32x8xf32>
        %189 = vector.broadcast %187 : vector<1x32x8xf32> to vector<2x32x8xf32>
        %190 = arith.mulf %188, %189 : vector<2x32x8xf32>
        %191 = arith.addf %180, %190 : vector<2x32x8xf32>
        %c3_i32 = arith.constant 3 : i32
        %192 = arith.addi %156, %c3_i32 : i32
        %c0_121 = arith.constant 0 : index
        %193 = arith.index_cast %192 : i32 to index
        %c0_122 = arith.constant 0 : index
        %c0_123 = arith.constant 0 : index
        %194 = vector.load %arg5[%c0_121, %193, %c0_122, %c0_123] : memref<1x64x128x8xf32, #tpu.memory_space<vmem>>, vector<1x1x32x8xf32>
        %195 = vector.shape_cast %194 : vector<1x1x32x8xf32> to vector<1x32x8xf32>
        %196 = vector.shape_cast %195 : vector<1x32x8xf32> to vector<32x8xf32>
        %197 = vector.extract_strided_slice %158 {offsets = [0, 3, 0], sizes = [2, 1, 8], strides = [1, 1, 1]} : vector<2x8x8xf32> to vector<2x1x8xf32>
        %198 = vector.shape_cast %196 : vector<32x8xf32> to vector<1x32x8xf32>
        %199 = vector.broadcast %197 : vector<2x1x8xf32> to vector<2x32x8xf32>
        %200 = vector.broadcast %198 : vector<1x32x8xf32> to vector<2x32x8xf32>
        %201 = arith.mulf %199, %200 : vector<2x32x8xf32>
        %202 = arith.addf %191, %201 : vector<2x32x8xf32>
        %c4_i32_124 = arith.constant 4 : i32
        %203 = arith.addi %156, %c4_i32_124 : i32
        %c0_125 = arith.constant 0 : index
        %204 = arith.index_cast %203 : i32 to index
        %c0_126 = arith.constant 0 : index
        %c0_127 = arith.constant 0 : index
        %205 = vector.load %arg5[%c0_125, %204, %c0_126, %c0_127] : memref<1x64x128x8xf32, #tpu.memory_space<vmem>>, vector<1x1x32x8xf32>
        %206 = vector.shape_cast %205 : vector<1x1x32x8xf32> to vector<1x32x8xf32>
        %207 = vector.shape_cast %206 : vector<1x32x8xf32> to vector<32x8xf32>
        %208 = vector.extract_strided_slice %158 {offsets = [0, 4, 0], sizes = [2, 1, 8], strides = [1, 1, 1]} : vector<2x8x8xf32> to vector<2x1x8xf32>
        %209 = vector.shape_cast %207 : vector<32x8xf32> to vector<1x32x8xf32>
        %210 = vector.broadcast %208 : vector<2x1x8xf32> to vector<2x32x8xf32>
        %211 = vector.broadcast %209 : vector<1x32x8xf32> to vector<2x32x8xf32>
        %212 = arith.mulf %210, %211 : vector<2x32x8xf32>
        %213 = arith.addf %202, %212 : vector<2x32x8xf32>
        %c5_i32 = arith.constant 5 : i32
        %214 = arith.addi %156, %c5_i32 : i32
        %c0_128 = arith.constant 0 : index
        %215 = arith.index_cast %214 : i32 to index
        %c0_129 = arith.constant 0 : index
        %c0_130 = arith.constant 0 : index
        %216 = vector.load %arg5[%c0_128, %215, %c0_129, %c0_130] : memref<1x64x128x8xf32, #tpu.memory_space<vmem>>, vector<1x1x32x8xf32>
        %217 = vector.shape_cast %216 : vector<1x1x32x8xf32> to vector<1x32x8xf32>
        %218 = vector.shape_cast %217 : vector<1x32x8xf32> to vector<32x8xf32>
        %219 = vector.extract_strided_slice %158 {offsets = [0, 5, 0], sizes = [2, 1, 8], strides = [1, 1, 1]} : vector<2x8x8xf32> to vector<2x1x8xf32>
        %220 = vector.shape_cast %218 : vector<32x8xf32> to vector<1x32x8xf32>
        %221 = vector.broadcast %219 : vector<2x1x8xf32> to vector<2x32x8xf32>
        %222 = vector.broadcast %220 : vector<1x32x8xf32> to vector<2x32x8xf32>
        %223 = arith.mulf %221, %222 : vector<2x32x8xf32>
        %224 = arith.addf %213, %223 : vector<2x32x8xf32>
        %c6_i32 = arith.constant 6 : i32
        %225 = arith.addi %156, %c6_i32 : i32
        %c0_131 = arith.constant 0 : index
        %226 = arith.index_cast %225 : i32 to index
        %c0_132 = arith.constant 0 : index
        %c0_133 = arith.constant 0 : index
        %227 = vector.load %arg5[%c0_131, %226, %c0_132, %c0_133] : memref<1x64x128x8xf32, #tpu.memory_space<vmem>>, vector<1x1x32x8xf32>
        %228 = vector.shape_cast %227 : vector<1x1x32x8xf32> to vector<1x32x8xf32>
        %229 = vector.shape_cast %228 : vector<1x32x8xf32> to vector<32x8xf32>
        %230 = vector.extract_strided_slice %158 {offsets = [0, 6, 0], sizes = [2, 1, 8], strides = [1, 1, 1]} : vector<2x8x8xf32> to vector<2x1x8xf32>
        %231 = vector.shape_cast %229 : vector<32x8xf32> to vector<1x32x8xf32>
        %232 = vector.broadcast %230 : vector<2x1x8xf32> to vector<2x32x8xf32>
        %233 = vector.broadcast %231 : vector<1x32x8xf32> to vector<2x32x8xf32>
        %234 = arith.mulf %232, %233 : vector<2x32x8xf32>
        %235 = arith.addf %224, %234 : vector<2x32x8xf32>
        %c7_i32 = arith.constant 7 : i32
        %236 = arith.addi %156, %c7_i32 : i32
        %c0_134 = arith.constant 0 : index
        %237 = arith.index_cast %236 : i32 to index
        %c0_135 = arith.constant 0 : index
        %c0_136 = arith.constant 0 : index
        %238 = vector.load %arg5[%c0_134, %237, %c0_135, %c0_136] : memref<1x64x128x8xf32, #tpu.memory_space<vmem>>, vector<1x1x32x8xf32>
        %239 = vector.shape_cast %238 : vector<1x1x32x8xf32> to vector<1x32x8xf32>
        %240 = vector.shape_cast %239 : vector<1x32x8xf32> to vector<32x8xf32>
        %241 = vector.extract_strided_slice %158 {offsets = [0, 7, 0], sizes = [2, 1, 8], strides = [1, 1, 1]} : vector<2x8x8xf32> to vector<2x1x8xf32>
        %242 = vector.shape_cast %240 : vector<32x8xf32> to vector<1x32x8xf32>
        %243 = vector.broadcast %241 : vector<2x1x8xf32> to vector<2x32x8xf32>
        %244 = vector.broadcast %242 : vector<1x32x8xf32> to vector<2x32x8xf32>
        %245 = arith.mulf %243, %244 : vector<2x32x8xf32>
        %246 = arith.addf %235, %245 : vector<2x32x8xf32>
        scf.yield %246 : vector<2x32x8xf32>
      }
      %c8_i32_73 = arith.constant 8 : i32
      %103 = arith.negf %102 : vector<2x32x8xf32>
      %104 = math.exp %103 : vector<2x32x8xf32>
      %cst_74 = arith.constant 1.000000e+00 : f32
      %105 = vector.broadcast %cst_74 : f32 to vector<2x32x8xf32>
      %106 = arith.addf %105, %104 : vector<2x32x8xf32>
      %107 = arith.divf %105, %106 : vector<2x32x8xf32>
      %c0_75 = arith.constant 0 : index
      %c64_76 = arith.constant 64 : index
      %c0_77 = arith.constant 0 : index
      %108 = vector.load %arg6[%c0_75, %c64_76, %c0_77] : memref<1x128x8xf32, #tpu.memory_space<vmem>>, vector<1x32x8xf32>
      %109 = vector.shape_cast %108 : vector<1x32x8xf32> to vector<32x8xf32>
      %110 = vector.shape_cast %109 : vector<32x8xf32> to vector<1x32x8xf32>
      %111 = vector.shape_cast %110 : vector<1x32x8xf32> to vector<1x32x8xf32>
      %112 = vector.broadcast %111 : vector<1x32x8xf32> to vector<2x32x8xf32>
      %c0_i32_78 = arith.constant 0 : i32
      %c8_i32_79 = arith.constant 8 : i32
      %113 = arith.addi %c0_i32_78, %c8_i32_79 : i32
      %c1_i32_80 = arith.constant 1 : i32
      %114 = scf.for %arg15 = %c0_i32_78 to %113 step %c1_i32_80 iter_args(%arg16 = %112) -> (vector<2x32x8xf32>)  : i32 {
        %c8_i32_107 = arith.constant 8 : i32
        %155 = arith.muli %arg15, %c8_i32_107 : i32
        %156 = tpu.assume_multiple %155, 8 : i32
        %c0_108 = arith.constant 0 : index
        %157 = arith.index_cast %156 : i32 to index
        %c0_109 = arith.constant 0 : index
        %158 = vector.load %arg10[%c0_108, %157, %c0_109] : memref<2x64x8xf32, #tpu.memory_space<vmem>>, vector<2x8x8xf32>
        %c0_i32_110 = arith.constant 0 : i32
        %159 = arith.addi %156, %c0_i32_110 : i32
        %c0_111 = arith.constant 0 : index
        %160 = arith.index_cast %159 : i32 to index
        %c64_112 = arith.constant 64 : index
        %c0_113 = arith.constant 0 : index
        %161 = vector.load %arg5[%c0_111, %160, %c64_112, %c0_113] : memref<1x64x128x8xf32, #tpu.memory_space<vmem>>, vector<1x1x32x8xf32>
        %162 = vector.shape_cast %161 : vector<1x1x32x8xf32> to vector<1x32x8xf32>
        %163 = vector.shape_cast %162 : vector<1x32x8xf32> to vector<32x8xf32>
        %164 = vector.extract_strided_slice %158 {offsets = [0, 0, 0], sizes = [2, 1, 8], strides = [1, 1, 1]} : vector<2x8x8xf32> to vector<2x1x8xf32>
        %165 = vector.shape_cast %163 : vector<32x8xf32> to vector<1x32x8xf32>
        %166 = vector.broadcast %164 : vector<2x1x8xf32> to vector<2x32x8xf32>
        %167 = vector.broadcast %165 : vector<1x32x8xf32> to vector<2x32x8xf32>
        %168 = arith.mulf %166, %167 : vector<2x32x8xf32>
        %169 = arith.addf %arg16, %168 : vector<2x32x8xf32>
        %c1_i32_114 = arith.constant 1 : i32
        %170 = arith.addi %156, %c1_i32_114 : i32
        %c0_115 = arith.constant 0 : index
        %171 = arith.index_cast %170 : i32 to index
        %c64_116 = arith.constant 64 : index
        %c0_117 = arith.constant 0 : index
        %172 = vector.load %arg5[%c0_115, %171, %c64_116, %c0_117] : memref<1x64x128x8xf32, #tpu.memory_space<vmem>>, vector<1x1x32x8xf32>
        %173 = vector.shape_cast %172 : vector<1x1x32x8xf32> to vector<1x32x8xf32>
        %174 = vector.shape_cast %173 : vector<1x32x8xf32> to vector<32x8xf32>
        %175 = vector.extract_strided_slice %158 {offsets = [0, 1, 0], sizes = [2, 1, 8], strides = [1, 1, 1]} : vector<2x8x8xf32> to vector<2x1x8xf32>
        %176 = vector.shape_cast %174 : vector<32x8xf32> to vector<1x32x8xf32>
        %177 = vector.broadcast %175 : vector<2x1x8xf32> to vector<2x32x8xf32>
        %178 = vector.broadcast %176 : vector<1x32x8xf32> to vector<2x32x8xf32>
        %179 = arith.mulf %177, %178 : vector<2x32x8xf32>
        %180 = arith.addf %169, %179 : vector<2x32x8xf32>
        %c2_i32 = arith.constant 2 : i32
        %181 = arith.addi %156, %c2_i32 : i32
        %c0_118 = arith.constant 0 : index
        %182 = arith.index_cast %181 : i32 to index
        %c64_119 = arith.constant 64 : index
        %c0_120 = arith.constant 0 : index
        %183 = vector.load %arg5[%c0_118, %182, %c64_119, %c0_120] : memref<1x64x128x8xf32, #tpu.memory_space<vmem>>, vector<1x1x32x8xf32>
        %184 = vector.shape_cast %183 : vector<1x1x32x8xf32> to vector<1x32x8xf32>
        %185 = vector.shape_cast %184 : vector<1x32x8xf32> to vector<32x8xf32>
        %186 = vector.extract_strided_slice %158 {offsets = [0, 2, 0], sizes = [2, 1, 8], strides = [1, 1, 1]} : vector<2x8x8xf32> to vector<2x1x8xf32>
        %187 = vector.shape_cast %185 : vector<32x8xf32> to vector<1x32x8xf32>
        %188 = vector.broadcast %186 : vector<2x1x8xf32> to vector<2x32x8xf32>
        %189 = vector.broadcast %187 : vector<1x32x8xf32> to vector<2x32x8xf32>
        %190 = arith.mulf %188, %189 : vector<2x32x8xf32>
        %191 = arith.addf %180, %190 : vector<2x32x8xf32>
        %c3_i32 = arith.constant 3 : i32
        %192 = arith.addi %156, %c3_i32 : i32
        %c0_121 = arith.constant 0 : index
        %193 = arith.index_cast %192 : i32 to index
        %c64_122 = arith.constant 64 : index
        %c0_123 = arith.constant 0 : index
        %194 = vector.load %arg5[%c0_121, %193, %c64_122, %c0_123] : memref<1x64x128x8xf32, #tpu.memory_space<vmem>>, vector<1x1x32x8xf32>
        %195 = vector.shape_cast %194 : vector<1x1x32x8xf32> to vector<1x32x8xf32>
        %196 = vector.shape_cast %195 : vector<1x32x8xf32> to vector<32x8xf32>
        %197 = vector.extract_strided_slice %158 {offsets = [0, 3, 0], sizes = [2, 1, 8], strides = [1, 1, 1]} : vector<2x8x8xf32> to vector<2x1x8xf32>
        %198 = vector.shape_cast %196 : vector<32x8xf32> to vector<1x32x8xf32>
        %199 = vector.broadcast %197 : vector<2x1x8xf32> to vector<2x32x8xf32>
        %200 = vector.broadcast %198 : vector<1x32x8xf32> to vector<2x32x8xf32>
        %201 = arith.mulf %199, %200 : vector<2x32x8xf32>
        %202 = arith.addf %191, %201 : vector<2x32x8xf32>
        %c4_i32_124 = arith.constant 4 : i32
        %203 = arith.addi %156, %c4_i32_124 : i32
        %c0_125 = arith.constant 0 : index
        %204 = arith.index_cast %203 : i32 to index
        %c64_126 = arith.constant 64 : index
        %c0_127 = arith.constant 0 : index
        %205 = vector.load %arg5[%c0_125, %204, %c64_126, %c0_127] : memref<1x64x128x8xf32, #tpu.memory_space<vmem>>, vector<1x1x32x8xf32>
        %206 = vector.shape_cast %205 : vector<1x1x32x8xf32> to vector<1x32x8xf32>
        %207 = vector.shape_cast %206 : vector<1x32x8xf32> to vector<32x8xf32>
        %208 = vector.extract_strided_slice %158 {offsets = [0, 4, 0], sizes = [2, 1, 8], strides = [1, 1, 1]} : vector<2x8x8xf32> to vector<2x1x8xf32>
        %209 = vector.shape_cast %207 : vector<32x8xf32> to vector<1x32x8xf32>
        %210 = vector.broadcast %208 : vector<2x1x8xf32> to vector<2x32x8xf32>
        %211 = vector.broadcast %209 : vector<1x32x8xf32> to vector<2x32x8xf32>
        %212 = arith.mulf %210, %211 : vector<2x32x8xf32>
        %213 = arith.addf %202, %212 : vector<2x32x8xf32>
        %c5_i32 = arith.constant 5 : i32
        %214 = arith.addi %156, %c5_i32 : i32
        %c0_128 = arith.constant 0 : index
        %215 = arith.index_cast %214 : i32 to index
        %c64_129 = arith.constant 64 : index
        %c0_130 = arith.constant 0 : index
        %216 = vector.load %arg5[%c0_128, %215, %c64_129, %c0_130] : memref<1x64x128x8xf32, #tpu.memory_space<vmem>>, vector<1x1x32x8xf32>
        %217 = vector.shape_cast %216 : vector<1x1x32x8xf32> to vector<1x32x8xf32>
        %218 = vector.shape_cast %217 : vector<1x32x8xf32> to vector<32x8xf32>
        %219 = vector.extract_strided_slice %158 {offsets = [0, 5, 0], sizes = [2, 1, 8], strides = [1, 1, 1]} : vector<2x8x8xf32> to vector<2x1x8xf32>
        %220 = vector.shape_cast %218 : vector<32x8xf32> to vector<1x32x8xf32>
        %221 = vector.broadcast %219 : vector<2x1x8xf32> to vector<2x32x8xf32>
        %222 = vector.broadcast %220 : vector<1x32x8xf32> to vector<2x32x8xf32>
        %223 = arith.mulf %221, %222 : vector<2x32x8xf32>
        %224 = arith.addf %213, %223 : vector<2x32x8xf32>
        %c6_i32 = arith.constant 6 : i32
        %225 = arith.addi %156, %c6_i32 : i32
        %c0_131 = arith.constant 0 : index
        %226 = arith.index_cast %225 : i32 to index
        %c64_132 = arith.constant 64 : index
        %c0_133 = arith.constant 0 : index
        %227 = vector.load %arg5[%c0_131, %226, %c64_132, %c0_133] : memref<1x64x128x8xf32, #tpu.memory_space<vmem>>, vector<1x1x32x8xf32>
        %228 = vector.shape_cast %227 : vector<1x1x32x8xf32> to vector<1x32x8xf32>
        %229 = vector.shape_cast %228 : vector<1x32x8xf32> to vector<32x8xf32>
        %230 = vector.extract_strided_slice %158 {offsets = [0, 6, 0], sizes = [2, 1, 8], strides = [1, 1, 1]} : vector<2x8x8xf32> to vector<2x1x8xf32>
        %231 = vector.shape_cast %229 : vector<32x8xf32> to vector<1x32x8xf32>
        %232 = vector.broadcast %230 : vector<2x1x8xf32> to vector<2x32x8xf32>
        %233 = vector.broadcast %231 : vector<1x32x8xf32> to vector<2x32x8xf32>
        %234 = arith.mulf %232, %233 : vector<2x32x8xf32>
        %235 = arith.addf %224, %234 : vector<2x32x8xf32>
        %c7_i32 = arith.constant 7 : i32
        %236 = arith.addi %156, %c7_i32 : i32
        %c0_134 = arith.constant 0 : index
        %237 = arith.index_cast %236 : i32 to index
        %c64_135 = arith.constant 64 : index
        %c0_136 = arith.constant 0 : index
        %238 = vector.load %arg5[%c0_134, %237, %c64_135, %c0_136] : memref<1x64x128x8xf32, #tpu.memory_space<vmem>>, vector<1x1x32x8xf32>
        %239 = vector.shape_cast %238 : vector<1x1x32x8xf32> to vector<1x32x8xf32>
        %240 = vector.shape_cast %239 : vector<1x32x8xf32> to vector<32x8xf32>
        %241 = vector.extract_strided_slice %158 {offsets = [0, 7, 0], sizes = [2, 1, 8], strides = [1, 1, 1]} : vector<2x8x8xf32> to vector<2x1x8xf32>
        %242 = vector.shape_cast %240 : vector<32x8xf32> to vector<1x32x8xf32>
        %243 = vector.broadcast %241 : vector<2x1x8xf32> to vector<2x32x8xf32>
        %244 = vector.broadcast %242 : vector<1x32x8xf32> to vector<2x32x8xf32>
        %245 = arith.mulf %243, %244 : vector<2x32x8xf32>
        %246 = arith.addf %235, %245 : vector<2x32x8xf32>
        scf.yield %246 : vector<2x32x8xf32>
      }
      %c8_i32_81 = arith.constant 8 : i32
      %115 = math.tanh %114 : vector<2x32x8xf32>
      %116 = arith.mulf %107, %115 : vector<2x32x8xf32>
      %c0_82 = arith.constant 0 : index
      %c32_83 = arith.constant 32 : index
      %c0_84 = arith.constant 0 : index
      %117 = vector.load %arg6[%c0_82, %c32_83, %c0_84] : memref<1x128x8xf32, #tpu.memory_space<vmem>>, vector<1x32x8xf32>
      %118 = vector.shape_cast %117 : vector<1x32x8xf32> to vector<32x8xf32>
      %119 = vector.shape_cast %118 : vector<32x8xf32> to vector<1x32x8xf32>
      %120 = vector.shape_cast %119 : vector<1x32x8xf32> to vector<1x32x8xf32>
      %121 = vector.broadcast %120 : vector<1x32x8xf32> to vector<2x32x8xf32>
      %c0_i32_85 = arith.constant 0 : i32
      %c8_i32_86 = arith.constant 8 : i32
      %122 = arith.addi %c0_i32_85, %c8_i32_86 : i32
      %c1_i32_87 = arith.constant 1 : i32
      %123 = scf.for %arg15 = %c0_i32_85 to %122 step %c1_i32_87 iter_args(%arg16 = %121) -> (vector<2x32x8xf32>)  : i32 {
        %c8_i32_107 = arith.constant 8 : i32
        %155 = arith.muli %arg15, %c8_i32_107 : i32
        %156 = tpu.assume_multiple %155, 8 : i32
        %c0_108 = arith.constant 0 : index
        %157 = arith.index_cast %156 : i32 to index
        %c0_109 = arith.constant 0 : index
        %158 = vector.load %arg10[%c0_108, %157, %c0_109] : memref<2x64x8xf32, #tpu.memory_space<vmem>>, vector<2x8x8xf32>
        %c0_i32_110 = arith.constant 0 : i32
        %159 = arith.addi %156, %c0_i32_110 : i32
        %c0_111 = arith.constant 0 : index
        %160 = arith.index_cast %159 : i32 to index
        %c32_112 = arith.constant 32 : index
        %c0_113 = arith.constant 0 : index
        %161 = vector.load %arg5[%c0_111, %160, %c32_112, %c0_113] : memref<1x64x128x8xf32, #tpu.memory_space<vmem>>, vector<1x1x32x8xf32>
        %162 = vector.shape_cast %161 : vector<1x1x32x8xf32> to vector<1x32x8xf32>
        %163 = vector.shape_cast %162 : vector<1x32x8xf32> to vector<32x8xf32>
        %164 = vector.extract_strided_slice %158 {offsets = [0, 0, 0], sizes = [2, 1, 8], strides = [1, 1, 1]} : vector<2x8x8xf32> to vector<2x1x8xf32>
        %165 = vector.shape_cast %163 : vector<32x8xf32> to vector<1x32x8xf32>
        %166 = vector.broadcast %164 : vector<2x1x8xf32> to vector<2x32x8xf32>
        %167 = vector.broadcast %165 : vector<1x32x8xf32> to vector<2x32x8xf32>
        %168 = arith.mulf %166, %167 : vector<2x32x8xf32>
        %169 = arith.addf %arg16, %168 : vector<2x32x8xf32>
        %c1_i32_114 = arith.constant 1 : i32
        %170 = arith.addi %156, %c1_i32_114 : i32
        %c0_115 = arith.constant 0 : index
        %171 = arith.index_cast %170 : i32 to index
        %c32_116 = arith.constant 32 : index
        %c0_117 = arith.constant 0 : index
        %172 = vector.load %arg5[%c0_115, %171, %c32_116, %c0_117] : memref<1x64x128x8xf32, #tpu.memory_space<vmem>>, vector<1x1x32x8xf32>
        %173 = vector.shape_cast %172 : vector<1x1x32x8xf32> to vector<1x32x8xf32>
        %174 = vector.shape_cast %173 : vector<1x32x8xf32> to vector<32x8xf32>
        %175 = vector.extract_strided_slice %158 {offsets = [0, 1, 0], sizes = [2, 1, 8], strides = [1, 1, 1]} : vector<2x8x8xf32> to vector<2x1x8xf32>
        %176 = vector.shape_cast %174 : vector<32x8xf32> to vector<1x32x8xf32>
        %177 = vector.broadcast %175 : vector<2x1x8xf32> to vector<2x32x8xf32>
        %178 = vector.broadcast %176 : vector<1x32x8xf32> to vector<2x32x8xf32>
        %179 = arith.mulf %177, %178 : vector<2x32x8xf32>
        %180 = arith.addf %169, %179 : vector<2x32x8xf32>
        %c2_i32 = arith.constant 2 : i32
        %181 = arith.addi %156, %c2_i32 : i32
        %c0_118 = arith.constant 0 : index
        %182 = arith.index_cast %181 : i32 to index
        %c32_119 = arith.constant 32 : index
        %c0_120 = arith.constant 0 : index
        %183 = vector.load %arg5[%c0_118, %182, %c32_119, %c0_120] : memref<1x64x128x8xf32, #tpu.memory_space<vmem>>, vector<1x1x32x8xf32>
        %184 = vector.shape_cast %183 : vector<1x1x32x8xf32> to vector<1x32x8xf32>
        %185 = vector.shape_cast %184 : vector<1x32x8xf32> to vector<32x8xf32>
        %186 = vector.extract_strided_slice %158 {offsets = [0, 2, 0], sizes = [2, 1, 8], strides = [1, 1, 1]} : vector<2x8x8xf32> to vector<2x1x8xf32>
        %187 = vector.shape_cast %185 : vector<32x8xf32> to vector<1x32x8xf32>
        %188 = vector.broadcast %186 : vector<2x1x8xf32> to vector<2x32x8xf32>
        %189 = vector.broadcast %187 : vector<1x32x8xf32> to vector<2x32x8xf32>
        %190 = arith.mulf %188, %189 : vector<2x32x8xf32>
        %191 = arith.addf %180, %190 : vector<2x32x8xf32>
        %c3_i32 = arith.constant 3 : i32
        %192 = arith.addi %156, %c3_i32 : i32
        %c0_121 = arith.constant 0 : index
        %193 = arith.index_cast %192 : i32 to index
        %c32_122 = arith.constant 32 : index
        %c0_123 = arith.constant 0 : index
        %194 = vector.load %arg5[%c0_121, %193, %c32_122, %c0_123] : memref<1x64x128x8xf32, #tpu.memory_space<vmem>>, vector<1x1x32x8xf32>
        %195 = vector.shape_cast %194 : vector<1x1x32x8xf32> to vector<1x32x8xf32>
        %196 = vector.shape_cast %195 : vector<1x32x8xf32> to vector<32x8xf32>
        %197 = vector.extract_strided_slice %158 {offsets = [0, 3, 0], sizes = [2, 1, 8], strides = [1, 1, 1]} : vector<2x8x8xf32> to vector<2x1x8xf32>
        %198 = vector.shape_cast %196 : vector<32x8xf32> to vector<1x32x8xf32>
        %199 = vector.broadcast %197 : vector<2x1x8xf32> to vector<2x32x8xf32>
        %200 = vector.broadcast %198 : vector<1x32x8xf32> to vector<2x32x8xf32>
        %201 = arith.mulf %199, %200 : vector<2x32x8xf32>
        %202 = arith.addf %191, %201 : vector<2x32x8xf32>
        %c4_i32_124 = arith.constant 4 : i32
        %203 = arith.addi %156, %c4_i32_124 : i32
        %c0_125 = arith.constant 0 : index
        %204 = arith.index_cast %203 : i32 to index
        %c32_126 = arith.constant 32 : index
        %c0_127 = arith.constant 0 : index
        %205 = vector.load %arg5[%c0_125, %204, %c32_126, %c0_127] : memref<1x64x128x8xf32, #tpu.memory_space<vmem>>, vector<1x1x32x8xf32>
        %206 = vector.shape_cast %205 : vector<1x1x32x8xf32> to vector<1x32x8xf32>
        %207 = vector.shape_cast %206 : vector<1x32x8xf32> to vector<32x8xf32>
        %208 = vector.extract_strided_slice %158 {offsets = [0, 4, 0], sizes = [2, 1, 8], strides = [1, 1, 1]} : vector<2x8x8xf32> to vector<2x1x8xf32>
        %209 = vector.shape_cast %207 : vector<32x8xf32> to vector<1x32x8xf32>
        %210 = vector.broadcast %208 : vector<2x1x8xf32> to vector<2x32x8xf32>
        %211 = vector.broadcast %209 : vector<1x32x8xf32> to vector<2x32x8xf32>
        %212 = arith.mulf %210, %211 : vector<2x32x8xf32>
        %213 = arith.addf %202, %212 : vector<2x32x8xf32>
        %c5_i32 = arith.constant 5 : i32
        %214 = arith.addi %156, %c5_i32 : i32
        %c0_128 = arith.constant 0 : index
        %215 = arith.index_cast %214 : i32 to index
        %c32_129 = arith.constant 32 : index
        %c0_130 = arith.constant 0 : index
        %216 = vector.load %arg5[%c0_128, %215, %c32_129, %c0_130] : memref<1x64x128x8xf32, #tpu.memory_space<vmem>>, vector<1x1x32x8xf32>
        %217 = vector.shape_cast %216 : vector<1x1x32x8xf32> to vector<1x32x8xf32>
        %218 = vector.shape_cast %217 : vector<1x32x8xf32> to vector<32x8xf32>
        %219 = vector.extract_strided_slice %158 {offsets = [0, 5, 0], sizes = [2, 1, 8], strides = [1, 1, 1]} : vector<2x8x8xf32> to vector<2x1x8xf32>
        %220 = vector.shape_cast %218 : vector<32x8xf32> to vector<1x32x8xf32>
        %221 = vector.broadcast %219 : vector<2x1x8xf32> to vector<2x32x8xf32>
        %222 = vector.broadcast %220 : vector<1x32x8xf32> to vector<2x32x8xf32>
        %223 = arith.mulf %221, %222 : vector<2x32x8xf32>
        %224 = arith.addf %213, %223 : vector<2x32x8xf32>
        %c6_i32 = arith.constant 6 : i32
        %225 = arith.addi %156, %c6_i32 : i32
        %c0_131 = arith.constant 0 : index
        %226 = arith.index_cast %225 : i32 to index
        %c32_132 = arith.constant 32 : index
        %c0_133 = arith.constant 0 : index
        %227 = vector.load %arg5[%c0_131, %226, %c32_132, %c0_133] : memref<1x64x128x8xf32, #tpu.memory_space<vmem>>, vector<1x1x32x8xf32>
        %228 = vector.shape_cast %227 : vector<1x1x32x8xf32> to vector<1x32x8xf32>
        %229 = vector.shape_cast %228 : vector<1x32x8xf32> to vector<32x8xf32>
        %230 = vector.extract_strided_slice %158 {offsets = [0, 6, 0], sizes = [2, 1, 8], strides = [1, 1, 1]} : vector<2x8x8xf32> to vector<2x1x8xf32>
        %231 = vector.shape_cast %229 : vector<32x8xf32> to vector<1x32x8xf32>
        %232 = vector.broadcast %230 : vector<2x1x8xf32> to vector<2x32x8xf32>
        %233 = vector.broadcast %231 : vector<1x32x8xf32> to vector<2x32x8xf32>
        %234 = arith.mulf %232, %233 : vector<2x32x8xf32>
        %235 = arith.addf %224, %234 : vector<2x32x8xf32>
        %c7_i32 = arith.constant 7 : i32
        %236 = arith.addi %156, %c7_i32 : i32
        %c0_134 = arith.constant 0 : index
        %237 = arith.index_cast %236 : i32 to index
        %c32_135 = arith.constant 32 : index
        %c0_136 = arith.constant 0 : index
        %238 = vector.load %arg5[%c0_134, %237, %c32_135, %c0_136] : memref<1x64x128x8xf32, #tpu.memory_space<vmem>>, vector<1x1x32x8xf32>
        %239 = vector.shape_cast %238 : vector<1x1x32x8xf32> to vector<1x32x8xf32>
        %240 = vector.shape_cast %239 : vector<1x32x8xf32> to vector<32x8xf32>
        %241 = vector.extract_strided_slice %158 {offsets = [0, 7, 0], sizes = [2, 1, 8], strides = [1, 1, 1]} : vector<2x8x8xf32> to vector<2x1x8xf32>
        %242 = vector.shape_cast %240 : vector<32x8xf32> to vector<1x32x8xf32>
        %243 = vector.broadcast %241 : vector<2x1x8xf32> to vector<2x32x8xf32>
        %244 = vector.broadcast %242 : vector<1x32x8xf32> to vector<2x32x8xf32>
        %245 = arith.mulf %243, %244 : vector<2x32x8xf32>
        %246 = arith.addf %235, %245 : vector<2x32x8xf32>
        scf.yield %246 : vector<2x32x8xf32>
      }
      %c8_i32_88 = arith.constant 8 : i32
      %124 = arith.negf %123 : vector<2x32x8xf32>
      %125 = math.exp %124 : vector<2x32x8xf32>
      %cst_89 = arith.constant 1.000000e+00 : f32
      %126 = vector.broadcast %cst_89 : f32 to vector<2x32x8xf32>
      %127 = arith.addf %126, %125 : vector<2x32x8xf32>
      %128 = arith.divf %126, %127 : vector<2x32x8xf32>
      %c0_90 = arith.constant 0 : index
      %c0_91 = arith.constant 0 : index
      %c0_92 = arith.constant 0 : index
      %129 = vector.load %arg12[%c0_90, %c0_91, %c0_92] : memref<2x32x8xf32, #tpu.memory_space<vmem>>, vector<2x32x8xf32>
      %130 = arith.mulf %128, %129 : vector<2x32x8xf32>
      %131 = arith.addf %130, %116 : vector<2x32x8xf32>
      %c0_93 = arith.constant 0 : index
      %c96_94 = arith.constant 96 : index
      %c0_95 = arith.constant 0 : index
      %132 = vector.load %arg6[%c0_93, %c96_94, %c0_95] : memref<1x128x8xf32, #tpu.memory_space<vmem>>, vector<1x32x8xf32>
      %133 = vector.shape_cast %132 : vector<1x32x8xf32> to vector<32x8xf32>
      %134 = vector.shape_cast %133 : vector<32x8xf32> to vector<1x32x8xf32>
      %135 = vector.shape_cast %134 : vector<1x32x8xf32> to vector<1x32x8xf32>
      %136 = vector.broadcast %135 : vector<1x32x8xf32> to vector<2x32x8xf32>
      %c0_i32_96 = arith.constant 0 : i32
      %c8_i32_97 = arith.constant 8 : i32
      %137 = arith.addi %c0_i32_96, %c8_i32_97 : i32
      %c1_i32_98 = arith.constant 1 : i32
      %138 = scf.for %arg15 = %c0_i32_96 to %137 step %c1_i32_98 iter_args(%arg16 = %136) -> (vector<2x32x8xf32>)  : i32 {
        %c8_i32_107 = arith.constant 8 : i32
        %155 = arith.muli %arg15, %c8_i32_107 : i32
        %156 = tpu.assume_multiple %155, 8 : i32
        %c0_108 = arith.constant 0 : index
        %157 = arith.index_cast %156 : i32 to index
        %c0_109 = arith.constant 0 : index
        %158 = vector.load %arg10[%c0_108, %157, %c0_109] : memref<2x64x8xf32, #tpu.memory_space<vmem>>, vector<2x8x8xf32>
        %c0_i32_110 = arith.constant 0 : i32
        %159 = arith.addi %156, %c0_i32_110 : i32
        %c0_111 = arith.constant 0 : index
        %160 = arith.index_cast %159 : i32 to index
        %c96_112 = arith.constant 96 : index
        %c0_113 = arith.constant 0 : index
        %161 = vector.load %arg5[%c0_111, %160, %c96_112, %c0_113] : memref<1x64x128x8xf32, #tpu.memory_space<vmem>>, vector<1x1x32x8xf32>
        %162 = vector.shape_cast %161 : vector<1x1x32x8xf32> to vector<1x32x8xf32>
        %163 = vector.shape_cast %162 : vector<1x32x8xf32> to vector<32x8xf32>
        %164 = vector.extract_strided_slice %158 {offsets = [0, 0, 0], sizes = [2, 1, 8], strides = [1, 1, 1]} : vector<2x8x8xf32> to vector<2x1x8xf32>
        %165 = vector.shape_cast %163 : vector<32x8xf32> to vector<1x32x8xf32>
        %166 = vector.broadcast %164 : vector<2x1x8xf32> to vector<2x32x8xf32>
        %167 = vector.broadcast %165 : vector<1x32x8xf32> to vector<2x32x8xf32>
        %168 = arith.mulf %166, %167 : vector<2x32x8xf32>
        %169 = arith.addf %arg16, %168 : vector<2x32x8xf32>
        %c1_i32_114 = arith.constant 1 : i32
        %170 = arith.addi %156, %c1_i32_114 : i32
        %c0_115 = arith.constant 0 : index
        %171 = arith.index_cast %170 : i32 to index
        %c96_116 = arith.constant 96 : index
        %c0_117 = arith.constant 0 : index
        %172 = vector.load %arg5[%c0_115, %171, %c96_116, %c0_117] : memref<1x64x128x8xf32, #tpu.memory_space<vmem>>, vector<1x1x32x8xf32>
        %173 = vector.shape_cast %172 : vector<1x1x32x8xf32> to vector<1x32x8xf32>
        %174 = vector.shape_cast %173 : vector<1x32x8xf32> to vector<32x8xf32>
        %175 = vector.extract_strided_slice %158 {offsets = [0, 1, 0], sizes = [2, 1, 8], strides = [1, 1, 1]} : vector<2x8x8xf32> to vector<2x1x8xf32>
        %176 = vector.shape_cast %174 : vector<32x8xf32> to vector<1x32x8xf32>
        %177 = vector.broadcast %175 : vector<2x1x8xf32> to vector<2x32x8xf32>
        %178 = vector.broadcast %176 : vector<1x32x8xf32> to vector<2x32x8xf32>
        %179 = arith.mulf %177, %178 : vector<2x32x8xf32>
        %180 = arith.addf %169, %179 : vector<2x32x8xf32>
        %c2_i32 = arith.constant 2 : i32
        %181 = arith.addi %156, %c2_i32 : i32
        %c0_118 = arith.constant 0 : index
        %182 = arith.index_cast %181 : i32 to index
        %c96_119 = arith.constant 96 : index
        %c0_120 = arith.constant 0 : index
        %183 = vector.load %arg5[%c0_118, %182, %c96_119, %c0_120] : memref<1x64x128x8xf32, #tpu.memory_space<vmem>>, vector<1x1x32x8xf32>
        %184 = vector.shape_cast %183 : vector<1x1x32x8xf32> to vector<1x32x8xf32>
        %185 = vector.shape_cast %184 : vector<1x32x8xf32> to vector<32x8xf32>
        %186 = vector.extract_strided_slice %158 {offsets = [0, 2, 0], sizes = [2, 1, 8], strides = [1, 1, 1]} : vector<2x8x8xf32> to vector<2x1x8xf32>
        %187 = vector.shape_cast %185 : vector<32x8xf32> to vector<1x32x8xf32>
        %188 = vector.broadcast %186 : vector<2x1x8xf32> to vector<2x32x8xf32>
        %189 = vector.broadcast %187 : vector<1x32x8xf32> to vector<2x32x8xf32>
        %190 = arith.mulf %188, %189 : vector<2x32x8xf32>
        %191 = arith.addf %180, %190 : vector<2x32x8xf32>
        %c3_i32 = arith.constant 3 : i32
        %192 = arith.addi %156, %c3_i32 : i32
        %c0_121 = arith.constant 0 : index
        %193 = arith.index_cast %192 : i32 to index
        %c96_122 = arith.constant 96 : index
        %c0_123 = arith.constant 0 : index
        %194 = vector.load %arg5[%c0_121, %193, %c96_122, %c0_123] : memref<1x64x128x8xf32, #tpu.memory_space<vmem>>, vector<1x1x32x8xf32>
        %195 = vector.shape_cast %194 : vector<1x1x32x8xf32> to vector<1x32x8xf32>
        %196 = vector.shape_cast %195 : vector<1x32x8xf32> to vector<32x8xf32>
        %197 = vector.extract_strided_slice %158 {offsets = [0, 3, 0], sizes = [2, 1, 8], strides = [1, 1, 1]} : vector<2x8x8xf32> to vector<2x1x8xf32>
        %198 = vector.shape_cast %196 : vector<32x8xf32> to vector<1x32x8xf32>
        %199 = vector.broadcast %197 : vector<2x1x8xf32> to vector<2x32x8xf32>
        %200 = vector.broadcast %198 : vector<1x32x8xf32> to vector<2x32x8xf32>
        %201 = arith.mulf %199, %200 : vector<2x32x8xf32>
        %202 = arith.addf %191, %201 : vector<2x32x8xf32>
        %c4_i32_124 = arith.constant 4 : i32
        %203 = arith.addi %156, %c4_i32_124 : i32
        %c0_125 = arith.constant 0 : index
        %204 = arith.index_cast %203 : i32 to index
        %c96_126 = arith.constant 96 : index
        %c0_127 = arith.constant 0 : index
        %205 = vector.load %arg5[%c0_125, %204, %c96_126, %c0_127] : memref<1x64x128x8xf32, #tpu.memory_space<vmem>>, vector<1x1x32x8xf32>
        %206 = vector.shape_cast %205 : vector<1x1x32x8xf32> to vector<1x32x8xf32>
        %207 = vector.shape_cast %206 : vector<1x32x8xf32> to vector<32x8xf32>
        %208 = vector.extract_strided_slice %158 {offsets = [0, 4, 0], sizes = [2, 1, 8], strides = [1, 1, 1]} : vector<2x8x8xf32> to vector<2x1x8xf32>
        %209 = vector.shape_cast %207 : vector<32x8xf32> to vector<1x32x8xf32>
        %210 = vector.broadcast %208 : vector<2x1x8xf32> to vector<2x32x8xf32>
        %211 = vector.broadcast %209 : vector<1x32x8xf32> to vector<2x32x8xf32>
        %212 = arith.mulf %210, %211 : vector<2x32x8xf32>
        %213 = arith.addf %202, %212 : vector<2x32x8xf32>
        %c5_i32 = arith.constant 5 : i32
        %214 = arith.addi %156, %c5_i32 : i32
        %c0_128 = arith.constant 0 : index
        %215 = arith.index_cast %214 : i32 to index
        %c96_129 = arith.constant 96 : index
        %c0_130 = arith.constant 0 : index
        %216 = vector.load %arg5[%c0_128, %215, %c96_129, %c0_130] : memref<1x64x128x8xf32, #tpu.memory_space<vmem>>, vector<1x1x32x8xf32>
        %217 = vector.shape_cast %216 : vector<1x1x32x8xf32> to vector<1x32x8xf32>
        %218 = vector.shape_cast %217 : vector<1x32x8xf32> to vector<32x8xf32>
        %219 = vector.extract_strided_slice %158 {offsets = [0, 5, 0], sizes = [2, 1, 8], strides = [1, 1, 1]} : vector<2x8x8xf32> to vector<2x1x8xf32>
        %220 = vector.shape_cast %218 : vector<32x8xf32> to vector<1x32x8xf32>
        %221 = vector.broadcast %219 : vector<2x1x8xf32> to vector<2x32x8xf32>
        %222 = vector.broadcast %220 : vector<1x32x8xf32> to vector<2x32x8xf32>
        %223 = arith.mulf %221, %222 : vector<2x32x8xf32>
        %224 = arith.addf %213, %223 : vector<2x32x8xf32>
        %c6_i32 = arith.constant 6 : i32
        %225 = arith.addi %156, %c6_i32 : i32
        %c0_131 = arith.constant 0 : index
        %226 = arith.index_cast %225 : i32 to index
        %c96_132 = arith.constant 96 : index
        %c0_133 = arith.constant 0 : index
        %227 = vector.load %arg5[%c0_131, %226, %c96_132, %c0_133] : memref<1x64x128x8xf32, #tpu.memory_space<vmem>>, vector<1x1x32x8xf32>
        %228 = vector.shape_cast %227 : vector<1x1x32x8xf32> to vector<1x32x8xf32>
        %229 = vector.shape_cast %228 : vector<1x32x8xf32> to vector<32x8xf32>
        %230 = vector.extract_strided_slice %158 {offsets = [0, 6, 0], sizes = [2, 1, 8], strides = [1, 1, 1]} : vector<2x8x8xf32> to vector<2x1x8xf32>
        %231 = vector.shape_cast %229 : vector<32x8xf32> to vector<1x32x8xf32>
        %232 = vector.broadcast %230 : vector<2x1x8xf32> to vector<2x32x8xf32>
        %233 = vector.broadcast %231 : vector<1x32x8xf32> to vector<2x32x8xf32>
        %234 = arith.mulf %232, %233 : vector<2x32x8xf32>
        %235 = arith.addf %224, %234 : vector<2x32x8xf32>
        %c7_i32 = arith.constant 7 : i32
        %236 = arith.addi %156, %c7_i32 : i32
        %c0_134 = arith.constant 0 : index
        %237 = arith.index_cast %236 : i32 to index
        %c96_135 = arith.constant 96 : index
        %c0_136 = arith.constant 0 : index
        %238 = vector.load %arg5[%c0_134, %237, %c96_135, %c0_136] : memref<1x64x128x8xf32, #tpu.memory_space<vmem>>, vector<1x1x32x8xf32>
        %239 = vector.shape_cast %238 : vector<1x1x32x8xf32> to vector<1x32x8xf32>
        %240 = vector.shape_cast %239 : vector<1x32x8xf32> to vector<32x8xf32>
        %241 = vector.extract_strided_slice %158 {offsets = [0, 7, 0], sizes = [2, 1, 8], strides = [1, 1, 1]} : vector<2x8x8xf32> to vector<2x1x8xf32>
        %242 = vector.shape_cast %240 : vector<32x8xf32> to vector<1x32x8xf32>
        %243 = vector.broadcast %241 : vector<2x1x8xf32> to vector<2x32x8xf32>
        %244 = vector.broadcast %242 : vector<1x32x8xf32> to vector<2x32x8xf32>
        %245 = arith.mulf %243, %244 : vector<2x32x8xf32>
        %246 = arith.addf %235, %245 : vector<2x32x8xf32>
        scf.yield %246 : vector<2x32x8xf32>
      }
      %c8_i32_99 = arith.constant 8 : i32
      %139 = arith.negf %138 : vector<2x32x8xf32>
      %140 = math.exp %139 : vector<2x32x8xf32>
      %cst_100 = arith.constant 1.000000e+00 : f32
      %141 = vector.broadcast %cst_100 : f32 to vector<2x32x8xf32>
      %142 = arith.addf %141, %140 : vector<2x32x8xf32>
      %143 = arith.divf %141, %142 : vector<2x32x8xf32>
      %144 = math.tanh %131 : vector<2x32x8xf32>
      %145 = arith.mulf %143, %144 : vector<2x32x8xf32>
      %c0_101 = arith.constant 0 : index
      %c0_102 = arith.constant 0 : index
      %c0_103 = arith.constant 0 : index
      %146 = vector.load %arg12[%c0_101, %c0_102, %c0_103] : memref<2x32x8xf32, #tpu.memory_space<vmem>>, vector<2x32x8xf32>
      tpu.vector_store %arg12[%c0_101, %c0_102, %c0_103], %131 {strides = array<i32>} : memref<2x32x8xf32, #tpu.memory_space<vmem>>, vector<2x32x8xf32>,
      %c0_104 = arith.constant 0 : index
      %c32_105 = arith.constant 32 : index
      %c0_106 = arith.constant 0 : index
      %147 = vector.load %arg10[%c0_104, %c32_105, %c0_106] : memref<2x64x8xf32, #tpu.memory_space<vmem>>, vector<2x32x8xf32>
      tpu.vector_store %arg10[%c0_104, %c32_105, %c0_106], %145 {strides = array<i32>} : memref<2x64x8xf32, #tpu.memory_space<vmem>>, vector<2x32x8xf32>,
      %148 = arith.index_cast %arg13 : i32 to index
      %149 = memref.load %arg7[%148] : memref<8xf32, #tpu.memory_space<smem>>
      %150 = vector.extract_strided_slice %145 {offsets = [0, 31, 0], sizes = [2, 1, 8], strides = [1, 1, 1]} : vector<2x32x8xf32> to vector<2x1x8xf32>
      %151 = vector.shape_cast %150 : vector<2x1x8xf32> to vector<2x8xf32>
      %152 = vector.broadcast %149 : f32 to vector<2x8xf32>
      %153 = arith.mulf %152, %151 : vector<2x8xf32>
      %154 = arith.addf %arg14, %153 : vector<2x8xf32>
      scf.yield %154 : vector<2x8xf32>
    }
    %c8_i32_11 = arith.constant 8 : i32
    %c0_12 = arith.constant 0 : index
    %9 = memref.load %arg8[%c0_12] : memref<1xf32, #tpu.memory_space<smem>>
    %10 = vector.broadcast %9 : f32 to vector<2x8xf32>
    %11 = arith.addf %8, %10 : vector<2x8xf32>
    %c0_13 = arith.constant 0 : index
    %c0_14 = arith.constant 0 : index
    %c0_15 = arith.constant 0 : index
    %12 = vector.load %arg9[%c0_13, %c0_14, %c0_15] : memref<1x2x8xf32, #tpu.memory_space<vmem>>, vector<1x2x8xf32>
    %13 = vector.shape_cast %12 : vector<1x2x8xf32> to vector<2x8xf32>
    %14 = vector.shape_cast %11 : vector<2x8xf32> to vector<1x2x8xf32>
    tpu.vector_store %arg9[%c0_13, %c0_14, %c0_15], %14 {strides = array<i32>} : memref<1x2x8xf32, #tpu.memory_space<vmem>>, vector<1x2x8xf32>,
    return
  }
  func.func @transform_0(%arg0: i32) -> (i32, i32, i32, i32) {
    %c0_i32 = arith.constant 0 : i32
    %c0_i32_0 = arith.constant 0 : i32
    %c0_i32_1 = arith.constant 0 : i32
    %c0_i32_2 = arith.constant 0 : i32
    return %arg0, %c0_i32, %c0_i32_0, %c0_i32_1 : i32, i32, i32, i32
  }
  func.func @transform_1(%arg0: i32) -> (i32, i32, i32) {
    %c0_i32 = arith.constant 0 : i32
    %c0_i32_0 = arith.constant 0 : i32
    %c0_i32_1 = arith.constant 0 : i32
    return %arg0, %c0_i32, %c0_i32_0 : i32, i32, i32
  }
  func.func @transform_2(%arg0: i32) -> (i32, i32, i32, i32) {
    %c0_i32 = arith.constant 0 : i32
    %c0_i32_0 = arith.constant 0 : i32
    %c0_i32_1 = arith.constant 0 : i32
    %c0_i32_2 = arith.constant 0 : i32
    return %arg0, %c0_i32, %c0_i32_0, %c0_i32_1 : i32, i32, i32, i32
  }
  func.func @transform_3(%arg0: i32) -> (i32, i32, i32) {
    %c0_i32 = arith.constant 0 : i32
    %c0_i32_0 = arith.constant 0 : i32
    %c0_i32_1 = arith.constant 0 : i32
    return %arg0, %c0_i32, %c0_i32_0 : i32, i32, i32
  }
  func.func @transform_4(%arg0: i32) -> (i32, i32, i32, i32) {
    %c0_i32 = arith.constant 0 : i32
    %c0_i32_0 = arith.constant 0 : i32
    %c0_i32_1 = arith.constant 0 : i32
    %c0_i32_2 = arith.constant 0 : i32
    return %arg0, %c0_i32, %c0_i32_0, %c0_i32_1 : i32, i32, i32, i32
  }
  func.func @transform_5(%arg0: i32) -> (i32, i32, i32) {
    %c0_i32 = arith.constant 0 : i32
    %c0_i32_0 = arith.constant 0 : i32
    %c0_i32_1 = arith.constant 0 : i32
    return %arg0, %c0_i32, %c0_i32_0 : i32, i32, i32
  }
  func.func @transform_6(%arg0: i32) -> i32 {
    %c0_i32 = arith.constant 0 : i32
    %c0_i32_0 = arith.constant 0 : i32
    return %c0_i32 : i32
  }
  func.func @transform_7(%arg0: i32) -> i32 {
    %c0_i32 = arith.constant 0 : i32
    %c0_i32_0 = arith.constant 0 : i32
    return %c0_i32 : i32
  }
  func.func @transform_8(%arg0: i32) -> (i32, i32, i32) {
    %c0_i32 = arith.constant 0 : i32
    %c0_i32_0 = arith.constant 0 : i32
    %c0_i32_1 = arith.constant 0 : i32
    return %arg0, %c0_i32, %c0_i32_0 : i32, i32, i32
  }
}

</mosaic_0001>

<llo_original>
// kernel: tpu_custom_call.1
$region0: #{tpu_custom_call.1}
  #allocation0 [shape = 'u32[]', space=smem, size = 0x4, offset = 0x4, fixed_abs, tag = 'smem constant byte address 0x4 - core index']
  #allocation1 [shape = 'u32[144,128]{1,0:T(1,128)}', space=vmem, size = 0x12000, scoped, tag = 'internal scratch']
  #allocation2 [shape = 'f32[2,64,8]{2,1,0:T(8,128)}', space=vmem, size = 0x10000, scoped, tag = 'scratch operand']
  #allocation3 [shape = 'f32[2,32,8]{2,1,0:T(8,128)}', space=vmem, size = 0x8000, scoped, tag = 'scratch operand']
  #allocation4 [shape = 'f32[2,32,8]{2,1,0:T(8,128)}', space=vmem, size = 0x8000, scoped, tag = 'scratch operand']
  #allocation5 [shape = 'f32[1]{0:T(128)S(6)}', space=smem, size = 0x200, scoped, tag = 'scoped memory for tpu_custom_call.1']
  %s0 = inlined_call_operand.vmem [shape: f32[1,8,2,8], index: 0, kind: input, shape index: {}]
  %s1 = inlined_call_operand.vmem [shape: f32[1,128,8], index: 1, kind: input, shape index: {}]
  %s2 = inlined_call_operand.vmem [shape: f32[1,32,128,8], index: 2, kind: input, shape index: {}]
  %s3 = inlined_call_operand.vmem [shape: f32[1,128,8], index: 3, kind: input, shape index: {}]
  %s4 = inlined_call_operand.vmem [shape: f32[1,64,128,8], index: 4, kind: input, shape index: {}]
  %s5 = inlined_call_operand.vmem [shape: f32[1,128,8], index: 5, kind: input, shape index: {}]
  %s6 = inlined_call_operand.vmem [shape: f32[8], index: 6, kind: input, shape index: {}]
  %s7 = inlined_call_operand.<no memory space> [shape: f32[1], index: 7, kind: input, shape index: {}]
  %s8 = inlined_call_operand.hbm [shape: f32[1,2,8], index: 8, kind: output, shape index: {}]
  %s9 = sld [smem:[#allocation0]]
  $region109: #{tpu_custom_call.1} parent=0
    _
  %s11 = ssub.s32 1, %s9
  %s12 = scalar_select 0, %s11, %s9
  %13 = sst [smem:[#allocation5]] %s7
  $region1: #{tpu_custom_call.1} parent=0
    #allocation6 [shape = 'u8[512]{0}', space=smem, size = 0x200, scoped, tag = 'input window, operand 6, single buffered']
    #allocation7 [shape = 's32[1]{0}', space=sflag, size = 0x4, scoped, tag = 'scoped memory for tpu_custom_call.1']
    #allocation8 [shape = 's32[1]{0}', space=sflag, size = 0x4, scoped, tag = 'scoped memory for tpu_custom_call.1']
    #allocation9 [shape = 'u8[1024]{0}', space=vmem, size = 0x400, scoped, tag = 'output window, operand 0, single buffered']
    %14 = vsyncpa [#allocation8], 0
    %15 = vsyncpa [#allocation7], 0
    // Predicated region
    $region2: #{tpu_custom_call.1} parent=1 // pred_check
      _
    $region3: #{tpu_custom_call.1} parent=1 // pred_check_branch
      %17 = sbr.rel (0) target = $region5
    $region4: #{tpu_custom_call.1} parent=1 // pred_region
      _
    $region5: #{tpu_custom_call.1} parent=1 // pred_fallthru
      _
    // Predicated region
    $region6: #{tpu_custom_call.1} parent=1 // pred_check
      _
    $region7: #{tpu_custom_call.1} parent=1 // pred_check_branch
      %19 = sbr.rel (0) target = $region9
    $region8: #{tpu_custom_call.1} parent=1 // pred_region
      _
    $region9: #{tpu_custom_call.1} parent=1 // pred_fallthru
      _
    // Predicated region
    $region10: #{tpu_custom_call.1} parent=1 // pred_check
      _
    $region11: #{tpu_custom_call.1} parent=1 // pred_check_branch
      %21 = sbr.rel (0) target = $region13
    $region12: #{tpu_custom_call.1} parent=1 // pred_region
      _
    $region13: #{tpu_custom_call.1} parent=1 // pred_fallthru
      _
    // Predicated region
    $region14: #{tpu_custom_call.1} parent=1 // pred_check
      _
    $region15: #{tpu_custom_call.1} parent=1 // pred_check_branch
      %23 = sbr.rel (0) target = $region17
    $region16: #{tpu_custom_call.1} parent=1 // pred_region
      _
    $region17: #{tpu_custom_call.1} parent=1 // pred_fallthru
      _
    // Predicated region
    $region18: #{tpu_custom_call.1} parent=1 // pred_check
      _
    $region19: #{tpu_custom_call.1} parent=1 // pred_check_branch
      %25 = sbr.rel (0) target = $region21
    $region20: #{tpu_custom_call.1} parent=1 // pred_region
      _
    $region21: #{tpu_custom_call.1} parent=1 // pred_fallthru
      _
    // Predicated region
    $region22: #{tpu_custom_call.1} parent=1 // pred_check
      _
    $region23: #{tpu_custom_call.1} parent=1 // pred_check_branch
      %27 = sbr.rel (0) target = $region25
    $region24: #{tpu_custom_call.1} parent=1 // pred_region
      _
    $region25: #{tpu_custom_call.1} parent=1 // pred_fallthru
      _
    // Predicated region
    $region26: #{tpu_custom_call.1} parent=1 // pred_check
      _
    $region27: #{tpu_custom_call.1} parent=1 // pred_check_branch
      %29 = sbr.rel (0) target = $region29
    $region28: #{tpu_custom_call.1} parent=1 // pred_region
      %s31 = ssub.s32 16, 16
      %32 = vsyncadd [#allocation8], %s31
      %s34 = sshll.u32 %s6, 4
      %s35 = int_to_ptr.vmem [resolvable:$true] %s34
      %37 = dma.vmem_to_smem %s35, 16, [#allocation6], [#allocation8]
    $region29: #{tpu_custom_call.1} parent=1 // pred_fallthru
      _
    // Predicated region
    $region30: #{tpu_custom_call.1} parent=1 // pred_check
      _
    $region31: #{tpu_custom_call.1} parent=1 // pred_check_branch
      %39 = sbr.rel (0) target = $region33
    $region32: #{tpu_custom_call.1} parent=1 // pred_region
      _
    $region33: #{tpu_custom_call.1} parent=1 // pred_fallthru
      _
    // Predicated region
    $region34: #{tpu_custom_call.1} parent=1 // pred_check
      _
    $region35: #{tpu_custom_call.1} parent=1 // pred_check_branch
      %41 = sbr.rel (0) target = $region37
    $region36: #{tpu_custom_call.1} parent=1 // pred_region
      %42 = dma.done [#allocation8], 16
    $region37: #{tpu_custom_call.1} parent=1 // pred_fallthru
      _
    %43 = sfence
    %vm44 = vcmask 64512
    %45 = vst.msk [vmem:[#allocation2] sm:$0xff] %vm44, 0.0
    %46 = vst.msk [vmem:[#allocation2 + $0x8] sm:$0xff] %vm44, 0.0
    %47 = vst.msk [vmem:[#allocation2 + $0x10] sm:$0xff] %vm44, 0.0
    %48 = vst.msk [vmem:[#allocation2 + $0x18] sm:$0xff] %vm44, 0.0
    %49 = vst.msk [vmem:[#allocation2 + $0x20] sm:$0xff] %vm44, 0.0
    %50 = vst.msk [vmem:[#allocation2 + $0x28] sm:$0xff] %vm44, 0.0
    %51 = vst.msk [vmem:[#allocation2 + $0x30] sm:$0xff] %vm44, 0.0
    %52 = vst.msk [vmem:[#allocation2 + $0x38] sm:$0xff] %vm44, 0.0
    %53 = vst.msk [vmem:[#allocation2 + $0x40] sm:$0xff] %vm44, 0.0
    %54 = vst.msk [vmem:[#allocation2 + $0x48] sm:$0xff] %vm44, 0.0
    %55 = vst.msk [vmem:[#allocation2 + $0x50] sm:$0xff] %vm44, 0.0
    %56 = vst.msk [vmem:[#allocation2 + $0x58] sm:$0xff] %vm44, 0.0
    %57 = vst.msk [vmem:[#allocation2 + $0x60] sm:$0xff] %vm44, 0.0
    %58 = vst.msk [vmem:[#allocation2 + $0x68] sm:$0xff] %vm44, 0.0
    %59 = vst.msk [vmem:[#allocation2 + $0x70] sm:$0xff] %vm44, 0.0
    %60 = vst.msk [vmem:[#allocation2 + $0x78] sm:$0xff] %vm44, 0.0
    %61 = vst.msk [vmem:[#allocation3] sm:$0xff] %vm44, 0.0
    %62 = vst.msk [vmem:[#allocation3 + $0x8] sm:$0xff] %vm44, 0.0
    %63 = vst.msk [vmem:[#allocation3 + $0x10] sm:$0xff] %vm44, 0.0
    %64 = vst.msk [vmem:[#allocation3 + $0x18] sm:$0xff] %vm44, 0.0
    %65 = vst.msk [vmem:[#allocation3 + $0x20] sm:$0xff] %vm44, 0.0
    %66 = vst.msk [vmem:[#allocation3 + $0x28] sm:$0xff] %vm44, 0.0
    %67 = vst.msk [vmem:[#allocation3 + $0x30] sm:$0xff] %vm44, 0.0
    %68 = vst.msk [vmem:[#allocation3 + $0x38] sm:$0xff] %vm44, 0.0
    %69 = vst.msk [vmem:[#allocation4] sm:$0xff] %vm44, 0.0
    %70 = vst.msk [vmem:[#allocation4 + $0x8] sm:$0xff] %vm44, 0.0
    %71 = vst.msk [vmem:[#allocation4 + $0x10] sm:$0xff] %vm44, 0.0
    %72 = vst.msk [vmem:[#allocation4 + $0x18] sm:$0xff] %vm44, 0.0
    %73 = vst.msk [vmem:[#allocation4 + $0x20] sm:$0xff] %vm44, 0.0
    %74 = vst.msk [vmem:[#allocation4 + $0x28] sm:$0xff] %vm44, 0.0
    %75 = vst.msk [vmem:[#allocation4 + $0x30] sm:$0xff] %vm44, 0.0
    %76 = vst.msk [vmem:[#allocation4 + $0x38] sm:$0xff] %vm44, 0.0
    loop: start=0, step=1, limit=8
    $region38: #{tpu_custom_call.1} parent=1 // loop_pre_header
      _
    $region39: #{tpu_custom_call.1} parent=1 // loop_header
      %s78 = sphi 0, %s82
      %p79 = scmp.ge.s32.totalorder %s78, 8
      %v83 = vphi 0.0, %v2789
      %v84 = vphi 0.0, %v2790
    $region40: #{tpu_custom_call.1} parent=1 // loop_header_branch
      %81 = sbr.rel (%p79) target = $region44
    $region41: #{tpu_custom_call.1} parent=1 // loop_body
      %s85 = smul.u32 %s78, 2
      %s86 = scalar_lea.vmem %s0, %s85
      %v87 = vld [vmem:[%s86] sm:$0x3]
      %v90 = vunpack.c.l.s4 1966171168
      %v91 = vunpack.c.0.s8 %v90
      %v92 = vlaneseq
      %v93 = vshrl.u32 %v92, 7
      %v94 = vsub.s32 %v91, %v93
      %v95 = vrot.slane %v87, %v94
      %v96 = vcombine.high %v95, %v95
      %v98 = vunpack.c.l.s4 1966171168
      %v99 = vunpack.c.0.s8 %v98
      %v100 = vlaneseq
      %v101 = vshrl.u32 %v100, 7
      %v102 = vsub.s32 %v99, %v101
      %v103 = vrot.slane %v95, %v102
      %v105 = vunpack.c.l.s4 1966171168
      %v106 = vunpack.c.0.s8 %v105
      %v107 = vlaneseq
      %v108 = vshrl.u32 %v107, 7
      %v109 = vsub.s32 %v106, %v108
      %v110 = vrot.slane %v96, %v109
      %v111 = vld [vmem:[%s1] sm:$0xff]
      %v112 = vld [vmem:[%s1 + $0x8] sm:$0xff]
      %v113 = vld [vmem:[%s1 + $0x10] sm:$0xff]
      %v114 = vld [vmem:[%s1 + $0x18] sm:$0xff]
      %v115 = vlaneseq
      %v116 = vshrl.u32 %v115, 7
      %v117 = vsub.s32 0, %v116
      %v118 = vrot.slane %v103, %v117
      %v119 = vlaneseq
      %v120 = vshrl.u32 %v119, 7
      %v121 = vsub.s32 0, %v120
      %v122 = vrot.slane %v110, %v121
      %v125 = vmul.f32 %v118, %v111
      %v126 = vmul.f32 %v118, %v112
      %v127 = vmul.f32 %v118, %v113
      %v128 = vmul.f32 %v118, %v114
      %v129 = vmul.f32 %v122, %v111
      %v130 = vmul.f32 %v122, %v112
      %v131 = vmul.f32 %v122, %v113
      %v132 = vmul.f32 %v122, %v114
      %v133 = vld [vmem:[%s3] sm:$0xff]
      %v134 = vld [vmem:[%s3 + $0x8] sm:$0xff]
      %v135 = vld [vmem:[%s3 + $0x10] sm:$0xff]
      %v136 = vld [vmem:[%s3 + $0x18] sm:$0xff]
      %v137 = vadd.f32 %v125, %v133
      %v138 = vadd.f32 %v126, %v134
      %v139 = vadd.f32 %v127, %v135
      %v140 = vadd.f32 %v128, %v136
      %v141 = vadd.f32 %v129, %v133
      %v142 = vadd.f32 %v130, %v134
      %v143 = vadd.f32 %v131, %v135
      %v144 = vadd.f32 %v132, %v136
      loop: start=0, step=1, limit=4
      $region45: #{tpu_custom_call.1} parent=41 // loop_pre_header
        _
      $region46: #{tpu_custom_call.1} parent=41 // loop_header
        %s146 = sphi 0, %s150
        %p147 = scmp.ge.s32.totalorder %s146, 4
        %v151 = vphi %v137, %v402
        %v152 = vphi %v138, %v403
        %v153 = vphi %v139, %v404
        %v154 = vphi %v140, %v405
        %v155 = vphi %v141, %v406
        %v156 = vphi %v142, %v407
        %v157 = vphi %v143, %v408
        %v158 = vphi %v144, %v409
      $region47: #{tpu_custom_call.1} parent=41 // loop_header_branch
        %149 = sbr.rel (%p147) target = $region51
      $region48: #{tpu_custom_call.1} parent=41 // loop_body
        %s159 = smul.u32 %s146, 8
        %s160 = scalar_lea.vmem [#allocation2], %s159
        %v161 = vld [vmem:[%s160] sm:$0xff]
        %v162 = vld [vmem:[%s160 + $0x40] sm:$0xff]
        %s163 = smul.u32 %s159, 128
        %s164 = scalar_lea.vmem %s2, %s163
        %v165 = vld [vmem:[%s164] sm:$0xff]
        %v166 = vld [vmem:[%s164 + $0x8] sm:$0xff]
        %v167 = vld [vmem:[%s164 + $0x10] sm:$0xff]
        %v168 = vld [vmem:[%s164 + $0x18] sm:$0xff]
        %v169 = vlaneseq
        %v170 = vshrl.u32 %v169, 7
        %v171 = vsub.s32 0, %v170
        %v172 = vrot.slane %v161, %v171
        %v173 = vlaneseq
        %v174 = vshrl.u32 %v173, 7
        %v175 = vsub.s32 0, %v174
        %v176 = vrot.slane %v162, %v175
        %v177 = vmul.f32 %v172, %v165
        %v178 = vmul.f32 %v172, %v166
        %v179 = vmul.f32 %v172, %v167
        %v180 = vmul.f32 %v172, %v168
        %v181 = vmul.f32 %v176, %v165
        %v182 = vmul.f32 %v176, %v166
        %v183 = vmul.f32 %v176, %v167
        %v184 = vmul.f32 %v176, %v168
        %v185 = vadd.f32 %v151, %v177
        %v186 = vadd.f32 %v152, %v178
        %v187 = vadd.f32 %v153, %v179
        %v188 = vadd.f32 %v154, %v180
        %v189 = vadd.f32 %v155, %v181
        %v190 = vadd.f32 %v156, %v182
        %v191 = vadd.f32 %v157, %v183
        %v192 = vadd.f32 %v158, %v184
        %s193 = sadd.s32 %s159, 1
        %s194 = smul.u32 %s193, 128
        %s195 = scalar_lea.vmem %s2, %s194
        %v196 = vld [vmem:[%s195] sm:$0xff]
        %v197 = vld [vmem:[%s195 + $0x8] sm:$0xff]
        %v198 = vld [vmem:[%s195 + $0x10] sm:$0xff]
        %v199 = vld [vmem:[%s195 + $0x18] sm:$0xff]
        %v200 = vlaneseq
        %v201 = vshrl.u32 %v200, 7
        %v202 = vsub.s32 1, %v201
        %v203 = vrot.slane %v161, %v202
        %v204 = vlaneseq
        %v205 = vshrl.u32 %v204, 7
        %v206 = vsub.s32 1, %v205
        %v207 = vrot.slane %v162, %v206
        %v208 = vmul.f32 %v203, %v196
        %v209 = vmul.f32 %v203, %v197
        %v210 = vmul.f32 %v203, %v198
        %v211 = vmul.f32 %v203, %v199
        %v212 = vmul.f32 %v207, %v196
        %v213 = vmul.f32 %v207, %v197
        %v214 = vmul.f32 %v207, %v198
        %v215 = vmul.f32 %v207, %v199
        %v216 = vadd.f32 %v185, %v208
        %v217 = vadd.f32 %v186, %v209
        %v218 = vadd.f32 %v187, %v210
        %v219 = vadd.f32 %v188, %v211
        %v220 = vadd.f32 %v189, %v212
        %v221 = vadd.f32 %v190, %v213
        %v222 = vadd.f32 %v191, %v214
        %v223 = vadd.f32 %v192, %v215
        %s224 = sadd.s32 %s159, 2
        %s225 = smul.u32 %s224, 128
        %s226 = scalar_lea.vmem %s2, %s225
        %v227 = vld [vmem:[%s226] sm:$0xff]
        %v228 = vld [vmem:[%s226 + $0x8] sm:$0xff]
        %v229 = vld [vmem:[%s226 + $0x10] sm:$0xff]
        %v230 = vld [vmem:[%s226 + $0x18] sm:$0xff]
        %v231 = vlaneseq
        %v232 = vshrl.u32 %v231, 7
        %v233 = vsub.s32 2, %v232
        %v234 = vrot.slane %v161, %v233
        %v235 = vlaneseq
        %v236 = vshrl.u32 %v235, 7
        %v237 = vsub.s32 2, %v236
        %v238 = vrot.slane %v162, %v237
        %v239 = vmul.f32 %v234, %v227
        %v240 = vmul.f32 %v234, %v228
        %v241 = vmul.f32 %v234, %v229
        %v242 = vmul.f32 %v234, %v230
        %v243 = vmul.f32 %v238, %v227
        %v244 = vmul.f32 %v238, %v228
        %v245 = vmul.f32 %v238, %v229
        %v246 = vmul.f32 %v238, %v230
        %v247 = vadd.f32 %v216, %v239
        %v248 = vadd.f32 %v217, %v240
        %v249 = vadd.f32 %v218, %v241
        %v250 = vadd.f32 %v219, %v242
        %v251 = vadd.f32 %v220, %v243
        %v252 = vadd.f32 %v221, %v244
        %v253 = vadd.f32 %v222, %v245
        %v254 = vadd.f32 %v223, %v246
        %s255 = sadd.s32 %s159, 3
        %s256 = smul.u32 %s255, 128
        %s257 = scalar_lea.vmem %s2, %s256
        %v258 = vld [vmem:[%s257] sm:$0xff]
        %v259 = vld [vmem:[%s257 + $0x8] sm:$0xff]
        %v260 = vld [vmem:[%s257 + $0x10] sm:$0xff]
        %v261 = vld [vmem:[%s257 + $0x18] sm:$0xff]
        %v262 = vlaneseq
        %v263 = vshrl.u32 %v262, 7
        %v264 = vsub.s32 3, %v263
        %v265 = vrot.slane %v161, %v264
        %v266 = vlaneseq
        %v267 = vshrl.u32 %v266, 7
        %v268 = vsub.s32 3, %v267
        %v269 = vrot.slane %v162, %v268
        %v270 = vmul.f32 %v265, %v258
        %v271 = vmul.f32 %v265, %v259
        %v272 = vmul.f32 %v265, %v260
        %v273 = vmul.f32 %v265, %v261
        %v274 = vmul.f32 %v269, %v258
        %v275 = vmul.f32 %v269, %v259
        %v276 = vmul.f32 %v269, %v260
        %v277 = vmul.f32 %v269, %v261
        %v278 = vadd.f32 %v247, %v270
        %v279 = vadd.f32 %v248, %v271
        %v280 = vadd.f32 %v249, %v272
        %v281 = vadd.f32 %v250, %v273
        %v282 = vadd.f32 %v251, %v274
        %v283 = vadd.f32 %v252, %v275
        %v284 = vadd.f32 %v253, %v276
        %v285 = vadd.f32 %v254, %v277
        %s286 = sadd.s32 %s159, 4
        %s287 = smul.u32 %s286, 128
        %s288 = scalar_lea.vmem %s2, %s287
        %v289 = vld [vmem:[%s288] sm:$0xff]
        %v290 = vld [vmem:[%s288 + $0x8] sm:$0xff]
        %v291 = vld [vmem:[%s288 + $0x10] sm:$0xff]
        %v292 = vld [vmem:[%s288 + $0x18] sm:$0xff]
        %v293 = vlaneseq
        %v294 = vshrl.u32 %v293, 7
        %v295 = vsub.s32 4, %v294
        %v296 = vrot.slane %v161, %v295
        %v297 = vlaneseq
        %v298 = vshrl.u32 %v297, 7
        %v299 = vsub.s32 4, %v298
        %v300 = vrot.slane %v162, %v299
        %v301 = vmul.f32 %v296, %v289
        %v302 = vmul.f32 %v296, %v290
        %v303 = vmul.f32 %v296, %v291
        %v304 = vmul.f32 %v296, %v292
        %v305 = vmul.f32 %v300, %v289
        %v306 = vmul.f32 %v300, %v290
        %v307 = vmul.f32 %v300, %v291
        %v308 = vmul.f32 %v300, %v292
        %v309 = vadd.f32 %v278, %v301
        %v310 = vadd.f32 %v279, %v302
        %v311 = vadd.f32 %v280, %v303
        %v312 = vadd.f32 %v281, %v304
        %v313 = vadd.f32 %v282, %v305
        %v314 = vadd.f32 %v283, %v306
        %v315 = vadd.f32 %v284, %v307
        %v316 = vadd.f32 %v285, %v308
        %s317 = sadd.s32 %s159, 5
        %s318 = smul.u32 %s317, 128
        %s319 = scalar_lea.vmem %s2, %s318
        %v320 = vld [vmem:[%s319] sm:$0xff]
        %v321 = vld [vmem:[%s319 + $0x8] sm:$0xff]
        %v322 = vld [vmem:[%s319 + $0x10] sm:$0xff]
        %v323 = vld [vmem:[%s319 + $0x18] sm:$0xff]
        %v324 = vlaneseq
        %v325 = vshrl.u32 %v324, 7
        %v326 = vsub.s32 5, %v325
        %v327 = vrot.slane %v161, %v326
        %v328 = vlaneseq
        %v329 = vshrl.u32 %v328, 7
        %v330 = vsub.s32 5, %v329
        %v331 = vrot.slane %v162, %v330
        %v332 = vmul.f32 %v327, %v320
        %v333 = vmul.f32 %v327, %v321
        %v334 = vmul.f32 %v327, %v322
        %v335 = vmul.f32 %v327, %v323
        %v336 = vmul.f32 %v331, %v320
        %v337 = vmul.f32 %v331, %v321
        %v338 = vmul.f32 %v331, %v322
        %v339 = vmul.f32 %v331, %v323
        %v340 = vadd.f32 %v309, %v332
        %v341 = vadd.f32 %v310, %v333
        %v342 = vadd.f32 %v311, %v334
        %v343 = vadd.f32 %v312, %v335
        %v344 = vadd.f32 %v313, %v336
        %v345 = vadd.f32 %v314, %v337
        %v346 = vadd.f32 %v315, %v338
        %v347 = vadd.f32 %v316, %v339
        %s348 = sadd.s32 %s159, 6
        %s349 = smul.u32 %s348, 128
        %s350 = scalar_lea.vmem %s2, %s349
        %v351 = vld [vmem:[%s350] sm:$0xff]
        %v352 = vld [vmem:[%s350 + $0x8] sm:$0xff]
        %v353 = vld [vmem:[%s350 + $0x10] sm:$0xff]
        %v354 = vld [vmem:[%s350 + $0x18] sm:$0xff]
        %v355 = vlaneseq
        %v356 = vshrl.u32 %v355, 7
        %v357 = vsub.s32 6, %v356
        %v358 = vrot.slane %v161, %v357
        %v359 = vlaneseq
        %v360 = vshrl.u32 %v359, 7
        %v361 = vsub.s32 6, %v360
        %v362 = vrot.slane %v162, %v361
        %v363 = vmul.f32 %v358, %v351
        %v364 = vmul.f32 %v358, %v352
        %v365 = vmul.f32 %v358, %v353
        %v366 = vmul.f32 %v358, %v354
        %v367 = vmul.f32 %v362, %v351
        %v368 = vmul.f32 %v362, %v352
        %v369 = vmul.f32 %v362, %v353
        %v370 = vmul.f32 %v362, %v354
        %v371 = vadd.f32 %v340, %v363
        %v372 = vadd.f32 %v341, %v364
        %v373 = vadd.f32 %v342, %v365
        %v374 = vadd.f32 %v343, %v366
        %v375 = vadd.f32 %v344, %v367
        %v376 = vadd.f32 %v345, %v368
        %v377 = vadd.f32 %v346, %v369
        %v378 = vadd.f32 %v347, %v370
        %s379 = sadd.s32 %s159, 7
        %s380 = smul.u32 %s379, 128
        %s381 = scalar_lea.vmem %s2, %s380
        %v382 = vld [vmem:[%s381] sm:$0xff]
        %v383 = vld [vmem:[%s381 + $0x8] sm:$0xff]
        %v384 = vld [vmem:[%s381 + $0x10] sm:$0xff]
        %v385 = vld [vmem:[%s381 + $0x18] sm:$0xff]
        %v386 = vlaneseq
        %v387 = vshrl.u32 %v386, 7
        %v388 = vsub.s32 7, %v387
        %v389 = vrot.slane %v161, %v388
        %v390 = vlaneseq
        %v391 = vshrl.u32 %v390, 7
        %v392 = vsub.s32 7, %v391
        %v393 = vrot.slane %v162, %v392
        %v394 = vmul.f32 %v389, %v382
        %v395 = vmul.f32 %v389, %v383
        %v396 = vmul.f32 %v389, %v384
        %v397 = vmul.f32 %v389, %v385
        %v398 = vmul.f32 %v393, %v382
        %v399 = vmul.f32 %v393, %v383
        %v400 = vmul.f32 %v393, %v384
        %v401 = vmul.f32 %v393, %v385
        %v402 = vadd.f32 %v371, %v394
        %v403 = vadd.f32 %v372, %v395
        %v404 = vadd.f32 %v373, %v396
        %v405 = vadd.f32 %v374, %v397
        %v406 = vadd.f32 %v375, %v398
        %v407 = vadd.f32 %v376, %v399
        %v408 = vadd.f32 %v377, %v400
        %v409 = vadd.f32 %v378, %v401
      $region49: #{tpu_custom_call.1} parent=41 // loop_footer
        %s150 = sadd.s32 1, %s146
      $region50: #{tpu_custom_call.1} parent=41 // loop_footer_branch
        %145 = sbr.rel target = $region46
      $region51: #{tpu_custom_call.1} parent=41 // loop_exit
        _
      %v410 = vxor.u32 %v151, 2147483648
      %v411 = vxor.u32 %v152, 2147483648
      %v412 = vxor.u32 %v153, 2147483648
      %v413 = vxor.u32 %v154, 2147483648
      %v414 = vxor.u32 %v155, 2147483648
      %v415 = vxor.u32 %v156, 2147483648
      %v416 = vxor.u32 %v157, 2147483648
      %v417 = vxor.u32 %v158, 2147483648
      %v418 = vmul.f32 %v410, 1.442695
      %v419 = vpow.pop %v418
      %v420 = vmul.f32 %v411, 1.442695
      %v421 = vpow.pop %v420
      %v422 = vmul.f32 %v412, 1.442695
      %v423 = vpow.pop %v422
      %v424 = vmul.f32 %v413, 1.442695
      %v425 = vpow.pop %v424
      %v426 = vmul.f32 %v414, 1.442695
      %v427 = vpow.pop %v426
      %v428 = vmul.f32 %v415, 1.442695
      %v429 = vpow.pop %v428
      %v430 = vmul.f32 %v416, 1.442695
      %v431 = vpow.pop %v430
      %v432 = vmul.f32 %v417, 1.442695
      %v433 = vpow.pop %v432
      %v434 = vadd.f32 %v419, 1.0
      %v435 = vadd.f32 %v421, 1.0
      %v436 = vadd.f32 %v423, 1.0
      %v437 = vadd.f32 %v425, 1.0
      %v438 = vadd.f32 %v427, 1.0
      %v439 = vadd.f32 %v429, 1.0
      %v440 = vadd.f32 %v431, 1.0
      %v441 = vadd.f32 %v433, 1.0
      %v442 = vrcp.pop %v434
      %v443 = vmul.f32 1.0, %v442
      %v444 = vrcp.pop %v435
      %v445 = vmul.f32 1.0, %v444
      %v446 = vrcp.pop %v436
      %v447 = vmul.f32 1.0, %v446
      %v448 = vrcp.pop %v437
      %v449 = vmul.f32 1.0, %v448
      %v450 = vrcp.pop %v438
      %v451 = vmul.f32 1.0, %v450
      %v452 = vrcp.pop %v439
      %v453 = vmul.f32 1.0, %v452
      %v454 = vrcp.pop %v440
      %v455 = vmul.f32 1.0, %v454
      %v456 = vrcp.pop %v441
      %v457 = vmul.f32 1.0, %v456
      %v458 = vld [vmem:[%s1 + $0x40] sm:$0xff]
      %v459 = vld [vmem:[%s1 + $0x48] sm:$0xff]
      %v460 = vld [vmem:[%s1 + $0x50] sm:$0xff]
      %v461 = vld [vmem:[%s1 + $0x58] sm:$0xff]
      %v462 = vmul.f32 %v118, %v458
      %v463 = vmul.f32 %v118, %v459
      %v464 = vmul.f32 %v118, %v460
      %v465 = vmul.f32 %v118, %v461
      %v466 = vmul.f32 %v122, %v458
      %v467 = vmul.f32 %v122, %v459
      %v468 = vmul.f32 %v122, %v460
      %v469 = vmul.f32 %v122, %v461
      %v470 = vld [vmem:[%s3 + $0x40] sm:$0xff]
      %v471 = vld [vmem:[%s3 + $0x48] sm:$0xff]
      %v472 = vld [vmem:[%s3 + $0x50] sm:$0xff]
      %v473 = vld [vmem:[%s3 + $0x58] sm:$0xff]
      %v474 = vadd.f32 %v462, %v470
      %v475 = vadd.f32 %v463, %v471
      %v476 = vadd.f32 %v464, %v472
      %v477 = vadd.f32 %v465, %v473
      %v478 = vadd.f32 %v466, %v470
      %v479 = vadd.f32 %v467, %v471
      %v480 = vadd.f32 %v468, %v472
      %v481 = vadd.f32 %v469, %v473
      loop: start=0, step=1, limit=4
      $region52: #{tpu_custom_call.1} parent=41 // loop_pre_header
        _
      $region53: #{tpu_custom_call.1} parent=41 // loop_header
        %s483 = sphi 0, %s487
        %p484 = scmp.ge.s32.totalorder %s483, 4
        %v488 = vphi %v474, %v739
        %v489 = vphi %v475, %v740
        %v490 = vphi %v476, %v741
        %v491 = vphi %v477, %v742
        %v492 = vphi %v478, %v743
        %v493 = vphi %v479, %v744
        %v494 = vphi %v480, %v745
        %v495 = vphi %v481, %v746
      $region54: #{tpu_custom_call.1} parent=41 // loop_header_branch
        %486 = sbr.rel (%p484) target = $region58
      $region55: #{tpu_custom_call.1} parent=41 // loop_body
        %s496 = smul.u32 %s483, 8
        %s497 = scalar_lea.vmem [#allocation2], %s496
        %v498 = vld [vmem:[%s497] sm:$0xff]
        %v499 = vld [vmem:[%s497 + $0x40] sm:$0xff]
        %s500 = smul.u32 %s496, 128
        %s501 = scalar_lea.vmem %s2, %s500
        %v502 = vld [vmem:[%s501 + $0x40] sm:$0xff]
        %v503 = vld [vmem:[%s501 + $0x48] sm:$0xff]
        %v504 = vld [vmem:[%s501 + $0x50] sm:$0xff]
        %v505 = vld [vmem:[%s501 + $0x58] sm:$0xff]
        %v506 = vlaneseq
        %v507 = vshrl.u32 %v506, 7
        %v508 = vsub.s32 0, %v507
        %v509 = vrot.slane %v498, %v508
        %v510 = vlaneseq
        %v511 = vshrl.u32 %v510, 7
        %v512 = vsub.s32 0, %v511
        %v513 = vrot.slane %v499, %v512
        %v514 = vmul.f32 %v509, %v502
        %v515 = vmul.f32 %v509, %v503
        %v516 = vmul.f32 %v509, %v504
        %v517 = vmul.f32 %v509, %v505
        %v518 = vmul.f32 %v513, %v502
        %v519 = vmul.f32 %v513, %v503
        %v520 = vmul.f32 %v513, %v504
        %v521 = vmul.f32 %v513, %v505
        %v522 = vadd.f32 %v488, %v514
        %v523 = vadd.f32 %v489, %v515
        %v524 = vadd.f32 %v490, %v516
        %v525 = vadd.f32 %v491, %v517
        %v526 = vadd.f32 %v492, %v518
        %v527 = vadd.f32 %v493, %v519
        %v528 = vadd.f32 %v494, %v520
        %v529 = vadd.f32 %v495, %v521
        %s530 = sadd.s32 %s496, 1
        %s531 = smul.u32 %s530, 128
        %s532 = scalar_lea.vmem %s2, %s531
        %v533 = vld [vmem:[%s532 + $0x40] sm:$0xff]
        %v534 = vld [vmem:[%s532 + $0x48] sm:$0xff]
        %v535 = vld [vmem:[%s532 + $0x50] sm:$0xff]
        %v536 = vld [vmem:[%s532 + $0x58] sm:$0xff]
        %v537 = vlaneseq
        %v538 = vshrl.u32 %v537, 7
        %v539 = vsub.s32 1, %v538
        %v540 = vrot.slane %v498, %v539
        %v541 = vlaneseq
        %v542 = vshrl.u32 %v541, 7
        %v543 = vsub.s32 1, %v542
        %v544 = vrot.slane %v499, %v543
        %v545 = vmul.f32 %v540, %v533
        %v546 = vmul.f32 %v540, %v534
        %v547 = vmul.f32 %v540, %v535
        %v548 = vmul.f32 %v540, %v536
        %v549 = vmul.f32 %v544, %v533
        %v550 = vmul.f32 %v544, %v534
        %v551 = vmul.f32 %v544, %v535
        %v552 = vmul.f32 %v544, %v536
        %v553 = vadd.f32 %v522, %v545
        %v554 = vadd.f32 %v523, %v546
        %v555 = vadd.f32 %v524, %v547
        %v556 = vadd.f32 %v525, %v548
        %v557 = vadd.f32 %v526, %v549
        %v558 = vadd.f32 %v527, %v550
        %v559 = vadd.f32 %v528, %v551
        %v560 = vadd.f32 %v529, %v552
        %s561 = sadd.s32 %s496, 2
        %s562 = smul.u32 %s561, 128
        %s563 = scalar_lea.vmem %s2, %s562
        %v564 = vld [vmem:[%s563 + $0x40] sm:$0xff]
        %v565 = vld [vmem:[%s563 + $0x48] sm:$0xff]
        %v566 = vld [vmem:[%s563 + $0x50] sm:$0xff]
        %v567 = vld [vmem:[%s563 + $0x58] sm:$0xff]
        %v568 = vlaneseq
        %v569 = vshrl.u32 %v568, 7
        %v570 = vsub.s32 2, %v569
        %v571 = vrot.slane %v498, %v570
        %v572 = vlaneseq
        %v573 = vshrl.u32 %v572, 7
        %v574 = vsub.s32 2, %v573
        %v575 = vrot.slane %v499, %v574
        %v576 = vmul.f32 %v571, %v564
        %v577 = vmul.f32 %v571, %v565
        %v578 = vmul.f32 %v571, %v566
        %v579 = vmul.f32 %v571, %v567
        %v580 = vmul.f32 %v575, %v564
        %v581 = vmul.f32 %v575, %v565
        %v582 = vmul.f32 %v575, %v566
        %v583 = vmul.f32 %v575, %v567
        %v584 = vadd.f32 %v553, %v576
        %v585 = vadd.f32 %v554, %v577
        %v586 = vadd.f32 %v555, %v578
        %v587 = vadd.f32 %v556, %v579
        %v588 = vadd.f32 %v557, %v580
        %v589 = vadd.f32 %v558, %v581
        %v590 = vadd.f32 %v559, %v582
        %v591 = vadd.f32 %v560, %v583
        %s592 = sadd.s32 %s496, 3
        %s593 = smul.u32 %s592, 128
        %s594 = scalar_lea.vmem %s2, %s593
        %v595 = vld [vmem:[%s594 + $0x40] sm:$0xff]
        %v596 = vld [vmem:[%s594 + $0x48] sm:$0xff]
        %v597 = vld [vmem:[%s594 + $0x50] sm:$0xff]
        %v598 = vld [vmem:[%s594 + $0x58] sm:$0xff]
        %v599 = vlaneseq
        %v600 = vshrl.u32 %v599, 7
        %v601 = vsub.s32 3, %v600
        %v602 = vrot.slane %v498, %v601
        %v603 = vlaneseq
        %v604 = vshrl.u32 %v603, 7
        %v605 = vsub.s32 3, %v604
        %v606 = vrot.slane %v499, %v605
        %v607 = vmul.f32 %v602, %v595
        %v608 = vmul.f32 %v602, %v596
        %v609 = vmul.f32 %v602, %v597
        %v610 = vmul.f32 %v602, %v598
        %v611 = vmul.f32 %v606, %v595
        %v612 = vmul.f32 %v606, %v596
        %v613 = vmul.f32 %v606, %v597
        %v614 = vmul.f32 %v606, %v598
        %v615 = vadd.f32 %v584, %v607
        %v616 = vadd.f32 %v585, %v608
        %v617 = vadd.f32 %v586, %v609
        %v618 = vadd.f32 %v587, %v610
        %v619 = vadd.f32 %v588, %v611
        %v620 = vadd.f32 %v589, %v612
        %v621 = vadd.f32 %v590, %v613
        %v622 = vadd.f32 %v591, %v614
        %s623 = sadd.s32 %s496, 4
        %s624 = smul.u32 %s623, 128
        %s625 = scalar_lea.vmem %s2, %s624
        %v626 = vld [vmem:[%s625 + $0x40] sm:$0xff]
        %v627 = vld [vmem:[%s625 + $0x48] sm:$0xff]
        %v628 = vld [vmem:[%s625 + $0x50] sm:$0xff]
        %v629 = vld [vmem:[%s625 + $0x58] sm:$0xff]
        %v630 = vlaneseq
        %v631 = vshrl.u32 %v630, 7
        %v632 = vsub.s32 4, %v631
        %v633 = vrot.slane %v498, %v632
        %v634 = vlaneseq
        %v635 = vshrl.u32 %v634, 7
        %v636 = vsub.s32 4, %v635
        %v637 = vrot.slane %v499, %v636
        %v638 = vmul.f32 %v633, %v626
        %v639 = vmul.f32 %v633, %v627
        %v640 = vmul.f32 %v633, %v628
        %v641 = vmul.f32 %v633, %v629
        %v642 = vmul.f32 %v637, %v626
        %v643 = vmul.f32 %v637, %v627
        %v644 = vmul.f32 %v637, %v628
        %v645 = vmul.f32 %v637, %v629
        %v646 = vadd.f32 %v615, %v638
        %v647 = vadd.f32 %v616, %v639
        %v648 = vadd.f32 %v617, %v640
        %v649 = vadd.f32 %v618, %v641
        %v650 = vadd.f32 %v619, %v642
        %v651 = vadd.f32 %v620, %v643
        %v652 = vadd.f32 %v621, %v644
        %v653 = vadd.f32 %v622, %v645
        %s654 = sadd.s32 %s496, 5
        %s655 = smul.u32 %s654, 128
        %s656 = scalar_lea.vmem %s2, %s655
        %v657 = vld [vmem:[%s656 + $0x40] sm:$0xff]
        %v658 = vld [vmem:[%s656 + $0x48] sm:$0xff]
        %v659 = vld [vmem:[%s656 + $0x50] sm:$0xff]
        %v660 = vld [vmem:[%s656 + $0x58] sm:$0xff]
        %v661 = vlaneseq
        %v662 = vshrl.u32 %v661, 7
        %v663 = vsub.s32 5, %v662
        %v664 = vrot.slane %v498, %v663
        %v665 = vlaneseq
        %v666 = vshrl.u32 %v665, 7
        %v667 = vsub.s32 5, %v666
        %v668 = vrot.slane %v499, %v667
        %v669 = vmul.f32 %v664, %v657
        %v670 = vmul.f32 %v664, %v658
        %v671 = vmul.f32 %v664, %v659
        %v672 = vmul.f32 %v664, %v660
        %v673 = vmul.f32 %v668, %v657
        %v674 = vmul.f32 %v668, %v658
        %v675 = vmul.f32 %v668, %v659
        %v676 = vmul.f32 %v668, %v660
        %v677 = vadd.f32 %v646, %v669
        %v678 = vadd.f32 %v647, %v670
        %v679 = vadd.f32 %v648, %v671
        %v680 = vadd.f32 %v649, %v672
        %v681 = vadd.f32 %v650, %v673
        %v682 = vadd.f32 %v651, %v674
        %v683 = vadd.f32 %v652, %v675
        %v684 = vadd.f32 %v653, %v676
        %s685 = sadd.s32 %s496, 6
        %s686 = smul.u32 %s685, 128
        %s687 = scalar_lea.vmem %s2, %s686
        %v688 = vld [vmem:[%s687 + $0x40] sm:$0xff]
        %v689 = vld [vmem:[%s687 + $0x48] sm:$0xff]
        %v690 = vld [vmem:[%s687 + $0x50] sm:$0xff]
        %v691 = vld [vmem:[%s687 + $0x58] sm:$0xff]
        %v692 = vlaneseq
        %v693 = vshrl.u32 %v692, 7
        %v694 = vsub.s32 6, %v693
        %v695 = vrot.slane %v498, %v694
        %v696 = vlaneseq
        %v697 = vshrl.u32 %v696, 7
        %v698 = vsub.s32 6, %v697
        %v699 = vrot.slane %v499, %v698
        %v700 = vmul.f32 %v695, %v688
        %v701 = vmul.f32 %v695, %v689
        %v702 = vmul.f32 %v695, %v690
        %v703 = vmul.f32 %v695, %v691
        %v704 = vmul.f32 %v699, %v688
        %v705 = vmul.f32 %v699, %v689
        %v706 = vmul.f32 %v699, %v690
        %v707 = vmul.f32 %v699, %v691
        %v708 = vadd.f32 %v677, %v700
        %v709 = vadd.f32 %v678, %v701
        %v710 = vadd.f32 %v679, %v702
        %v711 = vadd.f32 %v680, %v703
        %v712 = vadd.f32 %v681, %v704
        %v713 = vadd.f32 %v682, %v705
        %v714 = vadd.f32 %v683, %v706
        %v715 = vadd.f32 %v684, %v707
        %s716 = sadd.s32 %s496, 7
        %s717 = smul.u32 %s716, 128
        %s718 = scalar_lea.vmem %s2, %s717
        %v719 = vld [vmem:[%s718 + $0x40] sm:$0xff]
        %v720 = vld [vmem:[%s718 + $0x48] sm:$0xff]
        %v721 = vld [vmem:[%s718 + $0x50] sm:$0xff]
        %v722 = vld [vmem:[%s718 + $0x58] sm:$0xff]
        %v723 = vlaneseq
        %v724 = vshrl.u32 %v723, 7
        %v725 = vsub.s32 7, %v724
        %v726 = vrot.slane %v498, %v725
        %v727 = vlaneseq
        %v728 = vshrl.u32 %v727, 7
        %v729 = vsub.s32 7, %v728
        %v730 = vrot.slane %v499, %v729
        %v731 = vmul.f32 %v726, %v719
        %v732 = vmul.f32 %v726, %v720
        %v733 = vmul.f32 %v726, %v721
        %v734 = vmul.f32 %v726, %v722
        %v735 = vmul.f32 %v730, %v719
        %v736 = vmul.f32 %v730, %v720
        %v737 = vmul.f32 %v730, %v721
        %v738 = vmul.f32 %v730, %v722
        %v739 = vadd.f32 %v708, %v731
        %v740 = vadd.f32 %v709, %v732
        %v741 = vadd.f32 %v710, %v733
        %v742 = vadd.f32 %v711, %v734
        %v743 = vadd.f32 %v712, %v735
        %v744 = vadd.f32 %v713, %v736
        %v745 = vadd.f32 %v714, %v737
        %v746 = vadd.f32 %v715, %v738
      $region56: #{tpu_custom_call.1} parent=41 // loop_footer
        %s487 = sadd.s32 1, %s483
      $region57: #{tpu_custom_call.1} parent=41 // loop_footer_branch
        %482 = sbr.rel target = $region53
      $region58: #{tpu_custom_call.1} parent=41 // loop_exit
        _
      %v747 = vtanh.pop %v488
      %v748 = vtanh.pop %v489
      %v749 = vtanh.pop %v490
      %v750 = vtanh.pop %v491
      %v751 = vtanh.pop %v492
      %v752 = vtanh.pop %v493
      %v753 = vtanh.pop %v494
      %v754 = vtanh.pop %v495
      %v755 = vmul.f32 %v443, %v747
      %v756 = vmul.f32 %v445, %v748
      %v757 = vmul.f32 %v447, %v749
      %v758 = vmul.f32 %v449, %v750
      %v759 = vmul.f32 %v451, %v751
      %v760 = vmul.f32 %v453, %v752
      %v761 = vmul.f32 %v455, %v753
      %v762 = vmul.f32 %v457, %v754
      %v763 = vld [vmem:[%s1 + $0x20] sm:$0xff]
      %v764 = vld [vmem:[%s1 + $0x28] sm:$0xff]
      %v765 = vld [vmem:[%s1 + $0x30] sm:$0xff]
      %v766 = vld [vmem:[%s1 + $0x38] sm:$0xff]
      %v767 = vmul.f32 %v118, %v763
      %v768 = vmul.f32 %v118, %v764
      %v769 = vmul.f32 %v118, %v765
      %v770 = vmul.f32 %v118, %v766
      %v771 = vmul.f32 %v122, %v763
      %v772 = vmul.f32 %v122, %v764
      %v773 = vmul.f32 %v122, %v765
      %v774 = vmul.f32 %v122, %v766
      %v775 = vld [vmem:[%s3 + $0x20] sm:$0xff]
      %v776 = vld [vmem:[%s3 + $0x28] sm:$0xff]
      %v777 = vld [vmem:[%s3 + $0x30] sm:$0xff]
      %v778 = vld [vmem:[%s3 + $0x38] sm:$0xff]
      %v779 = vadd.f32 %v767, %v775
      %v780 = vadd.f32 %v768, %v776
      %v781 = vadd.f32 %v769, %v777
      %v782 = vadd.f32 %v770, %v778
      %v783 = vadd.f32 %v771, %v775
      %v784 = vadd.f32 %v772, %v776
      %v785 = vadd.f32 %v773, %v777
      %v786 = vadd.f32 %v774, %v778
      loop: start=0, step=1, limit=4
      $region59: #{tpu_custom_call.1} parent=41 // loop_pre_header
        _
      $region60: #{tpu_custom_call.1} parent=41 // loop_header
        %s788 = sphi 0, %s792
        %p789 = scmp.ge.s32.totalorder %s788, 4
        %v793 = vphi %v779, %v1044
        %v794 = vphi %v780, %v1045
        %v795 = vphi %v781, %v1046
        %v796 = vphi %v782, %v1047
        %v797 = vphi %v783, %v1048
        %v798 = vphi %v784, %v1049
        %v799 = vphi %v785, %v1050
        %v800 = vphi %v786, %v1051
      $region61: #{tpu_custom_call.1} parent=41 // loop_header_branch
        %791 = sbr.rel (%p789) target = $region65
      $region62: #{tpu_custom_call.1} parent=41 // loop_body
        %s801 = smul.u32 %s788, 8
        %s802 = scalar_lea.vmem [#allocation2], %s801
        %v803 = vld [vmem:[%s802] sm:$0xff]
        %v804 = vld [vmem:[%s802 + $0x40] sm:$0xff]
        %s805 = smul.u32 %s801, 128
        %s806 = scalar_lea.vmem %s2, %s805
        %v807 = vld [vmem:[%s806 + $0x20] sm:$0xff]
        %v808 = vld [vmem:[%s806 + $0x28] sm:$0xff]
        %v809 = vld [vmem:[%s806 + $0x30] sm:$0xff]
        %v810 = vld [vmem:[%s806 + $0x38] sm:$0xff]
        %v811 = vlaneseq
        %v812 = vshrl.u32 %v811, 7
        %v813 = vsub.s32 0, %v812
        %v814 = vrot.slane %v803, %v813
        %v815 = vlaneseq
        %v816 = vshrl.u32 %v815, 7
        %v817 = vsub.s32 0, %v816
        %v818 = vrot.slane %v804, %v817
        %v819 = vmul.f32 %v814, %v807
        %v820 = vmul.f32 %v814, %v808
        %v821 = vmul.f32 %v814, %v809
        %v822 = vmul.f32 %v814, %v810
        %v823 = vmul.f32 %v818, %v807
        %v824 = vmul.f32 %v818, %v808
        %v825 = vmul.f32 %v818, %v809
        %v826 = vmul.f32 %v818, %v810
        %v827 = vadd.f32 %v793, %v819
        %v828 = vadd.f32 %v794, %v820
        %v829 = vadd.f32 %v795, %v821
        %v830 = vadd.f32 %v796, %v822
        %v831 = vadd.f32 %v797, %v823
        %v832 = vadd.f32 %v798, %v824
        %v833 = vadd.f32 %v799, %v825
        %v834 = vadd.f32 %v800, %v826
        %s835 = sadd.s32 %s801, 1
        %s836 = smul.u32 %s835, 128
        %s837 = scalar_lea.vmem %s2, %s836
        %v838 = vld [vmem:[%s837 + $0x20] sm:$0xff]
        %v839 = vld [vmem:[%s837 + $0x28] sm:$0xff]
        %v840 = vld [vmem:[%s837 + $0x30] sm:$0xff]
        %v841 = vld [vmem:[%s837 + $0x38] sm:$0xff]
        %v842 = vlaneseq
        %v843 = vshrl.u32 %v842, 7
        %v844 = vsub.s32 1, %v843
        %v845 = vrot.slane %v803, %v844
        %v846 = vlaneseq
        %v847 = vshrl.u32 %v846, 7
        %v848 = vsub.s32 1, %v847
        %v849 = vrot.slane %v804, %v848
        %v850 = vmul.f32 %v845, %v838
        %v851 = vmul.f32 %v845, %v839
        %v852 = vmul.f32 %v845, %v840
        %v853 = vmul.f32 %v845, %v841
        %v854 = vmul.f32 %v849, %v838
        %v855 = vmul.f32 %v849, %v839
        %v856 = vmul.f32 %v849, %v840
        %v857 = vmul.f32 %v849, %v841
        %v858 = vadd.f32 %v827, %v850
        %v859 = vadd.f32 %v828, %v851
        %v860 = vadd.f32 %v829, %v852
        %v861 = vadd.f32 %v830, %v853
        %v862 = vadd.f32 %v831, %v854
        %v863 = vadd.f32 %v832, %v855
        %v864 = vadd.f32 %v833, %v856
        %v865 = vadd.f32 %v834, %v857
        %s866 = sadd.s32 %s801, 2
        %s867 = smul.u32 %s866, 128
        %s868 = scalar_lea.vmem %s2, %s867
        %v869 = vld [vmem:[%s868 + $0x20] sm:$0xff]
        %v870 = vld [vmem:[%s868 + $0x28] sm:$0xff]
        %v871 = vld [vmem:[%s868 + $0x30] sm:$0xff]
        %v872 = vld [vmem:[%s868 + $0x38] sm:$0xff]
        %v873 = vlaneseq
        %v874 = vshrl.u32 %v873, 7
        %v875 = vsub.s32 2, %v874
        %v876 = vrot.slane %v803, %v875
        %v877 = vlaneseq
        %v878 = vshrl.u32 %v877, 7
        %v879 = vsub.s32 2, %v878
        %v880 = vrot.slane %v804, %v879
        %v881 = vmul.f32 %v876, %v869
        %v882 = vmul.f32 %v876, %v870
        %v883 = vmul.f32 %v876, %v871
        %v884 = vmul.f32 %v876, %v872
        %v885 = vmul.f32 %v880, %v869
        %v886 = vmul.f32 %v880, %v870
        %v887 = vmul.f32 %v880, %v871
        %v888 = vmul.f32 %v880, %v872
        %v889 = vadd.f32 %v858, %v881
        %v890 = vadd.f32 %v859, %v882
        %v891 = vadd.f32 %v860, %v883
        %v892 = vadd.f32 %v861, %v884
        %v893 = vadd.f32 %v862, %v885
        %v894 = vadd.f32 %v863, %v886
        %v895 = vadd.f32 %v864, %v887
        %v896 = vadd.f32 %v865, %v888
        %s897 = sadd.s32 %s801, 3
        %s898 = smul.u32 %s897, 128
        %s899 = scalar_lea.vmem %s2, %s898
        %v900 = vld [vmem:[%s899 + $0x20] sm:$0xff]
        %v901 = vld [vmem:[%s899 + $0x28] sm:$0xff]
        %v902 = vld [vmem:[%s899 + $0x30] sm:$0xff]
        %v903 = vld [vmem:[%s899 + $0x38] sm:$0xff]
        %v904 = vlaneseq
        %v905 = vshrl.u32 %v904, 7
        %v906 = vsub.s32 3, %v905
        %v907 = vrot.slane %v803, %v906
        %v908 = vlaneseq
        %v909 = vshrl.u32 %v908, 7
        %v910 = vsub.s32 3, %v909
        %v911 = vrot.slane %v804, %v910
        %v912 = vmul.f32 %v907, %v900
        %v913 = vmul.f32 %v907, %v901
        %v914 = vmul.f32 %v907, %v902
        %v915 = vmul.f32 %v907, %v903
        %v916 = vmul.f32 %v911, %v900
        %v917 = vmul.f32 %v911, %v901
        %v918 = vmul.f32 %v911, %v902
        %v919 = vmul.f32 %v911, %v903
        %v920 = vadd.f32 %v889, %v912
        %v921 = vadd.f32 %v890, %v913
        %v922 = vadd.f32 %v891, %v914
        %v923 = vadd.f32 %v892, %v915
        %v924 = vadd.f32 %v893, %v916
        %v925 = vadd.f32 %v894, %v917
        %v926 = vadd.f32 %v895, %v918
        %v927 = vadd.f32 %v896, %v919
        %s928 = sadd.s32 %s801, 4
        %s929 = smul.u32 %s928, 128
        %s930 = scalar_lea.vmem %s2, %s929
        %v931 = vld [vmem:[%s930 + $0x20] sm:$0xff]
        %v932 = vld [vmem:[%s930 + $0x28] sm:$0xff]
        %v933 = vld [vmem:[%s930 + $0x30] sm:$0xff]
        %v934 = vld [vmem:[%s930 + $0x38] sm:$0xff]
        %v935 = vlaneseq
        %v936 = vshrl.u32 %v935, 7
        %v937 = vsub.s32 4, %v936
        %v938 = vrot.slane %v803, %v937
        %v939 = vlaneseq
        %v940 = vshrl.u32 %v939, 7
        %v941 = vsub.s32 4, %v940
        %v942 = vrot.slane %v804, %v941
        %v943 = vmul.f32 %v938, %v931
        %v944 = vmul.f32 %v938, %v932
        %v945 = vmul.f32 %v938, %v933
        %v946 = vmul.f32 %v938, %v934
        %v947 = vmul.f32 %v942, %v931
        %v948 = vmul.f32 %v942, %v932
        %v949 = vmul.f32 %v942, %v933
        %v950 = vmul.f32 %v942, %v934
        %v951 = vadd.f32 %v920, %v943
        %v952 = vadd.f32 %v921, %v944
        %v953 = vadd.f32 %v922, %v945
        %v954 = vadd.f32 %v923, %v946
        %v955 = vadd.f32 %v924, %v947
        %v956 = vadd.f32 %v925, %v948
        %v957 = vadd.f32 %v926, %v949
        %v958 = vadd.f32 %v927, %v950
        %s959 = sadd.s32 %s801, 5
        %s960 = smul.u32 %s959, 128
        %s961 = scalar_lea.vmem %s2, %s960
        %v962 = vld [vmem:[%s961 + $0x20] sm:$0xff]
        %v963 = vld [vmem:[%s961 + $0x28] sm:$0xff]
        %v964 = vld [vmem:[%s961 + $0x30] sm:$0xff]
        %v965 = vld [vmem:[%s961 + $0x38] sm:$0xff]
        %v966 = vlaneseq
        %v967 = vshrl.u32 %v966, 7
        %v968 = vsub.s32 5, %v967
        %v969 = vrot.slane %v803, %v968
        %v970 = vlaneseq
        %v971 = vshrl.u32 %v970, 7
        %v972 = vsub.s32 5, %v971
        %v973 = vrot.slane %v804, %v972
        %v974 = vmul.f32 %v969, %v962
        %v975 = vmul.f32 %v969, %v963
        %v976 = vmul.f32 %v969, %v964
        %v977 = vmul.f32 %v969, %v965
        %v978 = vmul.f32 %v973, %v962
        %v979 = vmul.f32 %v973, %v963
        %v980 = vmul.f32 %v973, %v964
        %v981 = vmul.f32 %v973, %v965
        %v982 = vadd.f32 %v951, %v974
        %v983 = vadd.f32 %v952, %v975
        %v984 = vadd.f32 %v953, %v976
        %v985 = vadd.f32 %v954, %v977
        %v986 = vadd.f32 %v955, %v978
        %v987 = vadd.f32 %v956, %v979
        %v988 = vadd.f32 %v957, %v980
        %v989 = vadd.f32 %v958, %v981
        %s990 = sadd.s32 %s801, 6
        %s991 = smul.u32 %s990, 128
        %s992 = scalar_lea.vmem %s2, %s991
        %v993 = vld [vmem:[%s992 + $0x20] sm:$0xff]
        %v994 = vld [vmem:[%s992 + $0x28] sm:$0xff]
        %v995 = vld [vmem:[%s992 + $0x30] sm:$0xff]
        %v996 = vld [vmem:[%s992 + $0x38] sm:$0xff]
        %v997 = vlaneseq
        %v998 = vshrl.u32 %v997, 7
        %v999 = vsub.s32 6, %v998
        %v1000 = vrot.slane %v803, %v999
        %v1001 = vlaneseq
        %v1002 = vshrl.u32 %v1001, 7
        %v1003 = vsub.s32 6, %v1002
        %v1004 = vrot.slane %v804, %v1003
        %v1005 = vmul.f32 %v1000, %v993
        %v1006 = vmul.f32 %v1000, %v994
        %v1007 = vmul.f32 %v1000, %v995
        %v1008 = vmul.f32 %v1000, %v996
        %v1009 = vmul.f32 %v1004, %v993
        %v1010 = vmul.f32 %v1004, %v994
        %v1011 = vmul.f32 %v1004, %v995
        %v1012 = vmul.f32 %v1004, %v996
        %v1013 = vadd.f32 %v982, %v1005
        %v1014 = vadd.f32 %v983, %v1006
        %v1015 = vadd.f32 %v984, %v1007
        %v1016 = vadd.f32 %v985, %v1008
        %v1017 = vadd.f32 %v986, %v1009
        %v1018 = vadd.f32 %v987, %v1010
        %v1019 = vadd.f32 %v988, %v1011
        %v1020 = vadd.f32 %v989, %v1012
        %s1021 = sadd.s32 %s801, 7
        %s1022 = smul.u32 %s1021, 128
        %s1023 = scalar_lea.vmem %s2, %s1022
        %v1024 = vld [vmem:[%s1023 + $0x20] sm:$0xff]
        %v1025 = vld [vmem:[%s1023 + $0x28] sm:$0xff]
        %v1026 = vld [vmem:[%s1023 + $0x30] sm:$0xff]
        %v1027 = vld [vmem:[%s1023 + $0x38] sm:$0xff]
        %v1028 = vlaneseq
        %v1029 = vshrl.u32 %v1028, 7
        %v1030 = vsub.s32 7, %v1029
        %v1031 = vrot.slane %v803, %v1030
        %v1032 = vlaneseq
        %v1033 = vshrl.u32 %v1032, 7
        %v1034 = vsub.s32 7, %v1033
        %v1035 = vrot.slane %v804, %v1034
        %v1036 = vmul.f32 %v1031, %v1024
        %v1037 = vmul.f32 %v1031, %v1025
        %v1038 = vmul.f32 %v1031, %v1026
        %v1039 = vmul.f32 %v1031, %v1027
        %v1040 = vmul.f32 %v1035, %v1024
        %v1041 = vmul.f32 %v1035, %v1025
        %v1042 = vmul.f32 %v1035, %v1026
        %v1043 = vmul.f32 %v1035, %v1027
        %v1044 = vadd.f32 %v1013, %v1036
        %v1045 = vadd.f32 %v1014, %v1037
        %v1046 = vadd.f32 %v1015, %v1038
        %v1047 = vadd.f32 %v1016, %v1039
        %v1048 = vadd.f32 %v1017, %v1040
        %v1049 = vadd.f32 %v1018, %v1041
        %v1050 = vadd.f32 %v1019, %v1042
        %v1051 = vadd.f32 %v1020, %v1043
      $region63: #{tpu_custom_call.1} parent=41 // loop_footer
        %s792 = sadd.s32 1, %s788
      $region64: #{tpu_custom_call.1} parent=41 // loop_footer_branch
        %787 = sbr.rel target = $region60
      $region65: #{tpu_custom_call.1} parent=41 // loop_exit
        _
      %v1052 = vxor.u32 %v793, 2147483648
      %v1053 = vxor.u32 %v794, 2147483648
      %v1054 = vxor.u32 %v795, 2147483648
      %v1055 = vxor.u32 %v796, 2147483648
      %v1056 = vxor.u32 %v797, 2147483648
      %v1057 = vxor.u32 %v798, 2147483648
      %v1058 = vxor.u32 %v799, 2147483648
      %v1059 = vxor.u32 %v800, 2147483648
      %v1060 = vmul.f32 %v1052, 1.442695
      %v1061 = vpow.pop %v1060
      %v1062 = vmul.f32 %v1053, 1.442695
      %v1063 = vpow.pop %v1062
      %v1064 = vmul.f32 %v1054, 1.442695
      %v1065 = vpow.pop %v1064
      %v1066 = vmul.f32 %v1055, 1.442695
      %v1067 = vpow.pop %v1066
      %v1068 = vmul.f32 %v1056, 1.442695
      %v1069 = vpow.pop %v1068
      %v1070 = vmul.f32 %v1057, 1.442695
      %v1071 = vpow.pop %v1070
      %v1072 = vmul.f32 %v1058, 1.442695
      %v1073 = vpow.pop %v1072
      %v1074 = vmul.f32 %v1059, 1.442695
      %v1075 = vpow.pop %v1074
      %v1076 = vadd.f32 %v1061, 1.0
      %v1077 = vadd.f32 %v1063, 1.0
      %v1078 = vadd.f32 %v1065, 1.0
      %v1079 = vadd.f32 %v1067, 1.0
      %v1080 = vadd.f32 %v1069, 1.0
      %v1081 = vadd.f32 %v1071, 1.0
      %v1082 = vadd.f32 %v1073, 1.0
      %v1083 = vadd.f32 %v1075, 1.0
      %v1084 = vrcp.pop %v1076
      %v1085 = vmul.f32 1.0, %v1084
      %v1086 = vrcp.pop %v1077
      %v1087 = vmul.f32 1.0, %v1086
      %v1088 = vrcp.pop %v1078
      %v1089 = vmul.f32 1.0, %v1088
      %v1090 = vrcp.pop %v1079
      %v1091 = vmul.f32 1.0, %v1090
      %v1092 = vrcp.pop %v1080
      %v1093 = vmul.f32 1.0, %v1092
      %v1094 = vrcp.pop %v1081
      %v1095 = vmul.f32 1.0, %v1094
      %v1096 = vrcp.pop %v1082
      %v1097 = vmul.f32 1.0, %v1096
      %v1098 = vrcp.pop %v1083
      %v1099 = vmul.f32 1.0, %v1098
      %v1100 = vld [vmem:[#allocation3] sm:$0xff]
      %v1101 = vld [vmem:[#allocation3 + $0x8] sm:$0xff]
      %v1102 = vld [vmem:[#allocation3 + $0x10] sm:$0xff]
      %v1103 = vld [vmem:[#allocation3 + $0x18] sm:$0xff]
      %v1104 = vld [vmem:[#allocation3 + $0x20] sm:$0xff]
      %v1105 = vld [vmem:[#allocation3 + $0x28] sm:$0xff]
      %v1106 = vld [vmem:[#allocation3 + $0x30] sm:$0xff]
      %v1107 = vld [vmem:[#allocation3 + $0x38] sm:$0xff]
      %v1108 = vmul.f32 %v1085, %v1100
      %v1109 = vmul.f32 %v1087, %v1101
      %v1110 = vmul.f32 %v1089, %v1102
      %v1111 = vmul.f32 %v1091, %v1103
      %v1112 = vmul.f32 %v1093, %v1104
      %v1113 = vmul.f32 %v1095, %v1105
      %v1114 = vmul.f32 %v1097, %v1106
      %v1115 = vmul.f32 %v1099, %v1107
      %v1116 = vadd.f32 %v1108, %v755
      %v1117 = vadd.f32 %v1109, %v756
      %v1118 = vadd.f32 %v1110, %v757
      %v1119 = vadd.f32 %v1111, %v758
      %v1120 = vadd.f32 %v1112, %v759
      %v1121 = vadd.f32 %v1113, %v760
      %v1122 = vadd.f32 %v1114, %v761
      %v1123 = vadd.f32 %v1115, %v762
      %v1124 = vld [vmem:[%s1 + $0x60] sm:$0xff]
      %v1125 = vld [vmem:[%s1 + $0x68] sm:$0xff]
      %v1126 = vld [vmem:[%s1 + $0x70] sm:$0xff]
      %v1127 = vld [vmem:[%s1 + $0x78] sm:$0xff]
      %v1128 = vmul.f32 %v118, %v1124
      %v1129 = vmul.f32 %v118, %v1125
      %v1130 = vmul.f32 %v118, %v1126
      %v1131 = vmul.f32 %v118, %v1127
      %v1132 = vmul.f32 %v122, %v1124
      %v1133 = vmul.f32 %v122, %v1125
      %v1134 = vmul.f32 %v122, %v1126
      %v1135 = vmul.f32 %v122, %v1127
      %v1136 = vld [vmem:[%s3 + $0x60] sm:$0xff]
      %v1137 = vld [vmem:[%s3 + $0x68] sm:$0xff]
      %v1138 = vld [vmem:[%s3 + $0x70] sm:$0xff]
      %v1139 = vld [vmem:[%s3 + $0x78] sm:$0xff]
      %v1140 = vadd.f32 %v1128, %v1136
      %v1141 = vadd.f32 %v1129, %v1137
      %v1142 = vadd.f32 %v1130, %v1138
      %v1143 = vadd.f32 %v1131, %v1139
      %v1144 = vadd.f32 %v1132, %v1136
      %v1145 = vadd.f32 %v1133, %v1137
      %v1146 = vadd.f32 %v1134, %v1138
      %v1147 = vadd.f32 %v1135, %v1139
      loop: start=0, step=1, limit=4
      $region66: #{tpu_custom_call.1} parent=41 // loop_pre_header
        _
      $region67: #{tpu_custom_call.1} parent=41 // loop_header
        %s1149 = sphi 0, %s1153
        %p1150 = scmp.ge.s32.totalorder %s1149, 4
        %v1154 = vphi %v1140, %v1405
        %v1155 = vphi %v1141, %v1406
        %v1156 = vphi %v1142, %v1407
        %v1157 = vphi %v1143, %v1408
        %v1158 = vphi %v1144, %v1409
        %v1159 = vphi %v1145, %v1410
        %v1160 = vphi %v1146, %v1411
        %v1161 = vphi %v1147, %v1412
      $region68: #{tpu_custom_call.1} parent=41 // loop_header_branch
        %1152 = sbr.rel (%p1150) target = $region72
      $region69: #{tpu_custom_call.1} parent=41 // loop_body
        %s1162 = smul.u32 %s1149, 8
        %s1163 = scalar_lea.vmem [#allocation2], %s1162
        %v1164 = vld [vmem:[%s1163] sm:$0xff]
        %v1165 = vld [vmem:[%s1163 + $0x40] sm:$0xff]
        %s1166 = smul.u32 %s1162, 128
        %s1167 = scalar_lea.vmem %s2, %s1166
        %v1168 = vld [vmem:[%s1167 + $0x60] sm:$0xff]
        %v1169 = vld [vmem:[%s1167 + $0x68] sm:$0xff]
        %v1170 = vld [vmem:[%s1167 + $0x70] sm:$0xff]
        %v1171 = vld [vmem:[%s1167 + $0x78] sm:$0xff]
        %v1172 = vlaneseq
        %v1173 = vshrl.u32 %v1172, 7
        %v1174 = vsub.s32 0, %v1173
        %v1175 = vrot.slane %v1164, %v1174
        %v1176 = vlaneseq
        %v1177 = vshrl.u32 %v1176, 7
        %v1178 = vsub.s32 0, %v1177
        %v1179 = vrot.slane %v1165, %v1178
        %v1180 = vmul.f32 %v1175, %v1168
        %v1181 = vmul.f32 %v1175, %v1169
        %v1182 = vmul.f32 %v1175, %v1170
        %v1183 = vmul.f32 %v1175, %v1171
        %v1184 = vmul.f32 %v1179, %v1168
        %v1185 = vmul.f32 %v1179, %v1169
        %v1186 = vmul.f32 %v1179, %v1170
        %v1187 = vmul.f32 %v1179, %v1171
        %v1188 = vadd.f32 %v1154, %v1180
        %v1189 = vadd.f32 %v1155, %v1181
        %v1190 = vadd.f32 %v1156, %v1182
        %v1191 = vadd.f32 %v1157, %v1183
        %v1192 = vadd.f32 %v1158, %v1184
        %v1193 = vadd.f32 %v1159, %v1185
        %v1194 = vadd.f32 %v1160, %v1186
        %v1195 = vadd.f32 %v1161, %v1187
        %s1196 = sadd.s32 %s1162, 1
        %s1197 = smul.u32 %s1196, 128
        %s1198 = scalar_lea.vmem %s2, %s1197
        %v1199 = vld [vmem:[%s1198 + $0x60] sm:$0xff]
        %v1200 = vld [vmem:[%s1198 + $0x68] sm:$0xff]
        %v1201 = vld [vmem:[%s1198 + $0x70] sm:$0xff]
        %v1202 = vld [vmem:[%s1198 + $0x78] sm:$0xff]
        %v1203 = vlaneseq
        %v1204 = vshrl.u32 %v1203, 7
        %v1205 = vsub.s32 1, %v1204
        %v1206 = vrot.slane %v1164, %v1205
        %v1207 = vlaneseq
        %v1208 = vshrl.u32 %v1207, 7
        %v1209 = vsub.s32 1, %v1208
        %v1210 = vrot.slane %v1165, %v1209
        %v1211 = vmul.f32 %v1206, %v1199
        %v1212 = vmul.f32 %v1206, %v1200
        %v1213 = vmul.f32 %v1206, %v1201
        %v1214 = vmul.f32 %v1206, %v1202
        %v1215 = vmul.f32 %v1210, %v1199
        %v1216 = vmul.f32 %v1210, %v1200
        %v1217 = vmul.f32 %v1210, %v1201
        %v1218 = vmul.f32 %v1210, %v1202
        %v1219 = vadd.f32 %v1188, %v1211
        %v1220 = vadd.f32 %v1189, %v1212
        %v1221 = vadd.f32 %v1190, %v1213
        %v1222 = vadd.f32 %v1191, %v1214
        %v1223 = vadd.f32 %v1192, %v1215
        %v1224 = vadd.f32 %v1193, %v1216
        %v1225 = vadd.f32 %v1194, %v1217
        %v1226 = vadd.f32 %v1195, %v1218
        %s1227 = sadd.s32 %s1162, 2
        %s1228 = smul.u32 %s1227, 128
        %s1229 = scalar_lea.vmem %s2, %s1228
        %v1230 = vld [vmem:[%s1229 + $0x60] sm:$0xff]
        %v1231 = vld [vmem:[%s1229 + $0x68] sm:$0xff]
        %v1232 = vld [vmem:[%s1229 + $0x70] sm:$0xff]
        %v1233 = vld [vmem:[%s1229 + $0x78] sm:$0xff]
        %v1234 = vlaneseq
        %v1235 = vshrl.u32 %v1234, 7
        %v1236 = vsub.s32 2, %v1235
        %v1237 = vrot.slane %v1164, %v1236
        %v1238 = vlaneseq
        %v1239 = vshrl.u32 %v1238, 7
        %v1240 = vsub.s32 2, %v1239
        %v1241 = vrot.slane %v1165, %v1240
        %v1242 = vmul.f32 %v1237, %v1230
        %v1243 = vmul.f32 %v1237, %v1231
        %v1244 = vmul.f32 %v1237, %v1232
        %v1245 = vmul.f32 %v1237, %v1233
        %v1246 = vmul.f32 %v1241, %v1230
        %v1247 = vmul.f32 %v1241, %v1231
        %v1248 = vmul.f32 %v1241, %v1232
        %v1249 = vmul.f32 %v1241, %v1233
        %v1250 = vadd.f32 %v1219, %v1242
        %v1251 = vadd.f32 %v1220, %v1243
        %v1252 = vadd.f32 %v1221, %v1244
        %v1253 = vadd.f32 %v1222, %v1245
        %v1254 = vadd.f32 %v1223, %v1246
        %v1255 = vadd.f32 %v1224, %v1247
        %v1256 = vadd.f32 %v1225, %v1248
        %v1257 = vadd.f32 %v1226, %v1249
        %s1258 = sadd.s32 %s1162, 3
        %s1259 = smul.u32 %s1258, 128
        %s1260 = scalar_lea.vmem %s2, %s1259
        %v1261 = vld [vmem:[%s1260 + $0x60] sm:$0xff]
        %v1262 = vld [vmem:[%s1260 + $0x68] sm:$0xff]
        %v1263 = vld [vmem:[%s1260 + $0x70] sm:$0xff]
        %v1264 = vld [vmem:[%s1260 + $0x78] sm:$0xff]
        %v1265 = vlaneseq
        %v1266 = vshrl.u32 %v1265, 7
        %v1267 = vsub.s32 3, %v1266
        %v1268 = vrot.slane %v1164, %v1267
        %v1269 = vlaneseq
        %v1270 = vshrl.u32 %v1269, 7
        %v1271 = vsub.s32 3, %v1270
        %v1272 = vrot.slane %v1165, %v1271
        %v1273 = vmul.f32 %v1268, %v1261
        %v1274 = vmul.f32 %v1268, %v1262
        %v1275 = vmul.f32 %v1268, %v1263
        %v1276 = vmul.f32 %v1268, %v1264
        %v1277 = vmul.f32 %v1272, %v1261
        %v1278 = vmul.f32 %v1272, %v1262
        %v1279 = vmul.f32 %v1272, %v1263
        %v1280 = vmul.f32 %v1272, %v1264
        %v1281 = vadd.f32 %v1250, %v1273
        %v1282 = vadd.f32 %v1251, %v1274
        %v1283 = vadd.f32 %v1252, %v1275
        %v1284 = vadd.f32 %v1253, %v1276
        %v1285 = vadd.f32 %v1254, %v1277
        %v1286 = vadd.f32 %v1255, %v1278
        %v1287 = vadd.f32 %v1256, %v1279
        %v1288 = vadd.f32 %v1257, %v1280
        %s1289 = sadd.s32 %s1162, 4
        %s1290 = smul.u32 %s1289, 128
        %s1291 = scalar_lea.vmem %s2, %s1290
        %v1292 = vld [vmem:[%s1291 + $0x60] sm:$0xff]
        %v1293 = vld [vmem:[%s1291 + $0x68] sm:$0xff]
        %v1294 = vld [vmem:[%s1291 + $0x70] sm:$0xff]
        %v1295 = vld [vmem:[%s1291 + $0x78] sm:$0xff]
        %v1296 = vlaneseq
        %v1297 = vshrl.u32 %v1296, 7
        %v1298 = vsub.s32 4, %v1297
        %v1299 = vrot.slane %v1164, %v1298
        %v1300 = vlaneseq
        %v1301 = vshrl.u32 %v1300, 7
        %v1302 = vsub.s32 4, %v1301
        %v1303 = vrot.slane %v1165, %v1302
        %v1304 = vmul.f32 %v1299, %v1292
        %v1305 = vmul.f32 %v1299, %v1293
        %v1306 = vmul.f32 %v1299, %v1294
        %v1307 = vmul.f32 %v1299, %v1295
        %v1308 = vmul.f32 %v1303, %v1292
        %v1309 = vmul.f32 %v1303, %v1293
        %v1310 = vmul.f32 %v1303, %v1294
        %v1311 = vmul.f32 %v1303, %v1295
        %v1312 = vadd.f32 %v1281, %v1304
        %v1313 = vadd.f32 %v1282, %v1305
        %v1314 = vadd.f32 %v1283, %v1306
        %v1315 = vadd.f32 %v1284, %v1307
        %v1316 = vadd.f32 %v1285, %v1308
        %v1317 = vadd.f32 %v1286, %v1309
        %v1318 = vadd.f32 %v1287, %v1310
        %v1319 = vadd.f32 %v1288, %v1311
        %s1320 = sadd.s32 %s1162, 5
        %s1321 = smul.u32 %s1320, 128
        %s1322 = scalar_lea.vmem %s2, %s1321
        %v1323 = vld [vmem:[%s1322 + $0x60] sm:$0xff]
        %v1324 = vld [vmem:[%s1322 + $0x68] sm:$0xff]
        %v1325 = vld [vmem:[%s1322 + $0x70] sm:$0xff]
        %v1326 = vld [vmem:[%s1322 + $0x78] sm:$0xff]
        %v1327 = vlaneseq
        %v1328 = vshrl.u32 %v1327, 7
        %v1329 = vsub.s32 5, %v1328
        %v1330 = vrot.slane %v1164, %v1329
        %v1331 = vlaneseq
        %v1332 = vshrl.u32 %v1331, 7
        %v1333 = vsub.s32 5, %v1332
        %v1334 = vrot.slane %v1165, %v1333
        %v1335 = vmul.f32 %v1330, %v1323
        %v1336 = vmul.f32 %v1330, %v1324
        %v1337 = vmul.f32 %v1330, %v1325
        %v1338 = vmul.f32 %v1330, %v1326
        %v1339 = vmul.f32 %v1334, %v1323
        %v1340 = vmul.f32 %v1334, %v1324
        %v1341 = vmul.f32 %v1334, %v1325
        %v1342 = vmul.f32 %v1334, %v1326
        %v1343 = vadd.f32 %v1312, %v1335
        %v1344 = vadd.f32 %v1313, %v1336
        %v1345 = vadd.f32 %v1314, %v1337
        %v1346 = vadd.f32 %v1315, %v1338
        %v1347 = vadd.f32 %v1316, %v1339
        %v1348 = vadd.f32 %v1317, %v1340
        %v1349 = vadd.f32 %v1318, %v1341
        %v1350 = vadd.f32 %v1319, %v1342
        %s1351 = sadd.s32 %s1162, 6
        %s1352 = smul.u32 %s1351, 128
        %s1353 = scalar_lea.vmem %s2, %s1352
        %v1354 = vld [vmem:[%s1353 + $0x60] sm:$0xff]
        %v1355 = vld [vmem:[%s1353 + $0x68] sm:$0xff]
        %v1356 = vld [vmem:[%s1353 + $0x70] sm:$0xff]
        %v1357 = vld [vmem:[%s1353 + $0x78] sm:$0xff]
        %v1358 = vlaneseq
        %v1359 = vshrl.u32 %v1358, 7
        %v1360 = vsub.s32 6, %v1359
        %v1361 = vrot.slane %v1164, %v1360
        %v1362 = vlaneseq
        %v1363 = vshrl.u32 %v1362, 7
        %v1364 = vsub.s32 6, %v1363
        %v1365 = vrot.slane %v1165, %v1364
        %v1366 = vmul.f32 %v1361, %v1354
        %v1367 = vmul.f32 %v1361, %v1355
        %v1368 = vmul.f32 %v1361, %v1356
        %v1369 = vmul.f32 %v1361, %v1357
        %v1370 = vmul.f32 %v1365, %v1354
        %v1371 = vmul.f32 %v1365, %v1355
        %v1372 = vmul.f32 %v1365, %v1356
        %v1373 = vmul.f32 %v1365, %v1357
        %v1374 = vadd.f32 %v1343, %v1366
        %v1375 = vadd.f32 %v1344, %v1367
        %v1376 = vadd.f32 %v1345, %v1368
        %v1377 = vadd.f32 %v1346, %v1369
        %v1378 = vadd.f32 %v1347, %v1370
        %v1379 = vadd.f32 %v1348, %v1371
        %v1380 = vadd.f32 %v1349, %v1372
        %v1381 = vadd.f32 %v1350, %v1373
        %s1382 = sadd.s32 %s1162, 7
        %s1383 = smul.u32 %s1382, 128
        %s1384 = scalar_lea.vmem %s2, %s1383
        %v1385 = vld [vmem:[%s1384 + $0x60] sm:$0xff]
        %v1386 = vld [vmem:[%s1384 + $0x68] sm:$0xff]
        %v1387 = vld [vmem:[%s1384 + $0x70] sm:$0xff]
        %v1388 = vld [vmem:[%s1384 + $0x78] sm:$0xff]
        %v1389 = vlaneseq
        %v1390 = vshrl.u32 %v1389, 7
        %v1391 = vsub.s32 7, %v1390
        %v1392 = vrot.slane %v1164, %v1391
        %v1393 = vlaneseq
        %v1394 = vshrl.u32 %v1393, 7
        %v1395 = vsub.s32 7, %v1394
        %v1396 = vrot.slane %v1165, %v1395
        %v1397 = vmul.f32 %v1392, %v1385
        %v1398 = vmul.f32 %v1392, %v1386
        %v1399 = vmul.f32 %v1392, %v1387
        %v1400 = vmul.f32 %v1392, %v1388
        %v1401 = vmul.f32 %v1396, %v1385
        %v1402 = vmul.f32 %v1396, %v1386
        %v1403 = vmul.f32 %v1396, %v1387
        %v1404 = vmul.f32 %v1396, %v1388
        %v1405 = vadd.f32 %v1374, %v1397
        %v1406 = vadd.f32 %v1375, %v1398
        %v1407 = vadd.f32 %v1376, %v1399
        %v1408 = vadd.f32 %v1377, %v1400
        %v1409 = vadd.f32 %v1378, %v1401
        %v1410 = vadd.f32 %v1379, %v1402
        %v1411 = vadd.f32 %v1380, %v1403
        %v1412 = vadd.f32 %v1381, %v1404
      $region70: #{tpu_custom_call.1} parent=41 // loop_footer
        %s1153 = sadd.s32 1, %s1149
      $region71: #{tpu_custom_call.1} parent=41 // loop_footer_branch
        %1148 = sbr.rel target = $region67
      $region72: #{tpu_custom_call.1} parent=41 // loop_exit
        _
      %v1413 = vxor.u32 %v1154, 2147483648
      %v1414 = vxor.u32 %v1155, 2147483648
      %v1415 = vxor.u32 %v1156, 2147483648
      %v1416 = vxor.u32 %v1157, 2147483648
      %v1417 = vxor.u32 %v1158, 2147483648
      %v1418 = vxor.u32 %v1159, 2147483648
      %v1419 = vxor.u32 %v1160, 2147483648
      %v1420 = vxor.u32 %v1161, 2147483648
      %v1421 = vmul.f32 %v1413, 1.442695
      %v1422 = vpow.pop %v1421
      %v1423 = vmul.f32 %v1414, 1.442695
      %v1424 = vpow.pop %v1423
      %v1425 = vmul.f32 %v1415, 1.442695
      %v1426 = vpow.pop %v1425
      %v1427 = vmul.f32 %v1416, 1.442695
      %v1428 = vpow.pop %v1427
      %v1429 = vmul.f32 %v1417, 1.442695
      %v1430 = vpow.pop %v1429
      %v1431 = vmul.f32 %v1418, 1.442695
      %v1432 = vpow.pop %v1431
      %v1433 = vmul.f32 %v1419, 1.442695
      %v1434 = vpow.pop %v1433
      %v1435 = vmul.f32 %v1420, 1.442695
      %v1436 = vpow.pop %v1435
      %v1437 = vadd.f32 %v1422, 1.0
      %v1438 = vadd.f32 %v1424, 1.0
      %v1439 = vadd.f32 %v1426, 1.0
      %v1440 = vadd.f32 %v1428, 1.0
      %v1441 = vadd.f32 %v1430, 1.0
      %v1442 = vadd.f32 %v1432, 1.0
      %v1443 = vadd.f32 %v1434, 1.0
      %v1444 = vadd.f32 %v1436, 1.0
      %v1445 = vrcp.pop %v1437
      %v1446 = vmul.f32 1.0, %v1445
      %v1447 = vrcp.pop %v1438
      %v1448 = vmul.f32 1.0, %v1447
      %v1449 = vrcp.pop %v1439
      %v1450 = vmul.f32 1.0, %v1449
      %v1451 = vrcp.pop %v1440
      %v1452 = vmul.f32 1.0, %v1451
      %v1453 = vrcp.pop %v1441
      %v1454 = vmul.f32 1.0, %v1453
      %v1455 = vrcp.pop %v1442
      %v1456 = vmul.f32 1.0, %v1455
      %v1457 = vrcp.pop %v1443
      %v1458 = vmul.f32 1.0, %v1457
      %v1459 = vrcp.pop %v1444
      %v1460 = vmul.f32 1.0, %v1459
      %v1461 = vtanh.pop %v1116
      %v1462 = vtanh.pop %v1117
      %v1463 = vtanh.pop %v1118
      %v1464 = vtanh.pop %v1119
      %v1465 = vtanh.pop %v1120
      %v1466 = vtanh.pop %v1121
      %v1467 = vtanh.pop %v1122
      %v1468 = vtanh.pop %v1123
      %v1469 = vmul.f32 %v1446, %v1461
      %v1470 = vmul.f32 %v1448, %v1462
      %v1471 = vmul.f32 %v1450, %v1463
      %v1472 = vmul.f32 %v1452, %v1464
      %v1473 = vmul.f32 %v1454, %v1465
      %v1474 = vmul.f32 %v1456, %v1466
      %v1475 = vmul.f32 %v1458, %v1467
      %v1476 = vmul.f32 %v1460, %v1468
      %1477 = vst.msk [vmem:[#allocation3] sm:$0xff] %vm44, %v1116
      %1478 = vst.msk [vmem:[#allocation3 + $0x8] sm:$0xff] %vm44, %v1117
      %1479 = vst.msk [vmem:[#allocation3 + $0x10] sm:$0xff] %vm44, %v1118
      %1480 = vst.msk [vmem:[#allocation3 + $0x18] sm:$0xff] %vm44, %v1119
      %1481 = vst.msk [vmem:[#allocation3 + $0x20] sm:$0xff] %vm44, %v1120
      %1482 = vst.msk [vmem:[#allocation3 + $0x28] sm:$0xff] %vm44, %v1121
      %1483 = vst.msk [vmem:[#allocation3 + $0x30] sm:$0xff] %vm44, %v1122
      %1484 = vst.msk [vmem:[#allocation3 + $0x38] sm:$0xff] %vm44, %v1123
      %1485 = vst.msk [vmem:[#allocation2] sm:$0xff] %vm44, %v1469
      %1486 = vst.msk [vmem:[#allocation2 + $0x8] sm:$0xff] %vm44, %v1470
      %1487 = vst.msk [vmem:[#allocation2 + $0x10] sm:$0xff] %vm44, %v1471
      %1488 = vst.msk [vmem:[#allocation2 + $0x18] sm:$0xff] %vm44, %v1472
      %1489 = vst.msk [vmem:[#allocation2 + $0x40] sm:$0xff] %vm44, %v1473
      %1490 = vst.msk [vmem:[#allocation2 + $0x48] sm:$0xff] %vm44, %v1474
      %1491 = vst.msk [vmem:[#allocation2 + $0x50] sm:$0xff] %vm44, %v1475
      %1492 = vst.msk [vmem:[#allocation2 + $0x58] sm:$0xff] %vm44, %v1476
      %v1493 = vld [vmem:[%s5] sm:$0xff]
      %v1494 = vld [vmem:[%s5 + $0x8] sm:$0xff]
      %v1495 = vld [vmem:[%s5 + $0x10] sm:$0xff]
      %v1496 = vld [vmem:[%s5 + $0x18] sm:$0xff]
      loop: start=0, step=1, limit=8
      $region73: #{tpu_custom_call.1} parent=41 // loop_pre_header
        _
      $region74: #{tpu_custom_call.1} parent=41 // loop_header
        %s1498 = sphi 0, %s1502
        %p1499 = scmp.ge.s32.totalorder %s1498, 8
        %v1503 = vphi %v1493, %v1754
        %v1504 = vphi %v1494, %v1755
        %v1505 = vphi %v1495, %v1756
        %v1506 = vphi %v1496, %v1757
        %v1507 = vphi %v1493, %v1758
        %v1508 = vphi %v1494, %v1759
        %v1509 = vphi %v1495, %v1760
        %v1510 = vphi %v1496, %v1761
      $region75: #{tpu_custom_call.1} parent=41 // loop_header_branch
        %1501 = sbr.rel (%p1499) target = $region79
      $region76: #{tpu_custom_call.1} parent=41 // loop_body
        %s1511 = smul.u32 %s1498, 8
        %s1512 = scalar_lea.vmem [#allocation2], %s1511
        %v1513 = vld [vmem:[%s1512] sm:$0xff]
        %v1514 = vld [vmem:[%s1512 + $0x40] sm:$0xff]
        %s1515 = smul.u32 %s1511, 128
        %s1516 = scalar_lea.vmem %s4, %s1515
        %v1517 = vld [vmem:[%s1516] sm:$0xff]
        %v1518 = vld [vmem:[%s1516 + $0x8] sm:$0xff]
        %v1519 = vld [vmem:[%s1516 + $0x10] sm:$0xff]
        %v1520 = vld [vmem:[%s1516 + $0x18] sm:$0xff]
        %v1521 = vlaneseq
        %v1522 = vshrl.u32 %v1521, 7
        %v1523 = vsub.s32 0, %v1522
        %v1524 = vrot.slane %v1513, %v1523
        %v1525 = vlaneseq
        %v1526 = vshrl.u32 %v1525, 7
        %v1527 = vsub.s32 0, %v1526
        %v1528 = vrot.slane %v1514, %v1527
        %v1529 = vmul.f32 %v1524, %v1517
        %v1530 = vmul.f32 %v1524, %v1518
        %v1531 = vmul.f32 %v1524, %v1519
        %v1532 = vmul.f32 %v1524, %v1520
        %v1533 = vmul.f32 %v1528, %v1517
        %v1534 = vmul.f32 %v1528, %v1518
        %v1535 = vmul.f32 %v1528, %v1519
        %v1536 = vmul.f32 %v1528, %v1520
        %v1537 = vadd.f32 %v1503, %v1529
        %v1538 = vadd.f32 %v1504, %v1530
        %v1539 = vadd.f32 %v1505, %v1531
        %v1540 = vadd.f32 %v1506, %v1532
        %v1541 = vadd.f32 %v1507, %v1533
        %v1542 = vadd.f32 %v1508, %v1534
        %v1543 = vadd.f32 %v1509, %v1535
        %v1544 = vadd.f32 %v1510, %v1536
        %s1545 = sadd.s32 %s1511, 1
        %s1546 = smul.u32 %s1545, 128
        %s1547 = scalar_lea.vmem %s4, %s1546
        %v1548 = vld [vmem:[%s1547] sm:$0xff]
        %v1549 = vld [vmem:[%s1547 + $0x8] sm:$0xff]
        %v1550 = vld [vmem:[%s1547 + $0x10] sm:$0xff]
        %v1551 = vld [vmem:[%s1547 + $0x18] sm:$0xff]
        %v1552 = vlaneseq
        %v1553 = vshrl.u32 %v1552, 7
        %v1554 = vsub.s32 1, %v1553
        %v1555 = vrot.slane %v1513, %v1554
        %v1556 = vlaneseq
        %v1557 = vshrl.u32 %v1556, 7
        %v1558 = vsub.s32 1, %v1557
        %v1559 = vrot.slane %v1514, %v1558
        %v1560 = vmul.f32 %v1555, %v1548
        %v1561 = vmul.f32 %v1555, %v1549
        %v1562 = vmul.f32 %v1555, %v1550
        %v1563 = vmul.f32 %v1555, %v1551
        %v1564 = vmul.f32 %v1559, %v1548
        %v1565 = vmul.f32 %v1559, %v1549
        %v1566 = vmul.f32 %v1559, %v1550
        %v1567 = vmul.f32 %v1559, %v1551
        %v1568 = vadd.f32 %v1537, %v1560
        %v1569 = vadd.f32 %v1538, %v1561
        %v1570 = vadd.f32 %v1539, %v1562
        %v1571 = vadd.f32 %v1540, %v1563
        %v1572 = vadd.f32 %v1541, %v1564
        %v1573 = vadd.f32 %v1542, %v1565
        %v1574 = vadd.f32 %v1543, %v1566
        %v1575 = vadd.f32 %v1544, %v1567
        %s1576 = sadd.s32 %s1511, 2
        %s1577 = smul.u32 %s1576, 128
        %s1578 = scalar_lea.vmem %s4, %s1577
        %v1579 = vld [vmem:[%s1578] sm:$0xff]
        %v1580 = vld [vmem:[%s1578 + $0x8] sm:$0xff]
        %v1581 = vld [vmem:[%s1578 + $0x10] sm:$0xff]
        %v1582 = vld [vmem:[%s1578 + $0x18] sm:$0xff]
        %v1583 = vlaneseq
        %v1584 = vshrl.u32 %v1583, 7
        %v1585 = vsub.s32 2, %v1584
        %v1586 = vrot.slane %v1513, %v1585
        %v1587 = vlaneseq
        %v1588 = vshrl.u32 %v1587, 7
        %v1589 = vsub.s32 2, %v1588
        %v1590 = vrot.slane %v1514, %v1589
        %v1591 = vmul.f32 %v1586, %v1579
        %v1592 = vmul.f32 %v1586, %v1580
        %v1593 = vmul.f32 %v1586, %v1581
        %v1594 = vmul.f32 %v1586, %v1582
        %v1595 = vmul.f32 %v1590, %v1579
        %v1596 = vmul.f32 %v1590, %v1580
        %v1597 = vmul.f32 %v1590, %v1581
        %v1598 = vmul.f32 %v1590, %v1582
        %v1599 = vadd.f32 %v1568, %v1591
        %v1600 = vadd.f32 %v1569, %v1592
        %v1601 = vadd.f32 %v1570, %v1593
        %v1602 = vadd.f32 %v1571, %v1594
        %v1603 = vadd.f32 %v1572, %v1595
        %v1604 = vadd.f32 %v1573, %v1596
        %v1605 = vadd.f32 %v1574, %v1597
        %v1606 = vadd.f32 %v1575, %v1598
        %s1607 = sadd.s32 %s1511, 3
        %s1608 = smul.u32 %s1607, 128
        %s1609 = scalar_lea.vmem %s4, %s1608
        %v1610 = vld [vmem:[%s1609] sm:$0xff]
        %v1611 = vld [vmem:[%s1609 + $0x8] sm:$0xff]
        %v1612 = vld [vmem:[%s1609 + $0x10] sm:$0xff]
        %v1613 = vld [vmem:[%s1609 + $0x18] sm:$0xff]
        %v1614 = vlaneseq
        %v1615 = vshrl.u32 %v1614, 7
        %v1616 = vsub.s32 3, %v1615
        %v1617 = vrot.slane %v1513, %v1616
        %v1618 = vlaneseq
        %v1619 = vshrl.u32 %v1618, 7
        %v1620 = vsub.s32 3, %v1619
        %v1621 = vrot.slane %v1514, %v1620
        %v1622 = vmul.f32 %v1617, %v1610
        %v1623 = vmul.f32 %v1617, %v1611
        %v1624 = vmul.f32 %v1617, %v1612
        %v1625 = vmul.f32 %v1617, %v1613
        %v1626 = vmul.f32 %v1621, %v1610
        %v1627 = vmul.f32 %v1621, %v1611
        %v1628 = vmul.f32 %v1621, %v1612
        %v1629 = vmul.f32 %v1621, %v1613
        %v1630 = vadd.f32 %v1599, %v1622
        %v1631 = vadd.f32 %v1600, %v1623
        %v1632 = vadd.f32 %v1601, %v1624
        %v1633 = vadd.f32 %v1602, %v1625
        %v1634 = vadd.f32 %v1603, %v1626
        %v1635 = vadd.f32 %v1604, %v1627
        %v1636 = vadd.f32 %v1605, %v1628
        %v1637 = vadd.f32 %v1606, %v1629
        %s1638 = sadd.s32 %s1511, 4
        %s1639 = smul.u32 %s1638, 128
        %s1640 = scalar_lea.vmem %s4, %s1639
        %v1641 = vld [vmem:[%s1640] sm:$0xff]
        %v1642 = vld [vmem:[%s1640 + $0x8] sm:$0xff]
        %v1643 = vld [vmem:[%s1640 + $0x10] sm:$0xff]
        %v1644 = vld [vmem:[%s1640 + $0x18] sm:$0xff]
        %v1645 = vlaneseq
        %v1646 = vshrl.u32 %v1645, 7
        %v1647 = vsub.s32 4, %v1646
        %v1648 = vrot.slane %v1513, %v1647
        %v1649 = vlaneseq
        %v1650 = vshrl.u32 %v1649, 7
        %v1651 = vsub.s32 4, %v1650
        %v1652 = vrot.slane %v1514, %v1651
        %v1653 = vmul.f32 %v1648, %v1641
        %v1654 = vmul.f32 %v1648, %v1642
        %v1655 = vmul.f32 %v1648, %v1643
        %v1656 = vmul.f32 %v1648, %v1644
        %v1657 = vmul.f32 %v1652, %v1641
        %v1658 = vmul.f32 %v1652, %v1642
        %v1659 = vmul.f32 %v1652, %v1643
        %v1660 = vmul.f32 %v1652, %v1644
        %v1661 = vadd.f32 %v1630, %v1653
        %v1662 = vadd.f32 %v1631, %v1654
        %v1663 = vadd.f32 %v1632, %v1655
        %v1664 = vadd.f32 %v1633, %v1656
        %v1665 = vadd.f32 %v1634, %v1657
        %v1666 = vadd.f32 %v1635, %v1658
        %v1667 = vadd.f32 %v1636, %v1659
        %v1668 = vadd.f32 %v1637, %v1660
        %s1669 = sadd.s32 %s1511, 5
        %s1670 = smul.u32 %s1669, 128
        %s1671 = scalar_lea.vmem %s4, %s1670
        %v1672 = vld [vmem:[%s1671] sm:$0xff]
        %v1673 = vld [vmem:[%s1671 + $0x8] sm:$0xff]
        %v1674 = vld [vmem:[%s1671 + $0x10] sm:$0xff]
        %v1675 = vld [vmem:[%s1671 + $0x18] sm:$0xff]
        %v1676 = vlaneseq
        %v1677 = vshrl.u32 %v1676, 7
        %v1678 = vsub.s32 5, %v1677
        %v1679 = vrot.slane %v1513, %v1678
        %v1680 = vlaneseq
        %v1681 = vshrl.u32 %v1680, 7
        %v1682 = vsub.s32 5, %v1681
        %v1683 = vrot.slane %v1514, %v1682
        %v1684 = vmul.f32 %v1679, %v1672
        %v1685 = vmul.f32 %v1679, %v1673
        %v1686 = vmul.f32 %v1679, %v1674
        %v1687 = vmul.f32 %v1679, %v1675
        %v1688 = vmul.f32 %v1683, %v1672
        %v1689 = vmul.f32 %v1683, %v1673
        %v1690 = vmul.f32 %v1683, %v1674
        %v1691 = vmul.f32 %v1683, %v1675
        %v1692 = vadd.f32 %v1661, %v1684
        %v1693 = vadd.f32 %v1662, %v1685
        %v1694 = vadd.f32 %v1663, %v1686
        %v1695 = vadd.f32 %v1664, %v1687
        %v1696 = vadd.f32 %v1665, %v1688
        %v1697 = vadd.f32 %v1666, %v1689
        %v1698 = vadd.f32 %v1667, %v1690
        %v1699 = vadd.f32 %v1668, %v1691
        %s1700 = sadd.s32 %s1511, 6
        %s1701 = smul.u32 %s1700, 128
        %s1702 = scalar_lea.vmem %s4, %s1701
        %v1703 = vld [vmem:[%s1702] sm:$0xff]
        %v1704 = vld [vmem:[%s1702 + $0x8] sm:$0xff]
        %v1705 = vld [vmem:[%s1702 + $0x10] sm:$0xff]
        %v1706 = vld [vmem:[%s1702 + $0x18] sm:$0xff]
        %v1707 = vlaneseq
        %v1708 = vshrl.u32 %v1707, 7
        %v1709 = vsub.s32 6, %v1708
        %v1710 = vrot.slane %v1513, %v1709
        %v1711 = vlaneseq
        %v1712 = vshrl.u32 %v1711, 7
        %v1713 = vsub.s32 6, %v1712
        %v1714 = vrot.slane %v1514, %v1713
        %v1715 = vmul.f32 %v1710, %v1703
        %v1716 = vmul.f32 %v1710, %v1704
        %v1717 = vmul.f32 %v1710, %v1705
        %v1718 = vmul.f32 %v1710, %v1706
        %v1719 = vmul.f32 %v1714, %v1703
        %v1720 = vmul.f32 %v1714, %v1704
        %v1721 = vmul.f32 %v1714, %v1705
        %v1722 = vmul.f32 %v1714, %v1706
        %v1723 = vadd.f32 %v1692, %v1715
        %v1724 = vadd.f32 %v1693, %v1716
        %v1725 = vadd.f32 %v1694, %v1717
        %v1726 = vadd.f32 %v1695, %v1718
        %v1727 = vadd.f32 %v1696, %v1719
        %v1728 = vadd.f32 %v1697, %v1720
        %v1729 = vadd.f32 %v1698, %v1721
        %v1730 = vadd.f32 %v1699, %v1722
        %s1731 = sadd.s32 %s1511, 7
        %s1732 = smul.u32 %s1731, 128
        %s1733 = scalar_lea.vmem %s4, %s1732
        %v1734 = vld [vmem:[%s1733] sm:$0xff]
        %v1735 = vld [vmem:[%s1733 + $0x8] sm:$0xff]
        %v1736 = vld [vmem:[%s1733 + $0x10] sm:$0xff]
        %v1737 = vld [vmem:[%s1733 + $0x18] sm:$0xff]
        %v1738 = vlaneseq
        %v1739 = vshrl.u32 %v1738, 7
        %v1740 = vsub.s32 7, %v1739
        %v1741 = vrot.slane %v1513, %v1740
        %v1742 = vlaneseq
        %v1743 = vshrl.u32 %v1742, 7
        %v1744 = vsub.s32 7, %v1743
        %v1745 = vrot.slane %v1514, %v1744
        %v1746 = vmul.f32 %v1741, %v1734
        %v1747 = vmul.f32 %v1741, %v1735
        %v1748 = vmul.f32 %v1741, %v1736
        %v1749 = vmul.f32 %v1741, %v1737
        %v1750 = vmul.f32 %v1745, %v1734
        %v1751 = vmul.f32 %v1745, %v1735
        %v1752 = vmul.f32 %v1745, %v1736
        %v1753 = vmul.f32 %v1745, %v1737
        %v1754 = vadd.f32 %v1723, %v1746
        %v1755 = vadd.f32 %v1724, %v1747
        %v1756 = vadd.f32 %v1725, %v1748
        %v1757 = vadd.f32 %v1726, %v1749
        %v1758 = vadd.f32 %v1727, %v1750
        %v1759 = vadd.f32 %v1728, %v1751
        %v1760 = vadd.f32 %v1729, %v1752
        %v1761 = vadd.f32 %v1730, %v1753
      $region77: #{tpu_custom_call.1} parent=41 // loop_footer
        %s1502 = sadd.s32 1, %s1498
      $region78: #{tpu_custom_call.1} parent=41 // loop_footer_branch
        %1497 = sbr.rel target = $region74
      $region79: #{tpu_custom_call.1} parent=41 // loop_exit
        _
      %v1762 = vxor.u32 %v1503, 2147483648
      %v1763 = vxor.u32 %v1504, 2147483648
      %v1764 = vxor.u32 %v1505, 2147483648
      %v1765 = vxor.u32 %v1506, 2147483648
      %v1766 = vxor.u32 %v1507, 2147483648
      %v1767 = vxor.u32 %v1508, 2147483648
      %v1768 = vxor.u32 %v1509, 2147483648
      %v1769 = vxor.u32 %v1510, 2147483648
      %v1770 = vmul.f32 %v1762, 1.442695
      %v1771 = vpow.pop %v1770
      %v1772 = vmul.f32 %v1763, 1.442695
      %v1773 = vpow.pop %v1772
      %v1774 = vmul.f32 %v1764, 1.442695
      %v1775 = vpow.pop %v1774
      %v1776 = vmul.f32 %v1765, 1.442695
      %v1777 = vpow.pop %v1776
      %v1778 = vmul.f32 %v1766, 1.442695
      %v1779 = vpow.pop %v1778
      %v1780 = vmul.f32 %v1767, 1.442695
      %v1781 = vpow.pop %v1780
      %v1782 = vmul.f32 %v1768, 1.442695
      %v1783 = vpow.pop %v1782
      %v1784 = vmul.f32 %v1769, 1.442695
      %v1785 = vpow.pop %v1784
      %v1786 = vadd.f32 %v1771, 1.0
      %v1787 = vadd.f32 %v1773, 1.0
      %v1788 = vadd.f32 %v1775, 1.0
      %v1789 = vadd.f32 %v1777, 1.0
      %v1790 = vadd.f32 %v1779, 1.0
      %v1791 = vadd.f32 %v1781, 1.0
      %v1792 = vadd.f32 %v1783, 1.0
      %v1793 = vadd.f32 %v1785, 1.0
      %v1794 = vrcp.pop %v1786
      %v1795 = vmul.f32 1.0, %v1794
      %v1796 = vrcp.pop %v1787
      %v1797 = vmul.f32 1.0, %v1796
      %v1798 = vrcp.pop %v1788
      %v1799 = vmul.f32 1.0, %v1798
      %v1800 = vrcp.pop %v1789
      %v1801 = vmul.f32 1.0, %v1800
      %v1802 = vrcp.pop %v1790
      %v1803 = vmul.f32 1.0, %v1802
      %v1804 = vrcp.pop %v1791
      %v1805 = vmul.f32 1.0, %v1804
      %v1806 = vrcp.pop %v1792
      %v1807 = vmul.f32 1.0, %v1806
      %v1808 = vrcp.pop %v1793
      %v1809 = vmul.f32 1.0, %v1808
      %v1810 = vld [vmem:[%s5 + $0x40] sm:$0xff]
      %v1811 = vld [vmem:[%s5 + $0x48] sm:$0xff]
      %v1812 = vld [vmem:[%s5 + $0x50] sm:$0xff]
      %v1813 = vld [vmem:[%s5 + $0x58] sm:$0xff]
      loop: start=0, step=1, limit=8
      $region80: #{tpu_custom_call.1} parent=41 // loop_pre_header
        _
      $region81: #{tpu_custom_call.1} parent=41 // loop_header
        %s1815 = sphi 0, %s1819
        %p1816 = scmp.ge.s32.totalorder %s1815, 8
        %v1820 = vphi %v1810, %v2071
        %v1821 = vphi %v1811, %v2072
        %v1822 = vphi %v1812, %v2073
        %v1823 = vphi %v1813, %v2074
        %v1824 = vphi %v1810, %v2075
        %v1825 = vphi %v1811, %v2076
        %v1826 = vphi %v1812, %v2077
        %v1827 = vphi %v1813, %v2078
      $region82: #{tpu_custom_call.1} parent=41 // loop_header_branch
        %1818 = sbr.rel (%p1816) target = $region86
      $region83: #{tpu_custom_call.1} parent=41 // loop_body
        %s1828 = smul.u32 %s1815, 8
        %s1829 = scalar_lea.vmem [#allocation2], %s1828
        %v1830 = vld [vmem:[%s1829] sm:$0xff]
        %v1831 = vld [vmem:[%s1829 + $0x40] sm:$0xff]
        %s1832 = smul.u32 %s1828, 128
        %s1833 = scalar_lea.vmem %s4, %s1832
        %v1834 = vld [vmem:[%s1833 + $0x40] sm:$0xff]
        %v1835 = vld [vmem:[%s1833 + $0x48] sm:$0xff]
        %v1836 = vld [vmem:[%s1833 + $0x50] sm:$0xff]
        %v1837 = vld [vmem:[%s1833 + $0x58] sm:$0xff]
        %v1838 = vlaneseq
        %v1839 = vshrl.u32 %v1838, 7
        %v1840 = vsub.s32 0, %v1839
        %v1841 = vrot.slane %v1830, %v1840
        %v1842 = vlaneseq
        %v1843 = vshrl.u32 %v1842, 7
        %v1844 = vsub.s32 0, %v1843
        %v1845 = vrot.slane %v1831, %v1844
        %v1846 = vmul.f32 %v1841, %v1834
        %v1847 = vmul.f32 %v1841, %v1835
        %v1848 = vmul.f32 %v1841, %v1836
        %v1849 = vmul.f32 %v1841, %v1837
        %v1850 = vmul.f32 %v1845, %v1834
        %v1851 = vmul.f32 %v1845, %v1835
        %v1852 = vmul.f32 %v1845, %v1836
        %v1853 = vmul.f32 %v1845, %v1837
        %v1854 = vadd.f32 %v1820, %v1846
        %v1855 = vadd.f32 %v1821, %v1847
        %v1856 = vadd.f32 %v1822, %v1848
        %v1857 = vadd.f32 %v1823, %v1849
        %v1858 = vadd.f32 %v1824, %v1850
        %v1859 = vadd.f32 %v1825, %v1851
        %v1860 = vadd.f32 %v1826, %v1852
        %v1861 = vadd.f32 %v1827, %v1853
        %s1862 = sadd.s32 %s1828, 1
        %s1863 = smul.u32 %s1862, 128
        %s1864 = scalar_lea.vmem %s4, %s1863
        %v1865 = vld [vmem:[%s1864 + $0x40] sm:$0xff]
        %v1866 = vld [vmem:[%s1864 + $0x48] sm:$0xff]
        %v1867 = vld [vmem:[%s1864 + $0x50] sm:$0xff]
        %v1868 = vld [vmem:[%s1864 + $0x58] sm:$0xff]
        %v1869 = vlaneseq
        %v1870 = vshrl.u32 %v1869, 7
        %v1871 = vsub.s32 1, %v1870
        %v1872 = vrot.slane %v1830, %v1871
        %v1873 = vlaneseq
        %v1874 = vshrl.u32 %v1873, 7
        %v1875 = vsub.s32 1, %v1874
        %v1876 = vrot.slane %v1831, %v1875
        %v1877 = vmul.f32 %v1872, %v1865
        %v1878 = vmul.f32 %v1872, %v1866
        %v1879 = vmul.f32 %v1872, %v1867
        %v1880 = vmul.f32 %v1872, %v1868
        %v1881 = vmul.f32 %v1876, %v1865
        %v1882 = vmul.f32 %v1876, %v1866
        %v1883 = vmul.f32 %v1876, %v1867
        %v1884 = vmul.f32 %v1876, %v1868
        %v1885 = vadd.f32 %v1854, %v1877
        %v1886 = vadd.f32 %v1855, %v1878
        %v1887 = vadd.f32 %v1856, %v1879
        %v1888 = vadd.f32 %v1857, %v1880
        %v1889 = vadd.f32 %v1858, %v1881
        %v1890 = vadd.f32 %v1859, %v1882
        %v1891 = vadd.f32 %v1860, %v1883
        %v1892 = vadd.f32 %v1861, %v1884
        %s1893 = sadd.s32 %s1828, 2
        %s1894 = smul.u32 %s1893, 128
        %s1895 = scalar_lea.vmem %s4, %s1894
        %v1896 = vld [vmem:[%s1895 + $0x40] sm:$0xff]
        %v1897 = vld [vmem:[%s1895 + $0x48] sm:$0xff]
        %v1898 = vld [vmem:[%s1895 + $0x50] sm:$0xff]
        %v1899 = vld [vmem:[%s1895 + $0x58] sm:$0xff]
        %v1900 = vlaneseq
        %v1901 = vshrl.u32 %v1900, 7
        %v1902 = vsub.s32 2, %v1901
        %v1903 = vrot.slane %v1830, %v1902
        %v1904 = vlaneseq
        %v1905 = vshrl.u32 %v1904, 7
        %v1906 = vsub.s32 2, %v1905
        %v1907 = vrot.slane %v1831, %v1906
        %v1908 = vmul.f32 %v1903, %v1896
        %v1909 = vmul.f32 %v1903, %v1897
        %v1910 = vmul.f32 %v1903, %v1898
        %v1911 = vmul.f32 %v1903, %v1899
        %v1912 = vmul.f32 %v1907, %v1896
        %v1913 = vmul.f32 %v1907, %v1897
        %v1914 = vmul.f32 %v1907, %v1898
        %v1915 = vmul.f32 %v1907, %v1899
        %v1916 = vadd.f32 %v1885, %v1908
        %v1917 = vadd.f32 %v1886, %v1909
        %v1918 = vadd.f32 %v1887, %v1910
        %v1919 = vadd.f32 %v1888, %v1911
        %v1920 = vadd.f32 %v1889, %v1912
        %v1921 = vadd.f32 %v1890, %v1913
        %v1922 = vadd.f32 %v1891, %v1914
        %v1923 = vadd.f32 %v1892, %v1915
        %s1924 = sadd.s32 %s1828, 3
        %s1925 = smul.u32 %s1924, 128
        %s1926 = scalar_lea.vmem %s4, %s1925
        %v1927 = vld [vmem:[%s1926 + $0x40] sm:$0xff]
        %v1928 = vld [vmem:[%s1926 + $0x48] sm:$0xff]
        %v1929 = vld [vmem:[%s1926 + $0x50] sm:$0xff]
        %v1930 = vld [vmem:[%s1926 + $0x58] sm:$0xff]
        %v1931 = vlaneseq
        %v1932 = vshrl.u32 %v1931, 7
        %v1933 = vsub.s32 3, %v1932
        %v1934 = vrot.slane %v1830, %v1933
        %v1935 = vlaneseq
        %v1936 = vshrl.u32 %v1935, 7
        %v1937 = vsub.s32 3, %v1936
        %v1938 = vrot.slane %v1831, %v1937
        %v1939 = vmul.f32 %v1934, %v1927
        %v1940 = vmul.f32 %v1934, %v1928
        %v1941 = vmul.f32 %v1934, %v1929
        %v1942 = vmul.f32 %v1934, %v1930
        %v1943 = vmul.f32 %v1938, %v1927
        %v1944 = vmul.f32 %v1938, %v1928
        %v1945 = vmul.f32 %v1938, %v1929
        %v1946 = vmul.f32 %v1938, %v1930
        %v1947 = vadd.f32 %v1916, %v1939
        %v1948 = vadd.f32 %v1917, %v1940
        %v1949 = vadd.f32 %v1918, %v1941
        %v1950 = vadd.f32 %v1919, %v1942
        %v1951 = vadd.f32 %v1920, %v1943
        %v1952 = vadd.f32 %v1921, %v1944
        %v1953 = vadd.f32 %v1922, %v1945
        %v1954 = vadd.f32 %v1923, %v1946
        %s1955 = sadd.s32 %s1828, 4
        %s1956 = smul.u32 %s1955, 128
        %s1957 = scalar_lea.vmem %s4, %s1956
        %v1958 = vld [vmem:[%s1957 + $0x40] sm:$0xff]
        %v1959 = vld [vmem:[%s1957 + $0x48] sm:$0xff]
        %v1960 = vld [vmem:[%s1957 + $0x50] sm:$0xff]
        %v1961 = vld [vmem:[%s1957 + $0x58] sm:$0xff]
        %v1962 = vlaneseq
        %v1963 = vshrl.u32 %v1962, 7
        %v1964 = vsub.s32 4, %v1963
        %v1965 = vrot.slane %v1830, %v1964
        %v1966 = vlaneseq
        %v1967 = vshrl.u32 %v1966, 7
        %v1968 = vsub.s32 4, %v1967
        %v1969 = vrot.slane %v1831, %v1968
        %v1970 = vmul.f32 %v1965, %v1958
        %v1971 = vmul.f32 %v1965, %v1959
        %v1972 = vmul.f32 %v1965, %v1960
        %v1973 = vmul.f32 %v1965, %v1961
        %v1974 = vmul.f32 %v1969, %v1958
        %v1975 = vmul.f32 %v1969, %v1959
        %v1976 = vmul.f32 %v1969, %v1960
        %v1977 = vmul.f32 %v1969, %v1961
        %v1978 = vadd.f32 %v1947, %v1970
        %v1979 = vadd.f32 %v1948, %v1971
        %v1980 = vadd.f32 %v1949, %v1972
        %v1981 = vadd.f32 %v1950, %v1973
        %v1982 = vadd.f32 %v1951, %v1974
        %v1983 = vadd.f32 %v1952, %v1975
        %v1984 = vadd.f32 %v1953, %v1976
        %v1985 = vadd.f32 %v1954, %v1977
        %s1986 = sadd.s32 %s1828, 5
        %s1987 = smul.u32 %s1986, 128
        %s1988 = scalar_lea.vmem %s4, %s1987
        %v1989 = vld [vmem:[%s1988 + $0x40] sm:$0xff]
        %v1990 = vld [vmem:[%s1988 + $0x48] sm:$0xff]
        %v1991 = vld [vmem:[%s1988 + $0x50] sm:$0xff]
        %v1992 = vld [vmem:[%s1988 + $0x58] sm:$0xff]
        %v1993 = vlaneseq
        %v1994 = vshrl.u32 %v1993, 7
        %v1995 = vsub.s32 5, %v1994
        %v1996 = vrot.slane %v1830, %v1995
        %v1997 = vlaneseq
        %v1998 = vshrl.u32 %v1997, 7
        %v1999 = vsub.s32 5, %v1998
        %v2000 = vrot.slane %v1831, %v1999
        %v2001 = vmul.f32 %v1996, %v1989
        %v2002 = vmul.f32 %v1996, %v1990
        %v2003 = vmul.f32 %v1996, %v1991
        %v2004 = vmul.f32 %v1996, %v1992
        %v2005 = vmul.f32 %v2000, %v1989
        %v2006 = vmul.f32 %v2000, %v1990
        %v2007 = vmul.f32 %v2000, %v1991
        %v2008 = vmul.f32 %v2000, %v1992
        %v2009 = vadd.f32 %v1978, %v2001
        %v2010 = vadd.f32 %v1979, %v2002
        %v2011 = vadd.f32 %v1980, %v2003
        %v2012 = vadd.f32 %v1981, %v2004
        %v2013 = vadd.f32 %v1982, %v2005
        %v2014 = vadd.f32 %v1983, %v2006
        %v2015 = vadd.f32 %v1984, %v2007
        %v2016 = vadd.f32 %v1985, %v2008
        %s2017 = sadd.s32 %s1828, 6
        %s2018 = smul.u32 %s2017, 128
        %s2019 = scalar_lea.vmem %s4, %s2018
        %v2020 = vld [vmem:[%s2019 + $0x40] sm:$0xff]
        %v2021 = vld [vmem:[%s2019 + $0x48] sm:$0xff]
        %v2022 = vld [vmem:[%s2019 + $0x50] sm:$0xff]
        %v2023 = vld [vmem:[%s2019 + $0x58] sm:$0xff]
        %v2024 = vlaneseq
        %v2025 = vshrl.u32 %v2024, 7
        %v2026 = vsub.s32 6, %v2025
        %v2027 = vrot.slane %v1830, %v2026
        %v2028 = vlaneseq
        %v2029 = vshrl.u32 %v2028, 7
        %v2030 = vsub.s32 6, %v2029
        %v2031 = vrot.slane %v1831, %v2030
        %v2032 = vmul.f32 %v2027, %v2020
        %v2033 = vmul.f32 %v2027, %v2021
        %v2034 = vmul.f32 %v2027, %v2022
        %v2035 = vmul.f32 %v2027, %v2023
        %v2036 = vmul.f32 %v2031, %v2020
        %v2037 = vmul.f32 %v2031, %v2021
        %v2038 = vmul.f32 %v2031, %v2022
        %v2039 = vmul.f32 %v2031, %v2023
        %v2040 = vadd.f32 %v2009, %v2032
        %v2041 = vadd.f32 %v2010, %v2033
        %v2042 = vadd.f32 %v2011, %v2034
        %v2043 = vadd.f32 %v2012, %v2035
        %v2044 = vadd.f32 %v2013, %v2036
        %v2045 = vadd.f32 %v2014, %v2037
        %v2046 = vadd.f32 %v2015, %v2038
        %v2047 = vadd.f32 %v2016, %v2039
        %s2048 = sadd.s32 %s1828, 7
        %s2049 = smul.u32 %s2048, 128
        %s2050 = scalar_lea.vmem %s4, %s2049
        %v2051 = vld [vmem:[%s2050 + $0x40] sm:$0xff]
        %v2052 = vld [vmem:[%s2050 + $0x48] sm:$0xff]
        %v2053 = vld [vmem:[%s2050 + $0x50] sm:$0xff]
        %v2054 = vld [vmem:[%s2050 + $0x58] sm:$0xff]
        %v2055 = vlaneseq
        %v2056 = vshrl.u32 %v2055, 7
        %v2057 = vsub.s32 7, %v2056
        %v2058 = vrot.slane %v1830, %v2057
        %v2059 = vlaneseq
        %v2060 = vshrl.u32 %v2059, 7
        %v2061 = vsub.s32 7, %v2060
        %v2062 = vrot.slane %v1831, %v2061
        %v2063 = vmul.f32 %v2058, %v2051
        %v2064 = vmul.f32 %v2058, %v2052
        %v2065 = vmul.f32 %v2058, %v2053
        %v2066 = vmul.f32 %v2058, %v2054
        %v2067 = vmul.f32 %v2062, %v2051
        %v2068 = vmul.f32 %v2062, %v2052
        %v2069 = vmul.f32 %v2062, %v2053
        %v2070 = vmul.f32 %v2062, %v2054
        %v2071 = vadd.f32 %v2040, %v2063
        %v2072 = vadd.f32 %v2041, %v2064
        %v2073 = vadd.f32 %v2042, %v2065
        %v2074 = vadd.f32 %v2043, %v2066
        %v2075 = vadd.f32 %v2044, %v2067
        %v2076 = vadd.f32 %v2045, %v2068
        %v2077 = vadd.f32 %v2046, %v2069
        %v2078 = vadd.f32 %v2047, %v2070
      $region84: #{tpu_custom_call.1} parent=41 // loop_footer
        %s1819 = sadd.s32 1, %s1815
      $region85: #{tpu_custom_call.1} parent=41 // loop_footer_branch
        %1814 = sbr.rel target = $region81
      $region86: #{tpu_custom_call.1} parent=41 // loop_exit
        _
      %v2079 = vtanh.pop %v1820
      %v2080 = vtanh.pop %v1821
      %v2081 = vtanh.pop %v1822
      %v2082 = vtanh.pop %v1823
      %v2083 = vtanh.pop %v1824
      %v2084 = vtanh.pop %v1825
      %v2085 = vtanh.pop %v1826
      %v2086 = vtanh.pop %v1827
      %v2087 = vmul.f32 %v1795, %v2079
      %v2088 = vmul.f32 %v1797, %v2080
      %v2089 = vmul.f32 %v1799, %v2081
      %v2090 = vmul.f32 %v1801, %v2082
      %v2091 = vmul.f32 %v1803, %v2083
      %v2092 = vmul.f32 %v1805, %v2084
      %v2093 = vmul.f32 %v1807, %v2085
      %v2094 = vmul.f32 %v1809, %v2086
      %v2095 = vld [vmem:[%s5 + $0x20] sm:$0xff]
      %v2096 = vld [vmem:[%s5 + $0x28] sm:$0xff]
      %v2097 = vld [vmem:[%s5 + $0x30] sm:$0xff]
      %v2098 = vld [vmem:[%s5 + $0x38] sm:$0xff]
      loop: start=0, step=1, limit=8
      $region87: #{tpu_custom_call.1} parent=41 // loop_pre_header
        _
      $region88: #{tpu_custom_call.1} parent=41 // loop_header
        %s2100 = sphi 0, %s2104
        %p2101 = scmp.ge.s32.totalorder %s2100, 8
        %v2105 = vphi %v2095, %v2356
        %v2106 = vphi %v2096, %v2357
        %v2107 = vphi %v2097, %v2358
        %v2108 = vphi %v2098, %v2359
        %v2109 = vphi %v2095, %v2360
        %v2110 = vphi %v2096, %v2361
        %v2111 = vphi %v2097, %v2362
        %v2112 = vphi %v2098, %v2363
      $region89: #{tpu_custom_call.1} parent=41 // loop_header_branch
        %2103 = sbr.rel (%p2101) target = $region93
      $region90: #{tpu_custom_call.1} parent=41 // loop_body
        %s2113 = smul.u32 %s2100, 8
        %s2114 = scalar_lea.vmem [#allocation2], %s2113
        %v2115 = vld [vmem:[%s2114] sm:$0xff]
        %v2116 = vld [vmem:[%s2114 + $0x40] sm:$0xff]
        %s2117 = smul.u32 %s2113, 128
        %s2118 = scalar_lea.vmem %s4, %s2117
        %v2119 = vld [vmem:[%s2118 + $0x20] sm:$0xff]
        %v2120 = vld [vmem:[%s2118 + $0x28] sm:$0xff]
        %v2121 = vld [vmem:[%s2118 + $0x30] sm:$0xff]
        %v2122 = vld [vmem:[%s2118 + $0x38] sm:$0xff]
        %v2123 = vlaneseq
        %v2124 = vshrl.u32 %v2123, 7
        %v2125 = vsub.s32 0, %v2124
        %v2126 = vrot.slane %v2115, %v2125
        %v2127 = vlaneseq
        %v2128 = vshrl.u32 %v2127, 7
        %v2129 = vsub.s32 0, %v2128
        %v2130 = vrot.slane %v2116, %v2129
        %v2131 = vmul.f32 %v2126, %v2119
        %v2132 = vmul.f32 %v2126, %v2120
        %v2133 = vmul.f32 %v2126, %v2121
        %v2134 = vmul.f32 %v2126, %v2122
        %v2135 = vmul.f32 %v2130, %v2119
        %v2136 = vmul.f32 %v2130, %v2120
        %v2137 = vmul.f32 %v2130, %v2121
        %v2138 = vmul.f32 %v2130, %v2122
        %v2139 = vadd.f32 %v2105, %v2131
        %v2140 = vadd.f32 %v2106, %v2132
        %v2141 = vadd.f32 %v2107, %v2133
        %v2142 = vadd.f32 %v2108, %v2134
        %v2143 = vadd.f32 %v2109, %v2135
        %v2144 = vadd.f32 %v2110, %v2136
        %v2145 = vadd.f32 %v2111, %v2137
        %v2146 = vadd.f32 %v2112, %v2138
        %s2147 = sadd.s32 %s2113, 1
        %s2148 = smul.u32 %s2147, 128
        %s2149 = scalar_lea.vmem %s4, %s2148
        %v2150 = vld [vmem:[%s2149 + $0x20] sm:$0xff]
        %v2151 = vld [vmem:[%s2149 + $0x28] sm:$0xff]
        %v2152 = vld [vmem:[%s2149 + $0x30] sm:$0xff]
        %v2153 = vld [vmem:[%s2149 + $0x38] sm:$0xff]
        %v2154 = vlaneseq
        %v2155 = vshrl.u32 %v2154, 7
        %v2156 = vsub.s32 1, %v2155
        %v2157 = vrot.slane %v2115, %v2156
        %v2158 = vlaneseq
        %v2159 = vshrl.u32 %v2158, 7
        %v2160 = vsub.s32 1, %v2159
        %v2161 = vrot.slane %v2116, %v2160
        %v2162 = vmul.f32 %v2157, %v2150
        %v2163 = vmul.f32 %v2157, %v2151
        %v2164 = vmul.f32 %v2157, %v2152
        %v2165 = vmul.f32 %v2157, %v2153
        %v2166 = vmul.f32 %v2161, %v2150
        %v2167 = vmul.f32 %v2161, %v2151
        %v2168 = vmul.f32 %v2161, %v2152
        %v2169 = vmul.f32 %v2161, %v2153
        %v2170 = vadd.f32 %v2139, %v2162
        %v2171 = vadd.f32 %v2140, %v2163
        %v2172 = vadd.f32 %v2141, %v2164
        %v2173 = vadd.f32 %v2142, %v2165
        %v2174 = vadd.f32 %v2143, %v2166
        %v2175 = vadd.f32 %v2144, %v2167
        %v2176 = vadd.f32 %v2145, %v2168
        %v2177 = vadd.f32 %v2146, %v2169
        %s2178 = sadd.s32 %s2113, 2
        %s2179 = smul.u32 %s2178, 128
        %s2180 = scalar_lea.vmem %s4, %s2179
        %v2181 = vld [vmem:[%s2180 + $0x20] sm:$0xff]
        %v2182 = vld [vmem:[%s2180 + $0x28] sm:$0xff]
        %v2183 = vld [vmem:[%s2180 + $0x30] sm:$0xff]
        %v2184 = vld [vmem:[%s2180 + $0x38] sm:$0xff]
        %v2185 = vlaneseq
        %v2186 = vshrl.u32 %v2185, 7
        %v2187 = vsub.s32 2, %v2186
        %v2188 = vrot.slane %v2115, %v2187
        %v2189 = vlaneseq
        %v2190 = vshrl.u32 %v2189, 7
        %v2191 = vsub.s32 2, %v2190
        %v2192 = vrot.slane %v2116, %v2191
        %v2193 = vmul.f32 %v2188, %v2181
        %v2194 = vmul.f32 %v2188, %v2182
        %v2195 = vmul.f32 %v2188, %v2183
        %v2196 = vmul.f32 %v2188, %v2184
        %v2197 = vmul.f32 %v2192, %v2181
        %v2198 = vmul.f32 %v2192, %v2182
        %v2199 = vmul.f32 %v2192, %v2183
        %v2200 = vmul.f32 %v2192, %v2184
        %v2201 = vadd.f32 %v2170, %v2193
        %v2202 = vadd.f32 %v2171, %v2194
        %v2203 = vadd.f32 %v2172, %v2195
        %v2204 = vadd.f32 %v2173, %v2196
        %v2205 = vadd.f32 %v2174, %v2197
        %v2206 = vadd.f32 %v2175, %v2198
        %v2207 = vadd.f32 %v2176, %v2199
        %v2208 = vadd.f32 %v2177, %v2200
        %s2209 = sadd.s32 %s2113, 3
        %s2210 = smul.u32 %s2209, 128
        %s2211 = scalar_lea.vmem %s4, %s2210
        %v2212 = vld [vmem:[%s2211 + $0x20] sm:$0xff]
        %v2213 = vld [vmem:[%s2211 + $0x28] sm:$0xff]
        %v2214 = vld [vmem:[%s2211 + $0x30] sm:$0xff]
        %v2215 = vld [vmem:[%s2211 + $0x38] sm:$0xff]
        %v2216 = vlaneseq
        %v2217 = vshrl.u32 %v2216, 7
        %v2218 = vsub.s32 3, %v2217
        %v2219 = vrot.slane %v2115, %v2218
        %v2220 = vlaneseq
        %v2221 = vshrl.u32 %v2220, 7
        %v2222 = vsub.s32 3, %v2221
        %v2223 = vrot.slane %v2116, %v2222
        %v2224 = vmul.f32 %v2219, %v2212
        %v2225 = vmul.f32 %v2219, %v2213
        %v2226 = vmul.f32 %v2219, %v2214
        %v2227 = vmul.f32 %v2219, %v2215
        %v2228 = vmul.f32 %v2223, %v2212
        %v2229 = vmul.f32 %v2223, %v2213
        %v2230 = vmul.f32 %v2223, %v2214
        %v2231 = vmul.f32 %v2223, %v2215
        %v2232 = vadd.f32 %v2201, %v2224
        %v2233 = vadd.f32 %v2202, %v2225
        %v2234 = vadd.f32 %v2203, %v2226
        %v2235 = vadd.f32 %v2204, %v2227
        %v2236 = vadd.f32 %v2205, %v2228
        %v2237 = vadd.f32 %v2206, %v2229
        %v2238 = vadd.f32 %v2207, %v2230
        %v2239 = vadd.f32 %v2208, %v2231
        %s2240 = sadd.s32 %s2113, 4
        %s2241 = smul.u32 %s2240, 128
        %s2242 = scalar_lea.vmem %s4, %s2241
        %v2243 = vld [vmem:[%s2242 + $0x20] sm:$0xff]
        %v2244 = vld [vmem:[%s2242 + $0x28] sm:$0xff]
        %v2245 = vld [vmem:[%s2242 + $0x30] sm:$0xff]
        %v2246 = vld [vmem:[%s2242 + $0x38] sm:$0xff]
        %v2247 = vlaneseq
        %v2248 = vshrl.u32 %v2247, 7
        %v2249 = vsub.s32 4, %v2248
        %v2250 = vrot.slane %v2115, %v2249
        %v2251 = vlaneseq
        %v2252 = vshrl.u32 %v2251, 7
        %v2253 = vsub.s32 4, %v2252
        %v2254 = vrot.slane %v2116, %v2253
        %v2255 = vmul.f32 %v2250, %v2243
        %v2256 = vmul.f32 %v2250, %v2244
        %v2257 = vmul.f32 %v2250, %v2245
        %v2258 = vmul.f32 %v2250, %v2246
        %v2259 = vmul.f32 %v2254, %v2243
        %v2260 = vmul.f32 %v2254, %v2244
        %v2261 = vmul.f32 %v2254, %v2245
        %v2262 = vmul.f32 %v2254, %v2246
        %v2263 = vadd.f32 %v2232, %v2255
        %v2264 = vadd.f32 %v2233, %v2256
        %v2265 = vadd.f32 %v2234, %v2257
        %v2266 = vadd.f32 %v2235, %v2258
        %v2267 = vadd.f32 %v2236, %v2259
        %v2268 = vadd.f32 %v2237, %v2260
        %v2269 = vadd.f32 %v2238, %v2261
        %v2270 = vadd.f32 %v2239, %v2262
        %s2271 = sadd.s32 %s2113, 5
        %s2272 = smul.u32 %s2271, 128
        %s2273 = scalar_lea.vmem %s4, %s2272
        %v2274 = vld [vmem:[%s2273 + $0x20] sm:$0xff]
        %v2275 = vld [vmem:[%s2273 + $0x28] sm:$0xff]
        %v2276 = vld [vmem:[%s2273 + $0x30] sm:$0xff]
        %v2277 = vld [vmem:[%s2273 + $0x38] sm:$0xff]
        %v2278 = vlaneseq
        %v2279 = vshrl.u32 %v2278, 7
        %v2280 = vsub.s32 5, %v2279
        %v2281 = vrot.slane %v2115, %v2280
        %v2282 = vlaneseq
        %v2283 = vshrl.u32 %v2282, 7
        %v2284 = vsub.s32 5, %v2283
        %v2285 = vrot.slane %v2116, %v2284
        %v2286 = vmul.f32 %v2281, %v2274
        %v2287 = vmul.f32 %v2281, %v2275
        %v2288 = vmul.f32 %v2281, %v2276
        %v2289 = vmul.f32 %v2281, %v2277
        %v2290 = vmul.f32 %v2285, %v2274
        %v2291 = vmul.f32 %v2285, %v2275
        %v2292 = vmul.f32 %v2285, %v2276
        %v2293 = vmul.f32 %v2285, %v2277
        %v2294 = vadd.f32 %v2263, %v2286
        %v2295 = vadd.f32 %v2264, %v2287
        %v2296 = vadd.f32 %v2265, %v2288
        %v2297 = vadd.f32 %v2266, %v2289
        %v2298 = vadd.f32 %v2267, %v2290
        %v2299 = vadd.f32 %v2268, %v2291
        %v2300 = vadd.f32 %v2269, %v2292
        %v2301 = vadd.f32 %v2270, %v2293
        %s2302 = sadd.s32 %s2113, 6
        %s2303 = smul.u32 %s2302, 128
        %s2304 = scalar_lea.vmem %s4, %s2303
        %v2305 = vld [vmem:[%s2304 + $0x20] sm:$0xff]
        %v2306 = vld [vmem:[%s2304 + $0x28] sm:$0xff]
        %v2307 = vld [vmem:[%s2304 + $0x30] sm:$0xff]
        %v2308 = vld [vmem:[%s2304 + $0x38] sm:$0xff]
        %v2309 = vlaneseq
        %v2310 = vshrl.u32 %v2309, 7
        %v2311 = vsub.s32 6, %v2310
        %v2312 = vrot.slane %v2115, %v2311
        %v2313 = vlaneseq
        %v2314 = vshrl.u32 %v2313, 7
        %v2315 = vsub.s32 6, %v2314
        %v2316 = vrot.slane %v2116, %v2315
        %v2317 = vmul.f32 %v2312, %v2305
        %v2318 = vmul.f32 %v2312, %v2306
        %v2319 = vmul.f32 %v2312, %v2307
        %v2320 = vmul.f32 %v2312, %v2308
        %v2321 = vmul.f32 %v2316, %v2305
        %v2322 = vmul.f32 %v2316, %v2306
        %v2323 = vmul.f32 %v2316, %v2307
        %v2324 = vmul.f32 %v2316, %v2308
        %v2325 = vadd.f32 %v2294, %v2317
        %v2326 = vadd.f32 %v2295, %v2318
        %v2327 = vadd.f32 %v2296, %v2319
        %v2328 = vadd.f32 %v2297, %v2320
        %v2329 = vadd.f32 %v2298, %v2321
        %v2330 = vadd.f32 %v2299, %v2322
        %v2331 = vadd.f32 %v2300, %v2323
        %v2332 = vadd.f32 %v2301, %v2324
        %s2333 = sadd.s32 %s2113, 7
        %s2334 = smul.u32 %s2333, 128
        %s2335 = scalar_lea.vmem %s4, %s2334
        %v2336 = vld [vmem:[%s2335 + $0x20] sm:$0xff]
        %v2337 = vld [vmem:[%s2335 + $0x28] sm:$0xff]
        %v2338 = vld [vmem:[%s2335 + $0x30] sm:$0xff]
        %v2339 = vld [vmem:[%s2335 + $0x38] sm:$0xff]
        %v2340 = vlaneseq
        %v2341 = vshrl.u32 %v2340, 7
        %v2342 = vsub.s32 7, %v2341
        %v2343 = vrot.slane %v2115, %v2342
        %v2344 = vlaneseq
        %v2345 = vshrl.u32 %v2344, 7
        %v2346 = vsub.s32 7, %v2345
        %v2347 = vrot.slane %v2116, %v2346
        %v2348 = vmul.f32 %v2343, %v2336
        %v2349 = vmul.f32 %v2343, %v2337
        %v2350 = vmul.f32 %v2343, %v2338
        %v2351 = vmul.f32 %v2343, %v2339
        %v2352 = vmul.f32 %v2347, %v2336
        %v2353 = vmul.f32 %v2347, %v2337
        %v2354 = vmul.f32 %v2347, %v2338
        %v2355 = vmul.f32 %v2347, %v2339
        %v2356 = vadd.f32 %v2325, %v2348
        %v2357 = vadd.f32 %v2326, %v2349
        %v2358 = vadd.f32 %v2327, %v2350
        %v2359 = vadd.f32 %v2328, %v2351
        %v2360 = vadd.f32 %v2329, %v2352
        %v2361 = vadd.f32 %v2330, %v2353
        %v2362 = vadd.f32 %v2331, %v2354
        %v2363 = vadd.f32 %v2332, %v2355
      $region91: #{tpu_custom_call.1} parent=41 // loop_footer
        %s2104 = sadd.s32 1, %s2100
      $region92: #{tpu_custom_call.1} parent=41 // loop_footer_branch
        %2099 = sbr.rel target = $region88
      $region93: #{tpu_custom_call.1} parent=41 // loop_exit
        _
      %v2364 = vxor.u32 %v2105, 2147483648
      %v2365 = vxor.u32 %v2106, 2147483648
      %v2366 = vxor.u32 %v2107, 2147483648
      %v2367 = vxor.u32 %v2108, 2147483648
      %v2368 = vxor.u32 %v2109, 2147483648
      %v2369 = vxor.u32 %v2110, 2147483648
      %v2370 = vxor.u32 %v2111, 2147483648
      %v2371 = vxor.u32 %v2112, 2147483648
      %v2372 = vmul.f32 %v2364, 1.442695
      %v2373 = vpow.pop %v2372
      %v2374 = vmul.f32 %v2365, 1.442695
      %v2375 = vpow.pop %v2374
      %v2376 = vmul.f32 %v2366, 1.442695
      %v2377 = vpow.pop %v2376
      %v2378 = vmul.f32 %v2367, 1.442695
      %v2379 = vpow.pop %v2378
      %v2380 = vmul.f32 %v2368, 1.442695
      %v2381 = vpow.pop %v2380
      %v2382 = vmul.f32 %v2369, 1.442695
      %v2383 = vpow.pop %v2382
      %v2384 = vmul.f32 %v2370, 1.442695
      %v2385 = vpow.pop %v2384
      %v2386 = vmul.f32 %v2371, 1.442695
      %v2387 = vpow.pop %v2386
      %v2388 = vadd.f32 %v2373, 1.0
      %v2389 = vadd.f32 %v2375, 1.0
      %v2390 = vadd.f32 %v2377, 1.0
      %v2391 = vadd.f32 %v2379, 1.0
      %v2392 = vadd.f32 %v2381, 1.0
      %v2393 = vadd.f32 %v2383, 1.0
      %v2394 = vadd.f32 %v2385, 1.0
      %v2395 = vadd.f32 %v2387, 1.0
      %v2396 = vrcp.pop %v2388
      %v2397 = vmul.f32 1.0, %v2396
      %v2398 = vrcp.pop %v2389
      %v2399 = vmul.f32 1.0, %v2398
      %v2400 = vrcp.pop %v2390
      %v2401 = vmul.f32 1.0, %v2400
      %v2402 = vrcp.pop %v2391
      %v2403 = vmul.f32 1.0, %v2402
      %v2404 = vrcp.pop %v2392
      %v2405 = vmul.f32 1.0, %v2404
      %v2406 = vrcp.pop %v2393
      %v2407 = vmul.f32 1.0, %v2406
      %v2408 = vrcp.pop %v2394
      %v2409 = vmul.f32 1.0, %v2408
      %v2410 = vrcp.pop %v2395
      %v2411 = vmul.f32 1.0, %v2410
      %v2412 = vld [vmem:[#allocation4] sm:$0xff]
      %v2413 = vld [vmem:[#allocation4 + $0x8] sm:$0xff]
      %v2414 = vld [vmem:[#allocation4 + $0x10] sm:$0xff]
      %v2415 = vld [vmem:[#allocation4 + $0x18] sm:$0xff]
      %v2416 = vld [vmem:[#allocation4 + $0x20] sm:$0xff]
      %v2417 = vld [vmem:[#allocation4 + $0x28] sm:$0xff]
      %v2418 = vld [vmem:[#allocation4 + $0x30] sm:$0xff]
      %v2419 = vld [vmem:[#allocation4 + $0x38] sm:$0xff]
      %v2420 = vmul.f32 %v2397, %v2412
      %v2421 = vmul.f32 %v2399, %v2413
      %v2422 = vmul.f32 %v2401, %v2414
      %v2423 = vmul.f32 %v2403, %v2415
      %v2424 = vmul.f32 %v2405, %v2416
      %v2425 = vmul.f32 %v2407, %v2417
      %v2426 = vmul.f32 %v2409, %v2418
      %v2427 = vmul.f32 %v2411, %v2419
      %v2428 = vadd.f32 %v2420, %v2087
      %v2429 = vadd.f32 %v2421, %v2088
      %v2430 = vadd.f32 %v2422, %v2089
      %v2431 = vadd.f32 %v2423, %v2090
      %v2432 = vadd.f32 %v2424, %v2091
      %v2433 = vadd.f32 %v2425, %v2092
      %v2434 = vadd.f32 %v2426, %v2093
      %v2435 = vadd.f32 %v2427, %v2094
      %v2436 = vld [vmem:[%s5 + $0x60] sm:$0xff]
      %v2437 = vld [vmem:[%s5 + $0x68] sm:$0xff]
      %v2438 = vld [vmem:[%s5 + $0x70] sm:$0xff]
      %v2439 = vld [vmem:[%s5 + $0x78] sm:$0xff]
      loop: start=0, step=1, limit=8
      $region94: #{tpu_custom_call.1} parent=41 // loop_pre_header
        _
      $region95: #{tpu_custom_call.1} parent=41 // loop_header
        %s2441 = sphi 0, %s2445
        %p2442 = scmp.ge.s32.totalorder %s2441, 8
        %v2446 = vphi %v2436, %v2697
        %v2447 = vphi %v2437, %v2698
        %v2448 = vphi %v2438, %v2699
        %v2449 = vphi %v2439, %v2700
        %v2450 = vphi %v2436, %v2701
        %v2451 = vphi %v2437, %v2702
        %v2452 = vphi %v2438, %v2703
        %v2453 = vphi %v2439, %v2704
      $region96: #{tpu_custom_call.1} parent=41 // loop_header_branch
        %2444 = sbr.rel (%p2442) target = $region100
      $region97: #{tpu_custom_call.1} parent=41 // loop_body
        %s2454 = smul.u32 %s2441, 8
        %s2455 = scalar_lea.vmem [#allocation2], %s2454
        %v2456 = vld [vmem:[%s2455] sm:$0xff]
        %v2457 = vld [vmem:[%s2455 + $0x40] sm:$0xff]
        %s2458 = smul.u32 %s2454, 128
        %s2459 = scalar_lea.vmem %s4, %s2458
        %v2460 = vld [vmem:[%s2459 + $0x60] sm:$0xff]
        %v2461 = vld [vmem:[%s2459 + $0x68] sm:$0xff]
        %v2462 = vld [vmem:[%s2459 + $0x70] sm:$0xff]
        %v2463 = vld [vmem:[%s2459 + $0x78] sm:$0xff]
        %v2464 = vlaneseq
        %v2465 = vshrl.u32 %v2464, 7
        %v2466 = vsub.s32 0, %v2465
        %v2467 = vrot.slane %v2456, %v2466
        %v2468 = vlaneseq
        %v2469 = vshrl.u32 %v2468, 7
        %v2470 = vsub.s32 0, %v2469
        %v2471 = vrot.slane %v2457, %v2470
        %v2472 = vmul.f32 %v2467, %v2460
        %v2473 = vmul.f32 %v2467, %v2461
        %v2474 = vmul.f32 %v2467, %v2462
        %v2475 = vmul.f32 %v2467, %v2463
        %v2476 = vmul.f32 %v2471, %v2460
        %v2477 = vmul.f32 %v2471, %v2461
        %v2478 = vmul.f32 %v2471, %v2462
        %v2479 = vmul.f32 %v2471, %v2463
        %v2480 = vadd.f32 %v2446, %v2472
        %v2481 = vadd.f32 %v2447, %v2473
        %v2482 = vadd.f32 %v2448, %v2474
        %v2483 = vadd.f32 %v2449, %v2475
        %v2484 = vadd.f32 %v2450, %v2476
        %v2485 = vadd.f32 %v2451, %v2477
        %v2486 = vadd.f32 %v2452, %v2478
        %v2487 = vadd.f32 %v2453, %v2479
        %s2488 = sadd.s32 %s2454, 1
        %s2489 = smul.u32 %s2488, 128
        %s2490 = scalar_lea.vmem %s4, %s2489
        %v2491 = vld [vmem:[%s2490 + $0x60] sm:$0xff]
        %v2492 = vld [vmem:[%s2490 + $0x68] sm:$0xff]
        %v2493 = vld [vmem:[%s2490 + $0x70] sm:$0xff]
        %v2494 = vld [vmem:[%s2490 + $0x78] sm:$0xff]
        %v2495 = vlaneseq
        %v2496 = vshrl.u32 %v2495, 7
        %v2497 = vsub.s32 1, %v2496
        %v2498 = vrot.slane %v2456, %v2497
        %v2499 = vlaneseq
        %v2500 = vshrl.u32 %v2499, 7
        %v2501 = vsub.s32 1, %v2500
        %v2502 = vrot.slane %v2457, %v2501
        %v2503 = vmul.f32 %v2498, %v2491
        %v2504 = vmul.f32 %v2498, %v2492
        %v2505 = vmul.f32 %v2498, %v2493
        %v2506 = vmul.f32 %v2498, %v2494
        %v2507 = vmul.f32 %v2502, %v2491
        %v2508 = vmul.f32 %v2502, %v2492
        %v2509 = vmul.f32 %v2502, %v2493
        %v2510 = vmul.f32 %v2502, %v2494
        %v2511 = vadd.f32 %v2480, %v2503
        %v2512 = vadd.f32 %v2481, %v2504
        %v2513 = vadd.f32 %v2482, %v2505
        %v2514 = vadd.f32 %v2483, %v2506
        %v2515 = vadd.f32 %v2484, %v2507
        %v2516 = vadd.f32 %v2485, %v2508
        %v2517 = vadd.f32 %v2486, %v2509
        %v2518 = vadd.f32 %v2487, %v2510
        %s2519 = sadd.s32 %s2454, 2
        %s2520 = smul.u32 %s2519, 128
        %s2521 = scalar_lea.vmem %s4, %s2520
        %v2522 = vld [vmem:[%s2521 + $0x60] sm:$0xff]
        %v2523 = vld [vmem:[%s2521 + $0x68] sm:$0xff]
        %v2524 = vld [vmem:[%s2521 + $0x70] sm:$0xff]
        %v2525 = vld [vmem:[%s2521 + $0x78] sm:$0xff]
        %v2526 = vlaneseq
        %v2527 = vshrl.u32 %v2526, 7
        %v2528 = vsub.s32 2, %v2527
        %v2529 = vrot.slane %v2456, %v2528
        %v2530 = vlaneseq
        %v2531 = vshrl.u32 %v2530, 7
        %v2532 = vsub.s32 2, %v2531
        %v2533 = vrot.slane %v2457, %v2532
        %v2534 = vmul.f32 %v2529, %v2522
        %v2535 = vmul.f32 %v2529, %v2523
        %v2536 = vmul.f32 %v2529, %v2524
        %v2537 = vmul.f32 %v2529, %v2525
        %v2538 = vmul.f32 %v2533, %v2522
        %v2539 = vmul.f32 %v2533, %v2523
        %v2540 = vmul.f32 %v2533, %v2524
        %v2541 = vmul.f32 %v2533, %v2525
        %v2542 = vadd.f32 %v2511, %v2534
        %v2543 = vadd.f32 %v2512, %v2535
        %v2544 = vadd.f32 %v2513, %v2536
        %v2545 = vadd.f32 %v2514, %v2537
        %v2546 = vadd.f32 %v2515, %v2538
        %v2547 = vadd.f32 %v2516, %v2539
        %v2548 = vadd.f32 %v2517, %v2540
        %v2549 = vadd.f32 %v2518, %v2541
        %s2550 = sadd.s32 %s2454, 3
        %s2551 = smul.u32 %s2550, 128
        %s2552 = scalar_lea.vmem %s4, %s2551
        %v2553 = vld [vmem:[%s2552 + $0x60] sm:$0xff]
        %v2554 = vld [vmem:[%s2552 + $0x68] sm:$0xff]
        %v2555 = vld [vmem:[%s2552 + $0x70] sm:$0xff]
        %v2556 = vld [vmem:[%s2552 + $0x78] sm:$0xff]
        %v2557 = vlaneseq
        %v2558 = vshrl.u32 %v2557, 7
        %v2559 = vsub.s32 3, %v2558
        %v2560 = vrot.slane %v2456, %v2559
        %v2561 = vlaneseq
        %v2562 = vshrl.u32 %v2561, 7
        %v2563 = vsub.s32 3, %v2562
        %v2564 = vrot.slane %v2457, %v2563
        %v2565 = vmul.f32 %v2560, %v2553
        %v2566 = vmul.f32 %v2560, %v2554
        %v2567 = vmul.f32 %v2560, %v2555
        %v2568 = vmul.f32 %v2560, %v2556
        %v2569 = vmul.f32 %v2564, %v2553
        %v2570 = vmul.f32 %v2564, %v2554
        %v2571 = vmul.f32 %v2564, %v2555
        %v2572 = vmul.f32 %v2564, %v2556
        %v2573 = vadd.f32 %v2542, %v2565
        %v2574 = vadd.f32 %v2543, %v2566
        %v2575 = vadd.f32 %v2544, %v2567
        %v2576 = vadd.f32 %v2545, %v2568
        %v2577 = vadd.f32 %v2546, %v2569
        %v2578 = vadd.f32 %v2547, %v2570
        %v2579 = vadd.f32 %v2548, %v2571
        %v2580 = vadd.f32 %v2549, %v2572
        %s2581 = sadd.s32 %s2454, 4
        %s2582 = smul.u32 %s2581, 128
        %s2583 = scalar_lea.vmem %s4, %s2582
        %v2584 = vld [vmem:[%s2583 + $0x60] sm:$0xff]
        %v2585 = vld [vmem:[%s2583 + $0x68] sm:$0xff]
        %v2586 = vld [vmem:[%s2583 + $0x70] sm:$0xff]
        %v2587 = vld [vmem:[%s2583 + $0x78] sm:$0xff]
        %v2588 = vlaneseq
        %v2589 = vshrl.u32 %v2588, 7
        %v2590 = vsub.s32 4, %v2589
        %v2591 = vrot.slane %v2456, %v2590
        %v2592 = vlaneseq
        %v2593 = vshrl.u32 %v2592, 7
        %v2594 = vsub.s32 4, %v2593
        %v2595 = vrot.slane %v2457, %v2594
        %v2596 = vmul.f32 %v2591, %v2584
        %v2597 = vmul.f32 %v2591, %v2585
        %v2598 = vmul.f32 %v2591, %v2586
        %v2599 = vmul.f32 %v2591, %v2587
        %v2600 = vmul.f32 %v2595, %v2584
        %v2601 = vmul.f32 %v2595, %v2585
        %v2602 = vmul.f32 %v2595, %v2586
        %v2603 = vmul.f32 %v2595, %v2587
        %v2604 = vadd.f32 %v2573, %v2596
        %v2605 = vadd.f32 %v2574, %v2597
        %v2606 = vadd.f32 %v2575, %v2598
        %v2607 = vadd.f32 %v2576, %v2599
        %v2608 = vadd.f32 %v2577, %v2600
        %v2609 = vadd.f32 %v2578, %v2601
        %v2610 = vadd.f32 %v2579, %v2602
        %v2611 = vadd.f32 %v2580, %v2603
        %s2612 = sadd.s32 %s2454, 5
        %s2613 = smul.u32 %s2612, 128
        %s2614 = scalar_lea.vmem %s4, %s2613
        %v2615 = vld [vmem:[%s2614 + $0x60] sm:$0xff]
        %v2616 = vld [vmem:[%s2614 + $0x68] sm:$0xff]
        %v2617 = vld [vmem:[%s2614 + $0x70] sm:$0xff]
        %v2618 = vld [vmem:[%s2614 + $0x78] sm:$0xff]
        %v2619 = vlaneseq
        %v2620 = vshrl.u32 %v2619, 7
        %v2621 = vsub.s32 5, %v2620
        %v2622 = vrot.slane %v2456, %v2621
        %v2623 = vlaneseq
        %v2624 = vshrl.u32 %v2623, 7
        %v2625 = vsub.s32 5, %v2624
        %v2626 = vrot.slane %v2457, %v2625
        %v2627 = vmul.f32 %v2622, %v2615
        %v2628 = vmul.f32 %v2622, %v2616
        %v2629 = vmul.f32 %v2622, %v2617
        %v2630 = vmul.f32 %v2622, %v2618
        %v2631 = vmul.f32 %v2626, %v2615
        %v2632 = vmul.f32 %v2626, %v2616
        %v2633 = vmul.f32 %v2626, %v2617
        %v2634 = vmul.f32 %v2626, %v2618
        %v2635 = vadd.f32 %v2604, %v2627
        %v2636 = vadd.f32 %v2605, %v2628
        %v2637 = vadd.f32 %v2606, %v2629
        %v2638 = vadd.f32 %v2607, %v2630
        %v2639 = vadd.f32 %v2608, %v2631
        %v2640 = vadd.f32 %v2609, %v2632
        %v2641 = vadd.f32 %v2610, %v2633
        %v2642 = vadd.f32 %v2611, %v2634
        %s2643 = sadd.s32 %s2454, 6
        %s2644 = smul.u32 %s2643, 128
        %s2645 = scalar_lea.vmem %s4, %s2644
        %v2646 = vld [vmem:[%s2645 + $0x60] sm:$0xff]
        %v2647 = vld [vmem:[%s2645 + $0x68] sm:$0xff]
        %v2648 = vld [vmem:[%s2645 + $0x70] sm:$0xff]
        %v2649 = vld [vmem:[%s2645 + $0x78] sm:$0xff]
        %v2650 = vlaneseq
        %v2651 = vshrl.u32 %v2650, 7
        %v2652 = vsub.s32 6, %v2651
        %v2653 = vrot.slane %v2456, %v2652
        %v2654 = vlaneseq
        %v2655 = vshrl.u32 %v2654, 7
        %v2656 = vsub.s32 6, %v2655
        %v2657 = vrot.slane %v2457, %v2656
        %v2658 = vmul.f32 %v2653, %v2646
        %v2659 = vmul.f32 %v2653, %v2647
        %v2660 = vmul.f32 %v2653, %v2648
        %v2661 = vmul.f32 %v2653, %v2649
        %v2662 = vmul.f32 %v2657, %v2646
        %v2663 = vmul.f32 %v2657, %v2647
        %v2664 = vmul.f32 %v2657, %v2648
        %v2665 = vmul.f32 %v2657, %v2649
        %v2666 = vadd.f32 %v2635, %v2658
        %v2667 = vadd.f32 %v2636, %v2659
        %v2668 = vadd.f32 %v2637, %v2660
        %v2669 = vadd.f32 %v2638, %v2661
        %v2670 = vadd.f32 %v2639, %v2662
        %v2671 = vadd.f32 %v2640, %v2663
        %v2672 = vadd.f32 %v2641, %v2664
        %v2673 = vadd.f32 %v2642, %v2665
        %s2674 = sadd.s32 %s2454, 7
        %s2675 = smul.u32 %s2674, 128
        %s2676 = scalar_lea.vmem %s4, %s2675
        %v2677 = vld [vmem:[%s2676 + $0x60] sm:$0xff]
        %v2678 = vld [vmem:[%s2676 + $0x68] sm:$0xff]
        %v2679 = vld [vmem:[%s2676 + $0x70] sm:$0xff]
        %v2680 = vld [vmem:[%s2676 + $0x78] sm:$0xff]
        %v2681 = vlaneseq
        %v2682 = vshrl.u32 %v2681, 7
        %v2683 = vsub.s32 7, %v2682
        %v2684 = vrot.slane %v2456, %v2683
        %v2685 = vlaneseq
        %v2686 = vshrl.u32 %v2685, 7
        %v2687 = vsub.s32 7, %v2686
        %v2688 = vrot.slane %v2457, %v2687
        %v2689 = vmul.f32 %v2684, %v2677
        %v2690 = vmul.f32 %v2684, %v2678
        %v2691 = vmul.f32 %v2684, %v2679
        %v2692 = vmul.f32 %v2684, %v2680
        %v2693 = vmul.f32 %v2688, %v2677
        %v2694 = vmul.f32 %v2688, %v2678
        %v2695 = vmul.f32 %v2688, %v2679
        %v2696 = vmul.f32 %v2688, %v2680
        %v2697 = vadd.f32 %v2666, %v2689
        %v2698 = vadd.f32 %v2667, %v2690
        %v2699 = vadd.f32 %v2668, %v2691
        %v2700 = vadd.f32 %v2669, %v2692
        %v2701 = vadd.f32 %v2670, %v2693
        %v2702 = vadd.f32 %v2671, %v2694
        %v2703 = vadd.f32 %v2672, %v2695
        %v2704 = vadd.f32 %v2673, %v2696
      $region98: #{tpu_custom_call.1} parent=41 // loop_footer
        %s2445 = sadd.s32 1, %s2441
      $region99: #{tpu_custom_call.1} parent=41 // loop_footer_branch
        %2440 = sbr.rel target = $region95
      $region100: #{tpu_custom_call.1} parent=41 // loop_exit
        _
      %v2705 = vxor.u32 %v2446, 2147483648
      %v2706 = vxor.u32 %v2447, 2147483648
      %v2707 = vxor.u32 %v2448, 2147483648
      %v2708 = vxor.u32 %v2449, 2147483648
      %v2709 = vxor.u32 %v2450, 2147483648
      %v2710 = vxor.u32 %v2451, 2147483648
      %v2711 = vxor.u32 %v2452, 2147483648
      %v2712 = vxor.u32 %v2453, 2147483648
      %v2713 = vmul.f32 %v2705, 1.442695
      %v2714 = vpow.pop %v2713
      %v2715 = vmul.f32 %v2706, 1.442695
      %v2716 = vpow.pop %v2715
      %v2717 = vmul.f32 %v2707, 1.442695
      %v2718 = vpow.pop %v2717
      %v2719 = vmul.f32 %v2708, 1.442695
      %v2720 = vpow.pop %v2719
      %v2721 = vmul.f32 %v2709, 1.442695
      %v2722 = vpow.pop %v2721
      %v2723 = vmul.f32 %v2710, 1.442695
      %v2724 = vpow.pop %v2723
      %v2725 = vmul.f32 %v2711, 1.442695
      %v2726 = vpow.pop %v2725
      %v2727 = vmul.f32 %v2712, 1.442695
      %v2728 = vpow.pop %v2727
      %v2729 = vadd.f32 %v2714, 1.0
      %v2730 = vadd.f32 %v2716, 1.0
      %v2731 = vadd.f32 %v2718, 1.0
      %v2732 = vadd.f32 %v2720, 1.0
      %v2733 = vadd.f32 %v2722, 1.0
      %v2734 = vadd.f32 %v2724, 1.0
      %v2735 = vadd.f32 %v2726, 1.0
      %v2736 = vadd.f32 %v2728, 1.0
      %v2737 = vrcp.pop %v2729
      %v2738 = vmul.f32 1.0, %v2737
      %v2739 = vrcp.pop %v2730
      %v2740 = vmul.f32 1.0, %v2739
      %v2741 = vrcp.pop %v2731
      %v2742 = vmul.f32 1.0, %v2741
      %v2743 = vrcp.pop %v2732
      %v2744 = vmul.f32 1.0, %v2743
      %v2745 = vrcp.pop %v2733
      %v2746 = vmul.f32 1.0, %v2745
      %v2747 = vrcp.pop %v2734
      %v2748 = vmul.f32 1.0, %v2747
      %v2749 = vrcp.pop %v2735
      %v2750 = vmul.f32 1.0, %v2749
      %v2751 = vrcp.pop %v2736
      %v2752 = vmul.f32 1.0, %v2751
      %v2753 = vtanh.pop %v2428
      %v2754 = vtanh.pop %v2429
      %v2755 = vtanh.pop %v2430
      %v2756 = vtanh.pop %v2431
      %v2757 = vtanh.pop %v2432
      %v2758 = vtanh.pop %v2433
      %v2759 = vtanh.pop %v2434
      %v2760 = vtanh.pop %v2435
      %v2761 = vmul.f32 %v2738, %v2753
      %v2762 = vmul.f32 %v2740, %v2754
      %v2763 = vmul.f32 %v2742, %v2755
      %v2764 = vmul.f32 %v2744, %v2756
      %v2765 = vmul.f32 %v2746, %v2757
      %v2766 = vmul.f32 %v2748, %v2758
      %v2767 = vmul.f32 %v2750, %v2759
      %v2768 = vmul.f32 %v2752, %v2760
      %2769 = vst.msk [vmem:[#allocation4] sm:$0xff] %vm44, %v2428
      %2770 = vst.msk [vmem:[#allocation4 + $0x8] sm:$0xff] %vm44, %v2429
      %2771 = vst.msk [vmem:[#allocation4 + $0x10] sm:$0xff] %vm44, %v2430
      %2772 = vst.msk [vmem:[#allocation4 + $0x18] sm:$0xff] %vm44, %v2431
      %2773 = vst.msk [vmem:[#allocation4 + $0x20] sm:$0xff] %vm44, %v2432
      %2774 = vst.msk [vmem:[#allocation4 + $0x28] sm:$0xff] %vm44, %v2433
      %2775 = vst.msk [vmem:[#allocation4 + $0x30] sm:$0xff] %vm44, %v2434
      %2776 = vst.msk [vmem:[#allocation4 + $0x38] sm:$0xff] %vm44, %v2435
      %2777 = vst.msk [vmem:[#allocation2 + $0x20] sm:$0xff] %vm44, %v2761
      %2778 = vst.msk [vmem:[#allocation2 + $0x28] sm:$0xff] %vm44, %v2762
      %2779 = vst.msk [vmem:[#allocation2 + $0x30] sm:$0xff] %vm44, %v2763
      %2780 = vst.msk [vmem:[#allocation2 + $0x38] sm:$0xff] %vm44, %v2764
      %2781 = vst.msk [vmem:[#allocation2 + $0x60] sm:$0xff] %vm44, %v2765
      %2782 = vst.msk [vmem:[#allocation2 + $0x68] sm:$0xff] %vm44, %v2766
      %2783 = vst.msk [vmem:[#allocation2 + $0x70] sm:$0xff] %vm44, %v2767
      %2784 = vst.msk [vmem:[#allocation2 + $0x78] sm:$0xff] %vm44, %v2768
      %s2785 = sld [smem:[#allocation6 + %s78]]
      %v2786 = vstv %s2785
      %v2787 = vmul.f32 %v2786, %v2764
      %v2788 = vmul.f32 %v2786, %v2768
      %v2789 = vadd.f32 %v83, %v2787
      %v2790 = vadd.f32 %v84, %v2788
    $region42: #{tpu_custom_call.1} parent=1 // loop_footer
      %s82 = sadd.s32 1, %s78
    $region43: #{tpu_custom_call.1} parent=1 // loop_footer_branch
      %77 = sbr.rel target = $region39
    $region44: #{tpu_custom_call.1} parent=1 // loop_exit
      _
    %s2791 = sld [smem:[#allocation5]]
    %v2792 = vstv %s2791
    %v2793 = vadd.f32 %v83, %v2792
    %v2794 = vadd.f32 %v84, %v2792
    %v2797 = vrot.slane %v2794, 7
    %vm2800 = vcmask 64519
    %2801 = vst.msk [vmem:[#allocation9 - $0x7] sm:$0x80] %vm2800, %v2793
    %vm2802 = vcmask 57344
    %2803 = vst.msk [vmem:[#allocation9 + $0x1] sm:$0x1] %vm2802, %v2797
    // Predicated region
    $region101: #{tpu_custom_call.1} parent=1 // pred_check
      _
    $region102: #{tpu_custom_call.1} parent=1 // pred_check_branch
      %2805 = sbr.rel (0) target = $region104
    $region103: #{tpu_custom_call.1} parent=1 // pred_region
      %s2807 = ssub.s32 32, 32
      %2808 = vsyncadd [#allocation7], %s2807
      %s2810 = sshll.u32 [#allocation9], 4
      %s2811 = int_to_ptr.vmem [resolvable:$true] %s2810
      %2813 = dma.vmem_to_hbm [thread:$0]  %s2811, 32, %s8, [#allocation7]
    $region104: #{tpu_custom_call.1} parent=1 // pred_fallthru
      _
    // Predicated region
    $region105: #{tpu_custom_call.1} parent=1 // pred_check
      _
    $region106: #{tpu_custom_call.1} parent=1 // pred_check_branch
      %2815 = sbr.rel (0) target = $region108
    $region107: #{tpu_custom_call.1} parent=1 // pred_region
      %2816 = dma.done [#allocation7], 32
    $region108: #{tpu_custom_call.1} parent=1 // pred_fallthru
      _
    %2817 = vsyncpa [#allocation7], 1
    %2818 = vsyncpa [#allocation8], 1

</llo_original>
